<compile_context>
chip_gen: v5e
topology: v5e:2x2
jax: 0.10.0
libtpu: 0.0.40
codegen_flags: <defaults>
</compile_context>

<pallas_src>
import functools

import jax
import jax.numpy as jnp
import numpy as np
from jax import lax
from jax.experimental import pallas as pl
from jax.experimental.pallas import tpu as pltpu

EPS = 1e-5
SLOPE = 0.2


# ----------------------------- Pallas kernels -------------------------------


def _make_conv_stats_kernel(Tt, X, L, N):
    """Pass 1: fused two-branch 3x3x3 conv (banded matmul) + per-tile stats."""
    R = Tt * X

    def kernel(x_ref, w_ref, conv_ref, stats_ref):
        # x_ref:     (1, 1, Tt+2, X+2, L) f32  — T/X halo block, (Y+2)*Cin on lanes
        # w_ref:     (9, L, N) bf16            — banded taps, (kt, kx) flattened
        # conv_ref:  (1, 1, R, N) bf16         — raw conv (img half | gate half)
        # stats_ref: (1, 1, 2, N) f32          — per-tile [sum; sum of squares]
        acc = jnp.zeros((R, N), jnp.float32)
        for kt in range(3):
            xt = x_ref[0, 0, kt:kt + Tt]                      # (Tt, X+2, L)
            for kx in range(3):
                lhs = xt[:, kx:kx + X, :].reshape(R, L)       # tap window
                acc = acc + jnp.dot(lhs.astype(jnp.bfloat16),
                                    w_ref[kt * 3 + kx],
                                    preferred_element_type=jnp.float32)
        conv_ref[0, 0] = acc.astype(conv_ref.dtype)
        s1 = jnp.sum(acc, axis=0, keepdims=True)              # (1, N)
        s2 = jnp.sum(acc * acc, axis=0, keepdims=True)        # (1, N)
        stats_ref[0, 0] = jnp.concatenate([s1, s2], axis=0)   # (2, N)

    return kernel


def _make_norm_gate_kernel(H, slope):
    """Pass 2: InstanceNorm (precomputed scale/shift) + LeakyReLU/Sigmoid + gate."""

    def kernel(conv_ref, scale_ref, shift_ref, o_ref):
        # conv_ref:  (1, 1, R, 2H) bf16
        # scale_ref: (1, 1, 2H) f32   per-column 1/std
        # shift_ref: (1, 1, 2H) f32   per-column -mean/std
        # o_ref:     (1, 1, R, H) f32
        y = conv_ref[0, 0].astype(jnp.float32) * scale_ref[0] + shift_ref[0]
        img = y[:, :H]                                          # image branch
        gate = y[:, H:]                                         # gate branch
        img = jnp.where(img >= 0, img, slope * img)             # LeakyReLU(0.2)
        gate = pl.reciprocal(1.0 + jnp.exp(-gate), approx=True)  # Sigmoid (EUP)
        o_ref[0, 0] = (img * gate).astype(o_ref.dtype)

    return kernel


# ----------------------------- JAX glue / wrapper ---------------------------


def _pick_t_tile(T, X, row_target):
    """Largest divisor Tt of T such that Tt*X <= row_target (>= 1)."""
    best = 1
    for d in range(1, T + 1):
        if T % d == 0 and d * X <= row_target:
            best = d
    return best


def _banded_weight(w_img, w_gate, Y):
    """PyTorch Conv3d weights (Cout, Cin, 3,3,3) -> banded taps (9, (Y+2)*Cin, 2*Y*Cout).

    Column layout: [ img: (y, co) y-major | gate: (y, co) y-major ].
    """
    Cout, Cin = w_img.shape[0], w_img.shape[1]
    sel = np.zeros((3, Y + 2, Y), np.float32)
    for ky in range(3):
        for y in range(Y):
            sel[ky, y + ky, y] = 1.0
    sel = jnp.asarray(sel)

    def band(w):
        wr = jnp.transpose(w, (2, 3, 4, 1, 0))                 # (kt,kx,ky,Ci,Co)
        wb = jnp.einsum('krz,abkcd->abrczd', sel, wr)          # (3,3,Y+2,Ci,Y,Co)
        return wb.reshape(3, 3, (Y + 2) * Cin, Y * Cout)

    wb = jnp.concatenate([band(w_img), band(w_gate)], axis=-1)  # (3,3,L,2H)
    return wb.reshape(9, (Y + 2) * Cin, 2 * Y * Cout)


@functools.partial(jax.jit, static_argnames=("row_target",))
def gated_conv_block_3d(x_ncdhw, w_img, w_gate, *, row_target=512):
    """Forward pass of GatedConvBlock3D.

    Args:
      x_ncdhw: (B, Cin, T, X, Y) float32.
      w_img:   (Cout, Cin, 3, 3, 3) float32 — Conv3d weight (image branch).
      w_gate:  (Cout, Cin, 3, 3, 3) float32 — Conv3d weight (gate branch).
    Returns:
      (B, Cout, T, X, Y) float32.
    """
    B, Cin, T, X, Y = x_ncdhw.shape
    Cout = w_img.shape[0]

    Tt = _pick_t_tile(T, X, row_target)   # big T tile -> R = Tt*X ~ 256-512 rows
    nT = T // Tt
    L = (Y + 2) * Cin                     # input lanes per row
    H = Y * Cout                          # output lanes per branch
    N = 2 * H                             # both branches side by side
    R = Tt * X                            # rows per grid step

    # ---- wrapper-side layout prep (no 3x kx duplication anymore) ----
    xc = jnp.transpose(x_ncdhw, (0, 2, 3, 4, 1))                  # (B,T,X,Y,Ci)
    xp = jnp.pad(xc, ((0, 0), (1, 1), (1, 1), (1, 1), (0, 0)))    # pad=1 spatial
    xl = xp.reshape(B, T + 2, X + 2, L)                           # fold Y,Cin -> lanes
    # T slabs with halo 2 (only remaining duplication: (Tt+2)/Tt, small at big Tt)
    tidx = jnp.arange(nT)[:, None] * Tt + jnp.arange(Tt + 2)[None, :]
    xs = xl[:, tidx]                                              # (B,nT,Tt+2,X+2,L)

    wb = _banded_weight(w_img, w_gate, Y).astype(jnp.bfloat16)    # (9, L, N)

    # ---- pass 1: conv (both branches, bf16 MXU) + per-tile partial stats ----
    conv, stats = pl.pallas_call(
        _make_conv_stats_kernel(Tt, X, L, N),
        out_shape=(jax.ShapeDtypeStruct((B, nT, R, N), jnp.bfloat16),
                   jax.ShapeDtypeStruct((B, nT, 2, N), jnp.float32)),
        grid=(B, nT),
        in_specs=[
            pl.BlockSpec((1, 1, Tt + 2, X + 2, L), lambda b, t: (b, t, 0, 0, 0)),
            pl.BlockSpec((9, L, N), lambda b, t: (0, 0, 0)),
        ],
        out_specs=(
            pl.BlockSpec((1, 1, R, N), lambda b, t: (b, t, 0, 0)),
            pl.BlockSpec((1, 1, 2, N), lambda b, t: (b, t, 0, 0)),
        ),
        compiler_params=pltpu.CompilerParams(
            dimension_semantics=("parallel", "parallel")),
    )(xs, wb)

    # ---- tiny stat finalize in XLA: (B, 2 branches, Cout) scale/shift ----
    S_tot = T * X * Y
    st = stats.reshape(B, nT, 2, 2, Y, Cout).sum(axis=(1, 4))     # (B,stat,branch,Co)
    mean = st[:, 0] / S_tot
    var = st[:, 1] / S_tot - mean * mean
    inv = lax.rsqrt(var + EPS)                                    # (B, 2, Cout)
    scale = jnp.broadcast_to(inv[:, :, None, :], (B, 2, Y, Cout)).reshape(B, 1, N)
    shift = jnp.broadcast_to((-mean * inv)[:, :, None, :],
                             (B, 2, Y, Cout)).reshape(B, 1, N)

    # ---- pass 2: normalize + LeakyReLU / Sigmoid + gated product ----
    out_tiles = pl.pallas_call(
        _make_norm_gate_kernel(H, SLOPE),
        out_shape=jax.ShapeDtypeStruct((B, nT, R, H), jnp.float32),
        grid=(B, nT),
        in_specs=[
            pl.BlockSpec((1, 1, R, N), lambda b, t: (b, t, 0, 0)),
            pl.BlockSpec((1, 1, N), lambda b, t: (b, 0, 0)),
            pl.BlockSpec((1, 1, N), lambda b, t: (b, 0, 0)),
        ],
        out_specs=pl.BlockSpec((1, 1, R, H), lambda b, t: (b, t, 0, 0)),
        compiler_params=pltpu.CompilerParams(
            dimension_semantics=("parallel", "parallel")),
    )(conv, scale, shift)

    # ---- back to PyTorch NCDHW ----
    # TODO(synk): if the surrounding model accepts channels-last, skip this
    #             transpose (and the initial one) to save two HBM round trips.
    out = out_tiles.reshape(B, nT, Tt, X, Y, Cout)
    out = jnp.transpose(out, (0, 5, 1, 2, 3, 4)).reshape(B, Cout, T, X, Y)
    return out


# ----------------------------- reference (pure JAX) -------------------------


def _reference(x, w_img, w_gate, eps=EPS, slope=SLOPE):
    def conv_in(w):
        y = lax.conv_general_dilated(
            x, w, window_strides=(1, 1, 1),
            padding=((1, 1), (1, 1), (1, 1)),
            dimension_numbers=("NCDHW", "OIDHW", "NCDHW"))
        m = y.mean(axis=(2, 3, 4), keepdims=True)
        v = ((y - m) ** 2).mean(axis=(2, 3, 4), keepdims=True)
        return (y - m) * lax.rsqrt(v + eps)

    yi = conv_in(w_img)
    yi = jnp.where(yi >= 0, yi, slope * yi)
    yg = jax.nn.sigmoid(conv_in(w_gate))
    return yi * yg


# ----------------------------- main ------------------------------------------


if __name__ == "__main__":
    B, Cin, Cout = 2, 4, 8
    T, X, Y = 16, 16, 16   # R = Tt*X = 256 rows/step; N = 2*Y*Cout = 256 lanes

    key = jax.random.PRNGKey(0)
    kx_key, k1, k2 = jax.random.split(key, 3)
    x = jax.random.normal(kx_key, (B, Cin, T, X, Y), jnp.float32)
    w_img = 0.2 * jax.random.normal(k1, (Cout, Cin, 3, 3, 3), jnp.float32)
    w_gate = 0.2 * jax.random.normal(k2, (Cout, Cin, 3, 3, 3), jnp.float32)

    out = jax.block_until_ready(gated_conv_block_3d(x, w_img, w_gate))
    assert out.shape == (B, Cout, T, X, Y), out.shape

    ref = jax.block_until_ready(_reference(x, w_img, w_gate))
    # bf16 MXU operands + bf16 conv intermediate -> ~0.5% relative error vs f32.
    np.testing.assert_allclose(np.asarray(out), np.asarray(ref),
                               rtol=2e-2, atol=2e-2)

    print("KERNEL_OK")
</pallas_src>

<mosaic_0001>
module attributes {stable_mosaic.version = 11 : i64} {
  func.func @kernel(%arg0: i32, %arg1: i32, %arg2: memref<1x1x18x18x72xf32, #tpu.memory_space<vmem>>, %arg3: memref<9x72x256xbf16, #tpu.memory_space<vmem>>, %arg4: memref<1x1x256x256xbf16, #tpu.memory_space<vmem>>, %arg5: memref<1x1x2x256xf32, #tpu.memory_space<vmem>>) attributes {dimension_semantics = [#tpu.dimension_semantics<parallel>, #tpu.dimension_semantics<parallel>], iteration_bounds = array<i64: 2, 1>, scalar_prefetch = 0 : i64, scratch_operands = 0 : i64, tpu.core_type = #tpu.core_type<tc>, window_params = [{transform_indices = @transform_0, window_bounds = array<i64: 1, 1, 18, 18, 72>}, {pipeline_mode = #tpu.pipeline_mode<synchronous>, transform_indices = @transform_1, window_bounds = array<i64: 9, 72, 256>}, {transform_indices = @transform_2, window_bounds = array<i64: 1, 1, 256, 256>}, {transform_indices = @transform_3, window_bounds = array<i64: 1, 1, 2, 256>}]} {
    %cst = arith.constant 0.000000e+00 : f32
    %0 = vector.broadcast %cst : f32 to vector<256x256xf32>
    %c0 = arith.constant 0 : index
    %c0_0 = arith.constant 0 : index
    %c0_1 = arith.constant 0 : index
    %c0_2 = arith.constant 0 : index
    %c0_3 = arith.constant 0 : index
    %1 = vector.load %arg2[%c0, %c0_0, %c0_1, %c0_2, %c0_3] : memref<1x1x18x18x72xf32, #tpu.memory_space<vmem>>, vector<1x1x16x18x72xf32>
    %2 = vector.shape_cast %1 : vector<1x1x16x18x72xf32> to vector<16x18x72xf32>
    %3 = vector.extract_strided_slice %2 {offsets = [0, 0, 0], sizes = [16, 16, 72], strides = [1, 1, 1]} : vector<16x18x72xf32> to vector<16x16x72xf32>
    %4 = vector.shape_cast %3 : vector<16x16x72xf32> to vector<256x72xf32>
    %5 = arith.truncf %4 : vector<256x72xf32> to vector<256x72xbf16>
    %c0_4 = arith.constant 0 : index
    %c0_5 = arith.constant 0 : index
    %c0_6 = arith.constant 0 : index
    %6 = vector.load %arg3[%c0_4, %c0_5, %c0_6] : memref<9x72x256xbf16, #tpu.memory_space<vmem>>, vector<1x72x256xbf16>
    %7 = vector.shape_cast %6 : vector<1x72x256xbf16> to vector<72x256xbf16>
    %cst_7 = arith.constant dense<0.000000e+00> : vector<256x256xf32>
    %8 = tpu.matmul %5, %7, %cst_7 {dimension_numbers = #tpu.dot_dimension_numbers<[1], [0], [0], [1], [0, 0, 1, 1], [], []>} : vector<256x72xbf16>, vector<72x256xbf16>, vector<256x256xf32> -> vector<256x256xf32>
    %9 = arith.addf %0, %8 : vector<256x256xf32>
    %10 = vector.extract_strided_slice %2 {offsets = [0, 1, 0], sizes = [16, 16, 72], strides = [1, 1, 1]} : vector<16x18x72xf32> to vector<16x16x72xf32>
    %11 = vector.shape_cast %10 : vector<16x16x72xf32> to vector<256x72xf32>
    %12 = arith.truncf %11 : vector<256x72xf32> to vector<256x72xbf16>
    %c1 = arith.constant 1 : index
    %c0_8 = arith.constant 0 : index
    %c0_9 = arith.constant 0 : index
    %13 = vector.load %arg3[%c1, %c0_8, %c0_9] : memref<9x72x256xbf16, #tpu.memory_space<vmem>>, vector<1x72x256xbf16>
    %14 = vector.shape_cast %13 : vector<1x72x256xbf16> to vector<72x256xbf16>
    %cst_10 = arith.constant dense<0.000000e+00> : vector<256x256xf32>
    %15 = tpu.matmul %12, %14, %cst_10 {dimension_numbers = #tpu.dot_dimension_numbers<[1], [0], [0], [1], [0, 0, 1, 1], [], []>} : vector<256x72xbf16>, vector<72x256xbf16>, vector<256x256xf32> -> vector<256x256xf32>
    %16 = arith.addf %9, %15 : vector<256x256xf32>
    %17 = vector.extract_strided_slice %2 {offsets = [0, 2, 0], sizes = [16, 16, 72], strides = [1, 1, 1]} : vector<16x18x72xf32> to vector<16x16x72xf32>
    %18 = vector.shape_cast %17 : vector<16x16x72xf32> to vector<256x72xf32>
    %19 = arith.truncf %18 : vector<256x72xf32> to vector<256x72xbf16>
    %c2 = arith.constant 2 : index
    %c0_11 = arith.constant 0 : index
    %c0_12 = arith.constant 0 : index
    %20 = vector.load %arg3[%c2, %c0_11, %c0_12] : memref<9x72x256xbf16, #tpu.memory_space<vmem>>, vector<1x72x256xbf16>
    %21 = vector.shape_cast %20 : vector<1x72x256xbf16> to vector<72x256xbf16>
    %cst_13 = arith.constant dense<0.000000e+00> : vector<256x256xf32>
    %22 = tpu.matmul %19, %21, %cst_13 {dimension_numbers = #tpu.dot_dimension_numbers<[1], [0], [0], [1], [0, 0, 1, 1], [], []>} : vector<256x72xbf16>, vector<72x256xbf16>, vector<256x256xf32> -> vector<256x256xf32>
    %23 = arith.addf %16, %22 : vector<256x256xf32>
    %c0_14 = arith.constant 0 : index
    %c0_15 = arith.constant 0 : index
    %c1_16 = arith.constant 1 : index
    %c0_17 = arith.constant 0 : index
    %c0_18 = arith.constant 0 : index
    %24 = vector.load %arg2[%c0_14, %c0_15, %c1_16, %c0_17, %c0_18] : memref<1x1x18x18x72xf32, #tpu.memory_space<vmem>>, vector<1x1x16x18x72xf32>
    %25 = vector.shape_cast %24 : vector<1x1x16x18x72xf32> to vector<16x18x72xf32>
    %26 = vector.extract_strided_slice %25 {offsets = [0, 0, 0], sizes = [16, 16, 72], strides = [1, 1, 1]} : vector<16x18x72xf32> to vector<16x16x72xf32>
    %27 = vector.shape_cast %26 : vector<16x16x72xf32> to vector<256x72xf32>
    %28 = arith.truncf %27 : vector<256x72xf32> to vector<256x72xbf16>
    %c3 = arith.constant 3 : index
    %c0_19 = arith.constant 0 : index
    %c0_20 = arith.constant 0 : index
    %29 = vector.load %arg3[%c3, %c0_19, %c0_20] : memref<9x72x256xbf16, #tpu.memory_space<vmem>>, vector<1x72x256xbf16>
    %30 = vector.shape_cast %29 : vector<1x72x256xbf16> to vector<72x256xbf16>
    %cst_21 = arith.constant dense<0.000000e+00> : vector<256x256xf32>
    %31 = tpu.matmul %28, %30, %cst_21 {dimension_numbers = #tpu.dot_dimension_numbers<[1], [0], [0], [1], [0, 0, 1, 1], [], []>} : vector<256x72xbf16>, vector<72x256xbf16>, vector<256x256xf32> -> vector<256x256xf32>
    %32 = arith.addf %23, %31 : vector<256x256xf32>
    %33 = vector.extract_strided_slice %25 {offsets = [0, 1, 0], sizes = [16, 16, 72], strides = [1, 1, 1]} : vector<16x18x72xf32> to vector<16x16x72xf32>
    %34 = vector.shape_cast %33 : vector<16x16x72xf32> to vector<256x72xf32>
    %35 = arith.truncf %34 : vector<256x72xf32> to vector<256x72xbf16>
    %c4 = arith.constant 4 : index
    %c0_22 = arith.constant 0 : index
    %c0_23 = arith.constant 0 : index
    %36 = vector.load %arg3[%c4, %c0_22, %c0_23] : memref<9x72x256xbf16, #tpu.memory_space<vmem>>, vector<1x72x256xbf16>
    %37 = vector.shape_cast %36 : vector<1x72x256xbf16> to vector<72x256xbf16>
    %cst_24 = arith.constant dense<0.000000e+00> : vector<256x256xf32>
    %38 = tpu.matmul %35, %37, %cst_24 {dimension_numbers = #tpu.dot_dimension_numbers<[1], [0], [0], [1], [0, 0, 1, 1], [], []>} : vector<256x72xbf16>, vector<72x256xbf16>, vector<256x256xf32> -> vector<256x256xf32>
    %39 = arith.addf %32, %38 : vector<256x256xf32>
    %40 = vector.extract_strided_slice %25 {offsets = [0, 2, 0], sizes = [16, 16, 72], strides = [1, 1, 1]} : vector<16x18x72xf32> to vector<16x16x72xf32>
    %41 = vector.shape_cast %40 : vector<16x16x72xf32> to vector<256x72xf32>
    %42 = arith.truncf %41 : vector<256x72xf32> to vector<256x72xbf16>
    %c5 = arith.constant 5 : index
    %c0_25 = arith.constant 0 : index
    %c0_26 = arith.constant 0 : index
    %43 = vector.load %arg3[%c5, %c0_25, %c0_26] : memref<9x72x256xbf16, #tpu.memory_space<vmem>>, vector<1x72x256xbf16>
    %44 = vector.shape_cast %43 : vector<1x72x256xbf16> to vector<72x256xbf16>
    %cst_27 = arith.constant dense<0.000000e+00> : vector<256x256xf32>
    %45 = tpu.matmul %42, %44, %cst_27 {dimension_numbers = #tpu.dot_dimension_numbers<[1], [0], [0], [1], [0, 0, 1, 1], [], []>} : vector<256x72xbf16>, vector<72x256xbf16>, vector<256x256xf32> -> vector<256x256xf32>
    %46 = arith.addf %39, %45 : vector<256x256xf32>
    %c0_28 = arith.constant 0 : index
    %c0_29 = arith.constant 0 : index
    %c2_30 = arith.constant 2 : index
    %c0_31 = arith.constant 0 : index
    %c0_32 = arith.constant 0 : index
    %47 = vector.load %arg2[%c0_28, %c0_29, %c2_30, %c0_31, %c0_32] : memref<1x1x18x18x72xf32, #tpu.memory_space<vmem>>, vector<1x1x16x18x72xf32>
    %48 = vector.shape_cast %47 : vector<1x1x16x18x72xf32> to vector<16x18x72xf32>
    %49 = vector.extract_strided_slice %48 {offsets = [0, 0, 0], sizes = [16, 16, 72], strides = [1, 1, 1]} : vector<16x18x72xf32> to vector<16x16x72xf32>
    %50 = vector.shape_cast %49 : vector<16x16x72xf32> to vector<256x72xf32>
    %51 = arith.truncf %50 : vector<256x72xf32> to vector<256x72xbf16>
    %c6 = arith.constant 6 : index
    %c0_33 = arith.constant 0 : index
    %c0_34 = arith.constant 0 : index
    %52 = vector.load %arg3[%c6, %c0_33, %c0_34] : memref<9x72x256xbf16, #tpu.memory_space<vmem>>, vector<1x72x256xbf16>
    %53 = vector.shape_cast %52 : vector<1x72x256xbf16> to vector<72x256xbf16>
    %cst_35 = arith.constant dense<0.000000e+00> : vector<256x256xf32>
    %54 = tpu.matmul %51, %53, %cst_35 {dimension_numbers = #tpu.dot_dimension_numbers<[1], [0], [0], [1], [0, 0, 1, 1], [], []>} : vector<256x72xbf16>, vector<72x256xbf16>, vector<256x256xf32> -> vector<256x256xf32>
    %55 = arith.addf %46, %54 : vector<256x256xf32>
    %56 = vector.extract_strided_slice %48 {offsets = [0, 1, 0], sizes = [16, 16, 72], strides = [1, 1, 1]} : vector<16x18x72xf32> to vector<16x16x72xf32>
    %57 = vector.shape_cast %56 : vector<16x16x72xf32> to vector<256x72xf32>
    %58 = arith.truncf %57 : vector<256x72xf32> to vector<256x72xbf16>
    %c7 = arith.constant 7 : index
    %c0_36 = arith.constant 0 : index
    %c0_37 = arith.constant 0 : index
    %59 = vector.load %arg3[%c7, %c0_36, %c0_37] : memref<9x72x256xbf16, #tpu.memory_space<vmem>>, vector<1x72x256xbf16>
    %60 = vector.shape_cast %59 : vector<1x72x256xbf16> to vector<72x256xbf16>
    %cst_38 = arith.constant dense<0.000000e+00> : vector<256x256xf32>
    %61 = tpu.matmul %58, %60, %cst_38 {dimension_numbers = #tpu.dot_dimension_numbers<[1], [0], [0], [1], [0, 0, 1, 1], [], []>} : vector<256x72xbf16>, vector<72x256xbf16>, vector<256x256xf32> -> vector<256x256xf32>
    %62 = arith.addf %55, %61 : vector<256x256xf32>
    %63 = vector.extract_strided_slice %48 {offsets = [0, 2, 0], sizes = [16, 16, 72], strides = [1, 1, 1]} : vector<16x18x72xf32> to vector<16x16x72xf32>
    %64 = vector.shape_cast %63 : vector<16x16x72xf32> to vector<256x72xf32>
    %65 = arith.truncf %64 : vector<256x72xf32> to vector<256x72xbf16>
    %c8 = arith.constant 8 : index
    %c0_39 = arith.constant 0 : index
    %c0_40 = arith.constant 0 : index
    %66 = vector.load %arg3[%c8, %c0_39, %c0_40] : memref<9x72x256xbf16, #tpu.memory_space<vmem>>, vector<1x72x256xbf16>
    %67 = vector.shape_cast %66 : vector<1x72x256xbf16> to vector<72x256xbf16>
    %cst_41 = arith.constant dense<0.000000e+00> : vector<256x256xf32>
    %68 = tpu.matmul %65, %67, %cst_41 {dimension_numbers = #tpu.dot_dimension_numbers<[1], [0], [0], [1], [0, 0, 1, 1], [], []>} : vector<256x72xbf16>, vector<72x256xbf16>, vector<256x256xf32> -> vector<256x256xf32>
    %69 = arith.addf %62, %68 : vector<256x256xf32>
    %70 = arith.truncf %69 : vector<256x256xf32> to vector<256x256xbf16>
    %c0_42 = arith.constant 0 : index
    %c0_43 = arith.constant 0 : index
    %c0_44 = arith.constant 0 : index
    %c0_45 = arith.constant 0 : index
    %71 = vector.load %arg4[%c0_42, %c0_43, %c0_44, %c0_45] : memref<1x1x256x256xbf16, #tpu.memory_space<vmem>>, vector<1x1x256x256xbf16>
    %72 = vector.shape_cast %71 : vector<1x1x256x256xbf16> to vector<256x256xbf16>
    %73 = vector.shape_cast %70 : vector<256x256xbf16> to vector<1x1x256x256xbf16>
    tpu.vector_store %arg4[%c0_42, %c0_43, %c0_44, %c0_45], %73 {strides = array<i32>} : memref<1x1x256x256xbf16, #tpu.memory_space<vmem>>, vector<1x1x256x256xbf16>,
    %cst_46 = arith.constant dense<0.000000e+00> : vector<256xf32>
    %74 = vector.multi_reduction <add>, %69, %cst_46 [0] : vector<256x256xf32> to vector<256xf32>
    %75 = vector.shape_cast %74 : vector<256xf32> to vector<1x256xf32>
    %76 = arith.mulf %69, %69 : vector<256x256xf32>
    %cst_47 = arith.constant dense<0.000000e+00> : vector<256xf32>
    %77 = vector.multi_reduction <add>, %76, %cst_47 [0] : vector<256x256xf32> to vector<256xf32>
    %78 = vector.shape_cast %77 : vector<256xf32> to vector<1x256xf32>
    %79 = tpu.concatenate %75, %78 in 0 : vector<1x256xf32>, vector<1x256xf32> -> vector<2x256xf32>
    %c0_48 = arith.constant 0 : index
    %c0_49 = arith.constant 0 : index
    %c0_50 = arith.constant 0 : index
    %c0_51 = arith.constant 0 : index
    %80 = vector.load %arg5[%c0_48, %c0_49, %c0_50, %c0_51] : memref<1x1x2x256xf32, #tpu.memory_space<vmem>>, vector<1x1x2x256xf32>
    %81 = vector.shape_cast %80 : vector<1x1x2x256xf32> to vector<2x256xf32>
    %82 = vector.shape_cast %79 : vector<2x256xf32> to vector<1x1x2x256xf32>
    tpu.vector_store %arg5[%c0_48, %c0_49, %c0_50, %c0_51], %82 {strides = array<i32>} : memref<1x1x2x256xf32, #tpu.memory_space<vmem>>, vector<1x1x2x256xf32>,
    return
  }
  func.func @transform_0(%arg0: i32, %arg1: i32) -> (i32, i32, i32, i32, i32) {
    %c0_i32 = arith.constant 0 : i32
    %c0_i32_0 = arith.constant 0 : i32
    %c0_i32_1 = arith.constant 0 : i32
    %c0_i32_2 = arith.constant 0 : i32
    return %arg0, %arg1, %c0_i32, %c0_i32_0, %c0_i32_1 : i32, i32, i32, i32, i32
  }
  func.func @transform_1(%arg0: i32, %arg1: i32) -> (i32, i32, i32) {
    %c0_i32 = arith.constant 0 : i32
    %c0_i32_0 = arith.constant 0 : i32
    %c0_i32_1 = arith.constant 0 : i32
    %c0_i32_2 = arith.constant 0 : i32
    return %c0_i32, %c0_i32_0, %c0_i32_1 : i32, i32, i32
  }
  func.func @transform_2(%arg0: i32, %arg1: i32) -> (i32, i32, i32, i32) {
    %c0_i32 = arith.constant 0 : i32
    %c0_i32_0 = arith.constant 0 : i32
    %c0_i32_1 = arith.constant 0 : i32
    return %arg0, %arg1, %c0_i32, %c0_i32_0 : i32, i32, i32, i32
  }
  func.func @transform_3(%arg0: i32, %arg1: i32) -> (i32, i32, i32, i32) {
    %c0_i32 = arith.constant 0 : i32
    %c0_i32_0 = arith.constant 0 : i32
    %c0_i32_1 = arith.constant 0 : i32
    return %arg0, %arg1, %c0_i32, %c0_i32_0 : i32, i32, i32, i32
  }
}

module attributes {stable_mosaic.version = 11 : i64} {
  func.func @kernel(%arg0: i32, %arg1: i32, %arg2: memref<1x1x256x256xbf16, #tpu.memory_space<vmem>>, %arg3: memref<1x1x256xf32, #tpu.memory_space<vmem>>, %arg4: memref<1x1x256xf32, #tpu.memory_space<vmem>>, %arg5: memref<1x1x256x128xf32, #tpu.memory_space<vmem>>) attributes {dimension_semantics = [#tpu.dimension_semantics<parallel>, #tpu.dimension_semantics<parallel>], iteration_bounds = array<i64: 2, 1>, scalar_prefetch = 0 : i64, scratch_operands = 0 : i64, tpu.core_type = #tpu.core_type<tc>, window_params = [{transform_indices = @transform_0, window_bounds = array<i64: 1, 1, 256, 256>}, {transform_indices = @transform_1, window_bounds = array<i64: 1, 1, 256>}, {transform_indices = @transform_2, window_bounds = array<i64: 1, 1, 256>}, {transform_indices = @transform_3, window_bounds = array<i64: 1, 1, 256, 128>}]} {
    %c0 = arith.constant 0 : index
    %c0_0 = arith.constant 0 : index
    %c0_1 = arith.constant 0 : index
    %c0_2 = arith.constant 0 : index
    %0 = vector.load %arg2[%c0, %c0_0, %c0_1, %c0_2] : memref<1x1x256x256xbf16, #tpu.memory_space<vmem>>, vector<1x1x256x256xbf16>
    %1 = vector.shape_cast %0 : vector<1x1x256x256xbf16> to vector<256x256xbf16>
    %2 = arith.extf %1 : vector<256x256xbf16> to vector<256x256xf32>
    %c0_3 = arith.constant 0 : index
    %c0_4 = arith.constant 0 : index
    %c0_5 = arith.constant 0 : index
    %3 = vector.load %arg3[%c0_3, %c0_4, %c0_5] : memref<1x1x256xf32, #tpu.memory_space<vmem>>, vector<1x1x256xf32>
    %4 = vector.shape_cast %3 : vector<1x1x256xf32> to vector<1x256xf32>
    %5 = vector.broadcast %4 : vector<1x256xf32> to vector<256x256xf32>
    %6 = arith.mulf %2, %5 : vector<256x256xf32>
    %c0_6 = arith.constant 0 : index
    %c0_7 = arith.constant 0 : index
    %c0_8 = arith.constant 0 : index
    %7 = vector.load %arg4[%c0_6, %c0_7, %c0_8] : memref<1x1x256xf32, #tpu.memory_space<vmem>>, vector<1x1x256xf32>
    %8 = vector.shape_cast %7 : vector<1x1x256xf32> to vector<1x256xf32>
    %9 = vector.broadcast %8 : vector<1x256xf32> to vector<256x256xf32>
    %10 = arith.addf %6, %9 : vector<256x256xf32>
    %11 = vector.extract_strided_slice %10 {offsets = [0, 0], sizes = [256, 128], strides = [1, 1]} : vector<256x256xf32> to vector<256x128xf32>
    %12 = vector.extract_strided_slice %10 {offsets = [0, 128], sizes = [256, 128], strides = [1, 1]} : vector<256x256xf32> to vector<256x128xf32>
    %cst = arith.constant 0.000000e+00 : f32
    %13 = vector.broadcast %cst : f32 to vector<256x128xf32>
    %14 = arith.cmpf oge, %11, %13 : vector<256x128xf32>
    %cst_9 = arith.constant 2.000000e-01 : f32
    %15 = vector.broadcast %cst_9 : f32 to vector<256x128xf32>
    %16 = arith.mulf %15, %11 : vector<256x128xf32>
    %17 = arith.select %14, %11, %16 : vector<256x128xi1>, vector<256x128xf32>
    %cst_10 = arith.constant 0.000000e+00 : f32
    %18 = vector.broadcast %cst_10 : f32 to vector<256x128xf32>
    %19 = arith.subf %18, %12 : vector<256x128xf32>
    %20 = math.exp %19 : vector<256x128xf32>
    %cst_11 = arith.constant 1.000000e+00 : f32
    %21 = vector.broadcast %cst_11 : f32 to vector<256x128xf32>
    %22 = arith.addf %21, %20 : vector<256x128xf32>
    %23 = tpu.reciprocal %22 {approx = true} : vector<256x128xf32> -> vector<256x128xf32>
    %24 = arith.mulf %17, %23 : vector<256x128xf32>
    %c0_12 = arith.constant 0 : index
    %c0_13 = arith.constant 0 : index
    %c0_14 = arith.constant 0 : index
    %c0_15 = arith.constant 0 : index
    %25 = vector.load %arg5[%c0_12, %c0_13, %c0_14, %c0_15] : memref<1x1x256x128xf32, #tpu.memory_space<vmem>>, vector<1x1x256x128xf32>
    %26 = vector.shape_cast %25 : vector<1x1x256x128xf32> to vector<256x128xf32>
    %27 = vector.shape_cast %24 : vector<256x128xf32> to vector<1x1x256x128xf32>
    tpu.vector_store %arg5[%c0_12, %c0_13, %c0_14, %c0_15], %27 {strides = array<i32>} : memref<1x1x256x128xf32, #tpu.memory_space<vmem>>, vector<1x1x256x128xf32>,
    return
  }
  func.func @transform_0(%arg0: i32, %arg1: i32) -> (i32, i32, i32, i32) {
    %c0_i32 = arith.constant 0 : i32
    %c0_i32_0 = arith.constant 0 : i32
    %c0_i32_1 = arith.constant 0 : i32
    return %arg0, %arg1, %c0_i32, %c0_i32_0 : i32, i32, i32, i32
  }
  func.func @transform_1(%arg0: i32, %arg1: i32) -> (i32, i32, i32) {
    %c0_i32 = arith.constant 0 : i32
    %c0_i32_0 = arith.constant 0 : i32
    %c0_i32_1 = arith.constant 0 : i32
    return %arg0, %c0_i32, %c0_i32_0 : i32, i32, i32
  }
  func.func @transform_2(%arg0: i32, %arg1: i32) -> (i32, i32, i32) {
    %c0_i32 = arith.constant 0 : i32
    %c0_i32_0 = arith.constant 0 : i32
    %c0_i32_1 = arith.constant 0 : i32
    return %arg0, %c0_i32, %c0_i32_0 : i32, i32, i32
  }
  func.func @transform_3(%arg0: i32, %arg1: i32) -> (i32, i32, i32, i32) {
    %c0_i32 = arith.constant 0 : i32
    %c0_i32_0 = arith.constant 0 : i32
    %c0_i32_1 = arith.constant 0 : i32
    return %arg0, %arg1, %c0_i32, %c0_i32_0 : i32, i32, i32, i32
  }
}

</mosaic_0001>

<llo_original>
// kernel: gated_conv_block_3d.3
$region0: #{gated_conv_block_3d.3}
  #allocation0 [shape = 'u32[]', space=smem, size = 0x4, offset = 0x4, fixed_abs, tag = 'smem constant byte address 0x4 - core index']
  #allocation1 [shape = 'u32[72,128]{1,0:T(1,128)}', space=vmem, size = 0x9000, scoped, tag = 'internal scratch']
  %s0 = inlined_call_operand.vmem [shape: bf16[2,1,256,256], index: 0, kind: input, shape index: {}]
  %s1 = inlined_call_operand.vmem [shape: f32[2,1,256], index: 1, kind: input, shape index: {}]
  %s2 = inlined_call_operand.vmem [shape: f32[2,1,256], index: 2, kind: input, shape index: {}]
  %s3 = inlined_call_operand.vmem [shape: f32[2,1,256,128], index: 3, kind: output, shape index: {}]
  %s4 = sld [smem:[#allocation0]]
  $region45: #{gated_conv_block_3d.3} parent=0
    _
  %s6 = ssub.s32 1, %s4
  %s7 = scalar_select 0, %s6, %s4
  loop: start=0, step=1, limit=4
  $region2: #{gated_conv_block_3d.3} parent=0 // loop_pre_header
    _
  $region3: #{gated_conv_block_3d.3} parent=0 // loop_header
    %s9 = sphi 0, %s13
    %p10 = scmp.ge.s32.totalorder %s9, 4
    %s16 = sphi 0, %s28
    %s17 = sphi 0, %s24
    %s18 = sphi 0, %s16
    %s19 = sphi 0, %s17
    %s20 = sphi 0, %s18
    %s21 = sphi 0, %s19
    %s33 = sphi 0, %s35
    %s36 = sphi 0, %s33
    %s37 = sphi 0, %s36
    %s53 = sphi 0, %s37
    %s59 = sphi 0, %s61
    %s62 = sphi 0, %s59
    %s63 = sphi 0, %s62
    %s79 = sphi 0, %s63
    %s85 = sphi 0, %s87
    %s88 = sphi 0, %s85
    %s89 = sphi 0, %s88
    %s105 = sphi 0, %s89
    %s113 = sphi 0, %s115
    %s116 = sphi 0, %s113
    %s117 = sphi 0, %s116
    %s133 = sphi 0, %s117
  $region4: #{gated_conv_block_3d.3} parent=0 // loop_header_branch
    %12 = sbr.rel (%p10) target = $region8
  $region5: #{gated_conv_block_3d.3} parent=0 // loop_body
    %s14 = ssub.s32 %s9, 1
    %s15 = ssub.s32 %s9, 2
    %s22 = sadd.s32 1, %s17
    %p23 = scmp.ge.s32.totalorder %s22, 1
    %s24 = scalar_select %p23, 0, %s22
    %s25 = sadd.s32 1, %s16
    %s26 = scalar_select %p23, %s25, %s16
    %p27 = scmp.ge.s32.totalorder %s26, 2
    %s28 = scalar_select %p27, 0, %s26
    %s29 = ssub.s32 %s16, %s28
    %s30 = ssub.s32 %s17, %s24
    %s31 = sor.u32 %s29, %s30
    %p32 = scmp.eq.s32.totalorder %s31, 0
    %s34 = sadd.s32 %s33, 1
    %s35 = scalar_select %p32, %s33, %s34
    %p38 = pneg %p32
    %p39 = scmp.eq.s32.totalorder %s9, 1
    %p40 = por %p38, %p39
    %p41 = scmp.ne.s32.totalorder %s33, %s36
    %p42 = scmp.eq.s32.totalorder %s9, 0
    %p43 = por %p41, %p42
    %p44 = scmp.ne.s32.totalorder %s33, %s36
    %p45 = scmp.eq.s32.totalorder %s14, 1
    %p46 = por %p44, %p45
    %p47 = scmp.ne.s32.totalorder %s36, %s37
    %p48 = scmp.eq.s32.totalorder %s14, 0
    %p49 = por %p47, %p48
    %p50 = scmp.ne.s32.totalorder %s36, %s37
    %p51 = scmp.eq.s32.totalorder %s15, 1
    %p52 = por %p50, %p51
    %p54 = scmp.ne.s32.totalorder %s37, %s53
    %p55 = scmp.eq.s32.totalorder %s15, 0
    %p56 = por %p54, %p55
    %s57 = ssub.s32 %s16, %s28
    %p58 = scmp.eq.s32.totalorder %s57, 0
    %s60 = sadd.s32 %s59, 1
    %s61 = scalar_select %p58, %s59, %s60
    %p64 = pneg %p58
    %p65 = scmp.eq.s32.totalorder %s9, 1
    %p66 = por %p64, %p65
    %p67 = scmp.ne.s32.totalorder %s59, %s62
    %p68 = scmp.eq.s32.totalorder %s9, 0
    %p69 = por %p67, %p68
    %p70 = scmp.ne.s32.totalorder %s59, %s62
    %p71 = scmp.eq.s32.totalorder %s14, 1
    %p72 = por %p70, %p71
    %p73 = scmp.ne.s32.totalorder %s62, %s63
    %p74 = scmp.eq.s32.totalorder %s14, 0
    %p75 = por %p73, %p74
    %p76 = scmp.ne.s32.totalorder %s62, %s63
    %p77 = scmp.eq.s32.totalorder %s15, 1
    %p78 = por %p76, %p77
    %p80 = scmp.ne.s32.totalorder %s63, %s79
    %p81 = scmp.eq.s32.totalorder %s15, 0
    %p82 = por %p80, %p81
    %s83 = ssub.s32 %s16, %s28
    %p84 = scmp.eq.s32.totalorder %s83, 0
    %s86 = sadd.s32 %s85, 1
    %s87 = scalar_select %p84, %s85, %s86
    %p90 = pneg %p84
    %p91 = scmp.eq.s32.totalorder %s9, 1
    %p92 = por %p90, %p91
    %p93 = scmp.ne.s32.totalorder %s85, %s88
    %p94 = scmp.eq.s32.totalorder %s9, 0
    %p95 = por %p93, %p94
    %p96 = scmp.ne.s32.totalorder %s85, %s88
    %p97 = scmp.eq.s32.totalorder %s14, 1
    %p98 = por %p96, %p97
    %p99 = scmp.ne.s32.totalorder %s88, %s89
    %p100 = scmp.eq.s32.totalorder %s14, 0
    %p101 = por %p99, %p100
    %p102 = scmp.ne.s32.totalorder %s88, %s89
    %p103 = scmp.eq.s32.totalorder %s15, 1
    %p104 = por %p102, %p103
    %p106 = scmp.ne.s32.totalorder %s89, %s105
    %p107 = scmp.eq.s32.totalorder %s15, 0
    %p108 = por %p106, %p107
    %s109 = ssub.s32 %s16, %s28
    %s110 = ssub.s32 %s17, %s24
    %s111 = sor.u32 %s109, %s110
    %p112 = scmp.eq.s32.totalorder %s111, 0
    %s114 = sadd.s32 %s113, 1
    %s115 = scalar_select %p112, %s113, %s114
    %p118 = pneg %p112
    %p119 = scmp.eq.s32.totalorder %s9, 1
    %p120 = por %p118, %p119
    %p121 = scmp.ne.s32.totalorder %s113, %s116
    %p122 = scmp.eq.s32.totalorder %s9, 0
    %p123 = por %p121, %p122
    %p124 = scmp.ne.s32.totalorder %s113, %s116
    %p125 = scmp.eq.s32.totalorder %s14, 1
    %p126 = por %p124, %p125
    %p127 = scmp.ne.s32.totalorder %s116, %s117
    %p128 = scmp.eq.s32.totalorder %s14, 0
    %p129 = por %p127, %p128
    %p130 = scmp.ne.s32.totalorder %s116, %s117
    %p131 = scmp.eq.s32.totalorder %s15, 1
    %p132 = por %p130, %p131
    %p134 = scmp.ne.s32.totalorder %s117, %s133
    %p135 = scmp.eq.s32.totalorder %s15, 0
    %p136 = por %p134, %p135
    %p137 = scmp.le.s32.totalorder 1, %s9
    %p138 = scmp.lt.s32.totalorder %s9, 3
    %p139 = pnand %p137, %p138
    %p140 = pneg %p139
    // Predicated region
    $region9: #{gated_conv_block_3d.3} parent=5 // pred_check
      _
    $region10: #{gated_conv_block_3d.3} parent=5 // pred_check_branch
      %142 = sbr.rel (%p139) target = $region12
    $region11: #{gated_conv_block_3d.3} parent=5 // pred_region
      %s143 = ssub.s32 %s9, 1
    $region12: #{gated_conv_block_3d.3} parent=5 // pred_fallthru
      _
    %p144 = scmp.lt.s32.totalorder %s9, 2
    // Predicated region
    $region13: #{gated_conv_block_3d.3} parent=5 // pred_check
      %p145 = pneg %p144
    $region14: #{gated_conv_block_3d.3} parent=5 // pred_check_branch
      %147 = sbr.rel (%p145) target = $region16
    $region15: #{gated_conv_block_3d.3} parent=5 // pred_region
      // Predicated region
      $region17: #{gated_conv_block_3d.3} parent=15 // pred_check
        %p148 = pneg %p43
      $region18: #{gated_conv_block_3d.3} parent=15 // pred_check_branch
        %150 = sbr.rel (%p148) target = $region20
      $region19: #{gated_conv_block_3d.3} parent=15 // pred_region
        %p151 = scmp.lt.s32.totalorder %s16, 1
        %s152 = scalar_select %p151, %s16, 1
        %p153 = scmp.lt.s32.totalorder %s17, 0
        %s154 = scalar_select %p153, %s17, 0
        %s155 = smul.addr %s154, 64
        %s156 = smul.addr %s152, 64
        %s157 = sadd.s32 %s155, %s156
        %s158 = smul.addr %s157, 4
        %s159 = scalar_lea.vmem %s0, %s158
      $region20: #{gated_conv_block_3d.3} parent=15 // pred_fallthru
        _
      // Predicated region
      $region21: #{gated_conv_block_3d.3} parent=15 // pred_check
        %p160 = pneg %p69
      $region22: #{gated_conv_block_3d.3} parent=15 // pred_check_branch
        %162 = sbr.rel (%p160) target = $region24
      $region23: #{gated_conv_block_3d.3} parent=15 // pred_region
        %p163 = scmp.lt.s32.totalorder %s16, 1
        %s164 = scalar_select %p163, %s16, 1
        %s165 = smul.addr %s164, 2
        %s166 = scalar_lea.vmem %s1, %s165
      $region24: #{gated_conv_block_3d.3} parent=15 // pred_fallthru
        _
      // Predicated region
      $region25: #{gated_conv_block_3d.3} parent=15 // pred_check
        %p167 = pneg %p95
      $region26: #{gated_conv_block_3d.3} parent=15 // pred_check_branch
        %169 = sbr.rel (%p167) target = $region28
      $region27: #{gated_conv_block_3d.3} parent=15 // pred_region
        %p170 = scmp.lt.s32.totalorder %s16, 1
        %s171 = scalar_select %p170, %s16, 1
        %s172 = smul.addr %s171, 2
        %s173 = scalar_lea.vmem %s2, %s172
      $region28: #{gated_conv_block_3d.3} parent=15 // pred_fallthru
        _
    $region16: #{gated_conv_block_3d.3} parent=5 // pred_fallthru
      _
    %p174 = scmp.le.s32.totalorder 1, %s9
    %p175 = scmp.lt.s32.totalorder %s9, 3
    %p176 = pnand %p174, %p175
    %p177 = pneg %p176
    // Predicated region
    $region29: #{gated_conv_block_3d.3} parent=5 // pred_check
      _
    $region30: #{gated_conv_block_3d.3} parent=5 // pred_check_branch
      %179 = sbr.rel (%p176) target = $region32
    $region31: #{gated_conv_block_3d.3} parent=5 // pred_region
      %s180 = ssub.s32 %s9, 1
      %p181 = scmp.lt.s32.totalorder %s18, 1
      %s182 = scalar_select %p181, %s18, 1
      %p183 = scmp.lt.s32.totalorder %s19, 0
      %s184 = scalar_select %p183, %s19, 0
      %s185 = smul.addr %s184, 64
      %s186 = smul.addr %s182, 64
      %s187 = sadd.s32 %s185, %s186
      %s188 = smul.addr %s187, 4
      %s189 = scalar_lea.vmem %s0, %s188
      %p190 = pneg %p49
      %p191 = pneg %p46
      %p192 = scmp.lt.s32.totalorder %s18, 1
      %s193 = scalar_select %p192, %s18, 1
      %s194 = smul.addr %s193, 2
      %s195 = scalar_lea.vmem %s1, %s194
      %p196 = pneg %p75
      %p197 = pneg %p72
      %p198 = scmp.lt.s32.totalorder %s18, 1
      %s199 = scalar_select %p198, %s18, 1
      %s200 = smul.addr %s199, 2
      %s201 = scalar_lea.vmem %s2, %s200
      %p202 = pneg %p101
      %p203 = pneg %p98
      %p204 = pneg %p129
      %p205 = pneg %p126
      %p206 = scmp.lt.s32.totalorder %s18, 1
      %s207 = scalar_select %p206, %s18, 1
      %p208 = scmp.lt.s32.totalorder %s19, 0
      %s209 = scalar_select %p208, %s19, 0
      %s210 = smul.addr %s209, 32
      %s211 = smul.addr %s207, 32
      %s212 = sadd.s32 %s210, %s211
      %s213 = smul.addr %s212, 8
      %s214 = scalar_lea.vmem %s3, %s213
      %p215 = scmp.lt.s32.totalorder %s18, 1
      %s216 = scalar_select %p215, %s18, 1
      %p217 = scmp.lt.s32.totalorder %s19, 0
      %s218 = scalar_select %p217, %s19, 0
      %s219 = smul.addr %s218, 64
      %s220 = smul.addr %s216, 64
      %s221 = sadd.s32 %s219, %s220
      %s222 = smul.addr %s221, 4
      %s223 = scalar_lea.vmem %s0, %s222
      %p224 = scmp.lt.s32.totalorder %s18, 1
      %s225 = scalar_select %p224, %s18, 1
      %s226 = smul.addr %s225, 2
      %s227 = scalar_lea.vmem %s1, %s226
      %p228 = scmp.lt.s32.totalorder %s18, 1
      %s229 = scalar_select %p228, %s18, 1
      %s230 = smul.addr %s229, 2
      %s231 = scalar_lea.vmem %s2, %s230
      %p232 = scmp.lt.s32.totalorder %s18, 1
      %s233 = scalar_select %p232, %s18, 1
      %p234 = scmp.lt.s32.totalorder %s19, 0
      %s235 = scalar_select %p234, %s19, 0
      %s236 = smul.addr %s235, 32
      %s237 = smul.addr %s233, 32
      %s238 = sadd.s32 %s236, %s237
      %s239 = smul.addr %s238, 8
      %s240 = scalar_lea.vmem %s3, %s239
      %v241 = vld [vmem:[%s223] sm:$0xff]
      %v242 = vld [vmem:[%s223 + $0x8] sm:$0xff]
      %v243 = vld [vmem:[%s223 + $0x10] sm:$0xff]
      %v244 = vld [vmem:[%s223 + $0x18] sm:$0xff]
      %v245 = vld [vmem:[%s223 + $0x20] sm:$0xff]
      %v246 = vld [vmem:[%s223 + $0x28] sm:$0xff]
      %v247 = vld [vmem:[%s223 + $0x30] sm:$0xff]
      %v248 = vld [vmem:[%s223 + $0x38] sm:$0xff]
      %v249 = vld [vmem:[%s223 + $0x40] sm:$0xff]
      %v250 = vld [vmem:[%s223 + $0x48] sm:$0xff]
      %v251 = vld [vmem:[%s223 + $0x50] sm:$0xff]
      %v252 = vld [vmem:[%s223 + $0x58] sm:$0xff]
      %v253 = vld [vmem:[%s223 + $0x60] sm:$0xff]
      %v254 = vld [vmem:[%s223 + $0x68] sm:$0xff]
      %v255 = vld [vmem:[%s223 + $0x70] sm:$0xff]
      %v256 = vld [vmem:[%s223 + $0x78] sm:$0xff]
      %v257 = vld [vmem:[%s223 + $0x80] sm:$0xff]
      %v258 = vld [vmem:[%s223 + $0x88] sm:$0xff]
      %v259 = vld [vmem:[%s223 + $0x90] sm:$0xff]
      %v260 = vld [vmem:[%s223 + $0x98] sm:$0xff]
      %v261 = vld [vmem:[%s223 + $0xa0] sm:$0xff]
      %v262 = vld [vmem:[%s223 + $0xa8] sm:$0xff]
      %v263 = vld [vmem:[%s223 + $0xb0] sm:$0xff]
      %v264 = vld [vmem:[%s223 + $0xb8] sm:$0xff]
      %v265 = vld [vmem:[%s223 + $0xc0] sm:$0xff]
      %v266 = vld [vmem:[%s223 + $0xc8] sm:$0xff]
      %v267 = vld [vmem:[%s223 + $0xd0] sm:$0xff]
      %v268 = vld [vmem:[%s223 + $0xd8] sm:$0xff]
      %v269 = vld [vmem:[%s223 + $0xe0] sm:$0xff]
      %v270 = vld [vmem:[%s223 + $0xe8] sm:$0xff]
      %v271 = vld [vmem:[%s223 + $0xf0] sm:$0xff]
      %v272 = vld [vmem:[%s223 + $0xf8] sm:$0xff]
      %v273 = vunpack.c.l.bf16 %v241
      %v274 = vunpack.c.h.bf16 %v241
      %v275 = vunpack.c.l.bf16 %v242
      %v276 = vunpack.c.h.bf16 %v242
      %v277 = vunpack.c.l.bf16 %v243
      %v278 = vunpack.c.h.bf16 %v243
      %v279 = vunpack.c.l.bf16 %v244
      %v280 = vunpack.c.h.bf16 %v244
      %v281 = vunpack.c.l.bf16 %v245
      %v282 = vunpack.c.h.bf16 %v245
      %v283 = vunpack.c.l.bf16 %v246
      %v284 = vunpack.c.h.bf16 %v246
      %v285 = vunpack.c.l.bf16 %v247
      %v286 = vunpack.c.h.bf16 %v247
      %v287 = vunpack.c.l.bf16 %v248
      %v288 = vunpack.c.h.bf16 %v248
      %v289 = vunpack.c.l.bf16 %v249
      %v290 = vunpack.c.h.bf16 %v249
      %v291 = vunpack.c.l.bf16 %v250
      %v292 = vunpack.c.h.bf16 %v250
      %v293 = vunpack.c.l.bf16 %v251
      %v294 = vunpack.c.h.bf16 %v251
      %v295 = vunpack.c.l.bf16 %v252
      %v296 = vunpack.c.h.bf16 %v252
      %v297 = vunpack.c.l.bf16 %v253
      %v298 = vunpack.c.h.bf16 %v253
      %v299 = vunpack.c.l.bf16 %v254
      %v300 = vunpack.c.h.bf16 %v254
      %v301 = vunpack.c.l.bf16 %v255
      %v302 = vunpack.c.h.bf16 %v255
      %v303 = vunpack.c.l.bf16 %v256
      %v304 = vunpack.c.h.bf16 %v256
      %v305 = vunpack.c.l.bf16 %v257
      %v306 = vunpack.c.h.bf16 %v257
      %v307 = vunpack.c.l.bf16 %v258
      %v308 = vunpack.c.h.bf16 %v258
      %v309 = vunpack.c.l.bf16 %v259
      %v310 = vunpack.c.h.bf16 %v259
      %v311 = vunpack.c.l.bf16 %v260
      %v312 = vunpack.c.h.bf16 %v260
      %v313 = vunpack.c.l.bf16 %v261
      %v314 = vunpack.c.h.bf16 %v261
      %v315 = vunpack.c.l.bf16 %v262
      %v316 = vunpack.c.h.bf16 %v262
      %v317 = vunpack.c.l.bf16 %v263
      %v318 = vunpack.c.h.bf16 %v263
      %v319 = vunpack.c.l.bf16 %v264
      %v320 = vunpack.c.h.bf16 %v264
      %v321 = vunpack.c.l.bf16 %v265
      %v322 = vunpack.c.h.bf16 %v265
      %v323 = vunpack.c.l.bf16 %v266
      %v324 = vunpack.c.h.bf16 %v266
      %v325 = vunpack.c.l.bf16 %v267
      %v326 = vunpack.c.h.bf16 %v267
      %v327 = vunpack.c.l.bf16 %v268
      %v328 = vunpack.c.h.bf16 %v268
      %v329 = vunpack.c.l.bf16 %v269
      %v330 = vunpack.c.h.bf16 %v269
      %v331 = vunpack.c.l.bf16 %v270
      %v332 = vunpack.c.h.bf16 %v270
      %v333 = vunpack.c.l.bf16 %v271
      %v334 = vunpack.c.h.bf16 %v271
      %v335 = vunpack.c.l.bf16 %v272
      %v336 = vunpack.c.h.bf16 %v272
      %v337 = vld [vmem:[%s227] sm:$0x3]
      %v339 = vperm.slane %v337, 0
      %v340 = vperm.slane %v337, 1
      %v343 = vmul.f32 %v273, %v339
      %v344 = vmul.f32 %v274, %v340
      %v345 = vmul.f32 %v275, %v339
      %v346 = vmul.f32 %v276, %v340
      %v347 = vmul.f32 %v277, %v339
      %v348 = vmul.f32 %v278, %v340
      %v349 = vmul.f32 %v279, %v339
      %v350 = vmul.f32 %v280, %v340
      %v351 = vmul.f32 %v281, %v339
      %v352 = vmul.f32 %v282, %v340
      %v353 = vmul.f32 %v283, %v339
      %v354 = vmul.f32 %v284, %v340
      %v355 = vmul.f32 %v285, %v339
      %v356 = vmul.f32 %v286, %v340
      %v357 = vmul.f32 %v287, %v339
      %v358 = vmul.f32 %v288, %v340
      %v359 = vmul.f32 %v289, %v339
      %v360 = vmul.f32 %v290, %v340
      %v361 = vmul.f32 %v291, %v339
      %v362 = vmul.f32 %v292, %v340
      %v363 = vmul.f32 %v293, %v339
      %v364 = vmul.f32 %v294, %v340
      %v365 = vmul.f32 %v295, %v339
      %v366 = vmul.f32 %v296, %v340
      %v367 = vmul.f32 %v297, %v339
      %v368 = vmul.f32 %v298, %v340
      %v369 = vmul.f32 %v299, %v339
      %v370 = vmul.f32 %v300, %v340
      %v371 = vmul.f32 %v301, %v339
      %v372 = vmul.f32 %v302, %v340
      %v373 = vmul.f32 %v303, %v339
      %v374 = vmul.f32 %v304, %v340
      %v375 = vmul.f32 %v305, %v339
      %v376 = vmul.f32 %v306, %v340
      %v377 = vmul.f32 %v307, %v339
      %v378 = vmul.f32 %v308, %v340
      %v379 = vmul.f32 %v309, %v339
      %v380 = vmul.f32 %v310, %v340
      %v381 = vmul.f32 %v311, %v339
      %v382 = vmul.f32 %v312, %v340
      %v383 = vmul.f32 %v313, %v339
      %v384 = vmul.f32 %v314, %v340
      %v385 = vmul.f32 %v315, %v339
      %v386 = vmul.f32 %v316, %v340
      %v387 = vmul.f32 %v317, %v339
      %v388 = vmul.f32 %v318, %v340
      %v389 = vmul.f32 %v319, %v339
      %v390 = vmul.f32 %v320, %v340
      %v391 = vmul.f32 %v321, %v339
      %v392 = vmul.f32 %v322, %v340
      %v393 = vmul.f32 %v323, %v339
      %v394 = vmul.f32 %v324, %v340
      %v395 = vmul.f32 %v325, %v339
      %v396 = vmul.f32 %v326, %v340
      %v397 = vmul.f32 %v327, %v339
      %v398 = vmul.f32 %v328, %v340
      %v399 = vmul.f32 %v329, %v339
      %v400 = vmul.f32 %v330, %v340
      %v401 = vmul.f32 %v331, %v339
      %v402 = vmul.f32 %v332, %v340
      %v403 = vmul.f32 %v333, %v339
      %v404 = vmul.f32 %v334, %v340
      %v405 = vmul.f32 %v335, %v339
      %v406 = vmul.f32 %v336, %v340
      %v407 = vld [vmem:[%s231] sm:$0x3]
      %v409 = vperm.slane %v407, 0
      %v410 = vperm.slane %v407, 1
      %v413 = vadd.f32 %v343, %v409
      %v414 = vadd.f32 %v344, %v410
      %v415 = vadd.f32 %v345, %v409
      %v416 = vadd.f32 %v346, %v410
      %v417 = vadd.f32 %v347, %v409
      %v418 = vadd.f32 %v348, %v410
      %v419 = vadd.f32 %v349, %v409
      %v420 = vadd.f32 %v350, %v410
      %v421 = vadd.f32 %v351, %v409
      %v422 = vadd.f32 %v352, %v410
      %v423 = vadd.f32 %v353, %v409
      %v424 = vadd.f32 %v354, %v410
      %v425 = vadd.f32 %v355, %v409
      %v426 = vadd.f32 %v356, %v410
      %v427 = vadd.f32 %v357, %v409
      %v428 = vadd.f32 %v358, %v410
      %v429 = vadd.f32 %v359, %v409
      %v430 = vadd.f32 %v360, %v410
      %v431 = vadd.f32 %v361, %v409
      %v432 = vadd.f32 %v362, %v410
      %v433 = vadd.f32 %v363, %v409
      %v434 = vadd.f32 %v364, %v410
      %v435 = vadd.f32 %v365, %v409
      %v436 = vadd.f32 %v366, %v410
      %v437 = vadd.f32 %v367, %v409
      %v438 = vadd.f32 %v368, %v410
      %v439 = vadd.f32 %v369, %v409
      %v440 = vadd.f32 %v370, %v410
      %v441 = vadd.f32 %v371, %v409
      %v442 = vadd.f32 %v372, %v410
      %v443 = vadd.f32 %v373, %v409
      %v444 = vadd.f32 %v374, %v410
      %v445 = vadd.f32 %v375, %v409
      %v446 = vadd.f32 %v376, %v410
      %v447 = vadd.f32 %v377, %v409
      %v448 = vadd.f32 %v378, %v410
      %v449 = vadd.f32 %v379, %v409
      %v450 = vadd.f32 %v380, %v410
      %v451 = vadd.f32 %v381, %v409
      %v452 = vadd.f32 %v382, %v410
      %v453 = vadd.f32 %v383, %v409
      %v454 = vadd.f32 %v384, %v410
      %v455 = vadd.f32 %v385, %v409
      %v456 = vadd.f32 %v386, %v410
      %v457 = vadd.f32 %v387, %v409
      %v458 = vadd.f32 %v388, %v410
      %v459 = vadd.f32 %v389, %v409
      %v460 = vadd.f32 %v390, %v410
      %v461 = vadd.f32 %v391, %v409
      %v462 = vadd.f32 %v392, %v410
      %v463 = vadd.f32 %v393, %v409
      %v464 = vadd.f32 %v394, %v410
      %v465 = vadd.f32 %v395, %v409
      %v466 = vadd.f32 %v396, %v410
      %v467 = vadd.f32 %v397, %v409
      %v468 = vadd.f32 %v398, %v410
      %v469 = vadd.f32 %v399, %v409
      %v470 = vadd.f32 %v400, %v410
      %v471 = vadd.f32 %v401, %v409
      %v472 = vadd.f32 %v402, %v410
      %v473 = vadd.f32 %v403, %v409
      %v474 = vadd.f32 %v404, %v410
      %v475 = vadd.f32 %v405, %v409
      %v476 = vadd.f32 %v406, %v410
      %vm477 = vcmp.ge.f32.partialorder %v413, 0.0
      %vm478 = vcmp.ge.f32.partialorder %v415, 0.0
      %vm479 = vcmp.ge.f32.partialorder %v417, 0.0
      %vm480 = vcmp.ge.f32.partialorder %v419, 0.0
      %vm481 = vcmp.ge.f32.partialorder %v421, 0.0
      %vm482 = vcmp.ge.f32.partialorder %v423, 0.0
      %vm483 = vcmp.ge.f32.partialorder %v425, 0.0
      %vm484 = vcmp.ge.f32.partialorder %v427, 0.0
      %vm485 = vcmp.ge.f32.partialorder %v429, 0.0
      %vm486 = vcmp.ge.f32.partialorder %v431, 0.0
      %vm487 = vcmp.ge.f32.partialorder %v433, 0.0
      %vm488 = vcmp.ge.f32.partialorder %v435, 0.0
      %vm489 = vcmp.ge.f32.partialorder %v437, 0.0
      %vm490 = vcmp.ge.f32.partialorder %v439, 0.0
      %vm491 = vcmp.ge.f32.partialorder %v441, 0.0
      %vm492 = vcmp.ge.f32.partialorder %v443, 0.0
      %vm493 = vcmp.ge.f32.partialorder %v445, 0.0
      %vm494 = vcmp.ge.f32.partialorder %v447, 0.0
      %vm495 = vcmp.ge.f32.partialorder %v449, 0.0
      %vm496 = vcmp.ge.f32.partialorder %v451, 0.0
      %vm497 = vcmp.ge.f32.partialorder %v453, 0.0
      %vm498 = vcmp.ge.f32.partialorder %v455, 0.0
      %vm499 = vcmp.ge.f32.partialorder %v457, 0.0
      %vm500 = vcmp.ge.f32.partialorder %v459, 0.0
      %vm501 = vcmp.ge.f32.partialorder %v461, 0.0
      %vm502 = vcmp.ge.f32.partialorder %v463, 0.0
      %vm503 = vcmp.ge.f32.partialorder %v465, 0.0
      %vm504 = vcmp.ge.f32.partialorder %v467, 0.0
      %vm505 = vcmp.ge.f32.partialorder %v469, 0.0
      %vm506 = vcmp.ge.f32.partialorder %v471, 0.0
      %vm507 = vcmp.ge.f32.partialorder %v473, 0.0
      %vm508 = vcmp.ge.f32.partialorder %v475, 0.0
      %v509 = vmul.f32 %v413, 0.2
      %v510 = vmul.f32 %v415, 0.2
      %v511 = vmul.f32 %v417, 0.2
      %v512 = vmul.f32 %v419, 0.2
      %v513 = vmul.f32 %v421, 0.2
      %v514 = vmul.f32 %v423, 0.2
      %v515 = vmul.f32 %v425, 0.2
      %v516 = vmul.f32 %v427, 0.2
      %v517 = vmul.f32 %v429, 0.2
      %v518 = vmul.f32 %v431, 0.2
      %v519 = vmul.f32 %v433, 0.2
      %v520 = vmul.f32 %v435, 0.2
      %v521 = vmul.f32 %v437, 0.2
      %v522 = vmul.f32 %v439, 0.2
      %v523 = vmul.f32 %v441, 0.2
      %v524 = vmul.f32 %v443, 0.2
      %v525 = vmul.f32 %v445, 0.2
      %v526 = vmul.f32 %v447, 0.2
      %v527 = vmul.f32 %v449, 0.2
      %v528 = vmul.f32 %v451, 0.2
      %v529 = vmul.f32 %v453, 0.2
      %v530 = vmul.f32 %v455, 0.2
      %v531 = vmul.f32 %v457, 0.2
      %v532 = vmul.f32 %v459, 0.2
      %v533 = vmul.f32 %v461, 0.2
      %v534 = vmul.f32 %v463, 0.2
      %v535 = vmul.f32 %v465, 0.2
      %v536 = vmul.f32 %v467, 0.2
      %v537 = vmul.f32 %v469, 0.2
      %v538 = vmul.f32 %v471, 0.2
      %v539 = vmul.f32 %v473, 0.2
      %v540 = vmul.f32 %v475, 0.2
      %v541 = vsel %vm477, %v413, %v509
      %v542 = vsel %vm478, %v415, %v510
      %v543 = vsel %vm479, %v417, %v511
      %v544 = vsel %vm480, %v419, %v512
      %v545 = vsel %vm481, %v421, %v513
      %v546 = vsel %vm482, %v423, %v514
      %v547 = vsel %vm483, %v425, %v515
      %v548 = vsel %vm484, %v427, %v516
      %v549 = vsel %vm485, %v429, %v517
      %v550 = vsel %vm486, %v431, %v518
      %v551 = vsel %vm487, %v433, %v519
      %v552 = vsel %vm488, %v435, %v520
      %v553 = vsel %vm489, %v437, %v521
      %v554 = vsel %vm490, %v439, %v522
      %v555 = vsel %vm491, %v441, %v523
      %v556 = vsel %vm492, %v443, %v524
      %v557 = vsel %vm493, %v445, %v525
      %v558 = vsel %vm494, %v447, %v526
      %v559 = vsel %vm495, %v449, %v527
      %v560 = vsel %vm496, %v451, %v528
      %v561 = vsel %vm497, %v453, %v529
      %v562 = vsel %vm498, %v455, %v530
      %v563 = vsel %vm499, %v457, %v531
      %v564 = vsel %vm500, %v459, %v532
      %v565 = vsel %vm501, %v461, %v533
      %v566 = vsel %vm502, %v463, %v534
      %v567 = vsel %vm503, %v465, %v535
      %v568 = vsel %vm504, %v467, %v536
      %v569 = vsel %vm505, %v469, %v537
      %v570 = vsel %vm506, %v471, %v538
      %v571 = vsel %vm507, %v473, %v539
      %v572 = vsel %vm508, %v475, %v540
      %v573 = vsub.f32 0.0, %v414
      %v574 = vsub.f32 0.0, %v416
      %v575 = vsub.f32 0.0, %v418
      %v576 = vsub.f32 0.0, %v420
      %v577 = vsub.f32 0.0, %v422
      %v578 = vsub.f32 0.0, %v424
      %v579 = vsub.f32 0.0, %v426
      %v580 = vsub.f32 0.0, %v428
      %v581 = vsub.f32 0.0, %v430
      %v582 = vsub.f32 0.0, %v432
      %v583 = vsub.f32 0.0, %v434
      %v584 = vsub.f32 0.0, %v436
      %v585 = vsub.f32 0.0, %v438
      %v586 = vsub.f32 0.0, %v440
      %v587 = vsub.f32 0.0, %v442
      %v588 = vsub.f32 0.0, %v444
      %v589 = vsub.f32 0.0, %v446
      %v590 = vsub.f32 0.0, %v448
      %v591 = vsub.f32 0.0, %v450
      %v592 = vsub.f32 0.0, %v452
      %v593 = vsub.f32 0.0, %v454
      %v594 = vsub.f32 0.0, %v456
      %v595 = vsub.f32 0.0, %v458
      %v596 = vsub.f32 0.0, %v460
      %v597 = vsub.f32 0.0, %v462
      %v598 = vsub.f32 0.0, %v464
      %v599 = vsub.f32 0.0, %v466
      %v600 = vsub.f32 0.0, %v468
      %v601 = vsub.f32 0.0, %v470
      %v602 = vsub.f32 0.0, %v472
      %v603 = vsub.f32 0.0, %v474
      %v604 = vsub.f32 0.0, %v476
      %v605 = vmul.f32 %v573, 1.442695
      %v606 = vpow.pop %v605
      %v607 = vmul.f32 %v574, 1.442695
      %v608 = vpow.pop %v607
      %v609 = vmul.f32 %v575, 1.442695
      %v610 = vpow.pop %v609
      %v611 = vmul.f32 %v576, 1.442695
      %v612 = vpow.pop %v611
      %v613 = vmul.f32 %v577, 1.442695
      %v614 = vpow.pop %v613
      %v615 = vmul.f32 %v578, 1.442695
      %v616 = vpow.pop %v615
      %v617 = vmul.f32 %v579, 1.442695
      %v618 = vpow.pop %v617
      %v619 = vmul.f32 %v580, 1.442695
      %v620 = vpow.pop %v619
      %v621 = vmul.f32 %v581, 1.442695
      %v622 = vpow.pop %v621
      %v623 = vmul.f32 %v582, 1.442695
      %v624 = vpow.pop %v623
      %v625 = vmul.f32 %v583, 1.442695
      %v626 = vpow.pop %v625
      %v627 = vmul.f32 %v584, 1.442695
      %v628 = vpow.pop %v627
      %v629 = vmul.f32 %v585, 1.442695
      %v630 = vpow.pop %v629
      %v631 = vmul.f32 %v586, 1.442695
      %v632 = vpow.pop %v631
      %v633 = vmul.f32 %v587, 1.442695
      %v634 = vpow.pop %v633
      %v635 = vmul.f32 %v588, 1.442695
      %v636 = vpow.pop %v635
      %v637 = vmul.f32 %v589, 1.442695
      %v638 = vpow.pop %v637
      %v639 = vmul.f32 %v590, 1.442695
      %v640 = vpow.pop %v639
      %v641 = vmul.f32 %v591, 1.442695
      %v642 = vpow.pop %v641
      %v643 = vmul.f32 %v592, 1.442695
      %v644 = vpow.pop %v643
      %v645 = vmul.f32 %v593, 1.442695
      %v646 = vpow.pop %v645
      %v647 = vmul.f32 %v594, 1.442695
      %v648 = vpow.pop %v647
      %v649 = vmul.f32 %v595, 1.442695
      %v650 = vpow.pop %v649
      %v651 = vmul.f32 %v596, 1.442695
      %v652 = vpow.pop %v651
      %v653 = vmul.f32 %v597, 1.442695
      %v654 = vpow.pop %v653
      %v655 = vmul.f32 %v598, 1.442695
      %v656 = vpow.pop %v655
      %v657 = vmul.f32 %v599, 1.442695
      %v658 = vpow.pop %v657
      %v659 = vmul.f32 %v600, 1.442695
      %v660 = vpow.pop %v659
      %v661 = vmul.f32 %v601, 1.442695
      %v662 = vpow.pop %v661
      %v663 = vmul.f32 %v602, 1.442695
      %v664 = vpow.pop %v663
      %v665 = vmul.f32 %v603, 1.442695
      %v666 = vpow.pop %v665
      %v667 = vmul.f32 %v604, 1.442695
      %v668 = vpow.pop %v667
      %v669 = vadd.f32 %v606, 1.0
      %v670 = vadd.f32 %v608, 1.0
      %v671 = vadd.f32 %v610, 1.0
      %v672 = vadd.f32 %v612, 1.0
      %v673 = vadd.f32 %v614, 1.0
      %v674 = vadd.f32 %v616, 1.0
      %v675 = vadd.f32 %v618, 1.0
      %v676 = vadd.f32 %v620, 1.0
      %v677 = vadd.f32 %v622, 1.0
      %v678 = vadd.f32 %v624, 1.0
      %v679 = vadd.f32 %v626, 1.0
      %v680 = vadd.f32 %v628, 1.0
      %v681 = vadd.f32 %v630, 1.0
      %v682 = vadd.f32 %v632, 1.0
      %v683 = vadd.f32 %v634, 1.0
      %v684 = vadd.f32 %v636, 1.0
      %v685 = vadd.f32 %v638, 1.0
      %v686 = vadd.f32 %v640, 1.0
      %v687 = vadd.f32 %v642, 1.0
      %v688 = vadd.f32 %v644, 1.0
      %v689 = vadd.f32 %v646, 1.0
      %v690 = vadd.f32 %v648, 1.0
      %v691 = vadd.f32 %v650, 1.0
      %v692 = vadd.f32 %v652, 1.0
      %v693 = vadd.f32 %v654, 1.0
      %v694 = vadd.f32 %v656, 1.0
      %v695 = vadd.f32 %v658, 1.0
      %v696 = vadd.f32 %v660, 1.0
      %v697 = vadd.f32 %v662, 1.0
      %v698 = vadd.f32 %v664, 1.0
      %v699 = vadd.f32 %v666, 1.0
      %v700 = vadd.f32 %v668, 1.0
      %v701 = vrcp.pop %v669
      %v702 = vrcp.pop %v670
      %v703 = vrcp.pop %v671
      %v704 = vrcp.pop %v672
      %v705 = vrcp.pop %v673
      %v706 = vrcp.pop %v674
      %v707 = vrcp.pop %v675
      %v708 = vrcp.pop %v676
      %v709 = vrcp.pop %v677
      %v710 = vrcp.pop %v678
      %v711 = vrcp.pop %v679
      %v712 = vrcp.pop %v680
      %v713 = vrcp.pop %v681
      %v714 = vrcp.pop %v682
      %v715 = vrcp.pop %v683
      %v716 = vrcp.pop %v684
      %v717 = vrcp.pop %v685
      %v718 = vrcp.pop %v686
      %v719 = vrcp.pop %v687
      %v720 = vrcp.pop %v688
      %v721 = vrcp.pop %v689
      %v722 = vrcp.pop %v690
      %v723 = vrcp.pop %v691
      %v724 = vrcp.pop %v692
      %v725 = vrcp.pop %v693
      %v726 = vrcp.pop %v694
      %v727 = vrcp.pop %v695
      %v728 = vrcp.pop %v696
      %v729 = vrcp.pop %v697
      %v730 = vrcp.pop %v698
      %v731 = vrcp.pop %v699
      %v732 = vrcp.pop %v700
      %v733 = vmul.f32 %v541, %v701
      %v734 = vmul.f32 %v542, %v702
      %v735 = vmul.f32 %v543, %v703
      %v736 = vmul.f32 %v544, %v704
      %v737 = vmul.f32 %v545, %v705
      %v738 = vmul.f32 %v546, %v706
      %v739 = vmul.f32 %v547, %v707
      %v740 = vmul.f32 %v548, %v708
      %v741 = vmul.f32 %v549, %v709
      %v742 = vmul.f32 %v550, %v710
      %v743 = vmul.f32 %v551, %v711
      %v744 = vmul.f32 %v552, %v712
      %v745 = vmul.f32 %v553, %v713
      %v746 = vmul.f32 %v554, %v714
      %v747 = vmul.f32 %v555, %v715
      %v748 = vmul.f32 %v556, %v716
      %v749 = vmul.f32 %v557, %v717
      %v750 = vmul.f32 %v558, %v718
      %v751 = vmul.f32 %v559, %v719
      %v752 = vmul.f32 %v560, %v720
      %v753 = vmul.f32 %v561, %v721
      %v754 = vmul.f32 %v562, %v722
      %v755 = vmul.f32 %v563, %v723
      %v756 = vmul.f32 %v564, %v724
      %v757 = vmul.f32 %v565, %v725
      %v758 = vmul.f32 %v566, %v726
      %v759 = vmul.f32 %v567, %v727
      %v760 = vmul.f32 %v568, %v728
      %v761 = vmul.f32 %v569, %v729
      %v762 = vmul.f32 %v570, %v730
      %v763 = vmul.f32 %v571, %v731
      %v764 = vmul.f32 %v572, %v732
      %765 = vst [vmem:[%s240] sm:$0xff] %v733
      %766 = vst [vmem:[%s240 + $0x8] sm:$0xff] %v734
      %767 = vst [vmem:[%s240 + $0x10] sm:$0xff] %v735
      %768 = vst [vmem:[%s240 + $0x18] sm:$0xff] %v736
      %769 = vst [vmem:[%s240 + $0x20] sm:$0xff] %v737
      %770 = vst [vmem:[%s240 + $0x28] sm:$0xff] %v738
      %771 = vst [vmem:[%s240 + $0x30] sm:$0xff] %v739
      %772 = vst [vmem:[%s240 + $0x38] sm:$0xff] %v740
      %773 = vst [vmem:[%s240 + $0x40] sm:$0xff] %v741
      %774 = vst [vmem:[%s240 + $0x48] sm:$0xff] %v742
      %775 = vst [vmem:[%s240 + $0x50] sm:$0xff] %v743
      %776 = vst [vmem:[%s240 + $0x58] sm:$0xff] %v744
      %777 = vst [vmem:[%s240 + $0x60] sm:$0xff] %v745
      %778 = vst [vmem:[%s240 + $0x68] sm:$0xff] %v746
      %779 = vst [vmem:[%s240 + $0x70] sm:$0xff] %v747
      %780 = vst [vmem:[%s240 + $0x78] sm:$0xff] %v748
      %781 = vst [vmem:[%s240 + $0x80] sm:$0xff] %v749
      %782 = vst [vmem:[%s240 + $0x88] sm:$0xff] %v750
      %783 = vst [vmem:[%s240 + $0x90] sm:$0xff] %v751
      %784 = vst [vmem:[%s240 + $0x98] sm:$0xff] %v752
      %785 = vst [vmem:[%s240 + $0xa0] sm:$0xff] %v753
      %786 = vst [vmem:[%s240 + $0xa8] sm:$0xff] %v754
      %787 = vst [vmem:[%s240 + $0xb0] sm:$0xff] %v755
      %788 = vst [vmem:[%s240 + $0xb8] sm:$0xff] %v756
      %789 = vst [vmem:[%s240 + $0xc0] sm:$0xff] %v757
      %790 = vst [vmem:[%s240 + $0xc8] sm:$0xff] %v758
      %791 = vst [vmem:[%s240 + $0xd0] sm:$0xff] %v759
      %792 = vst [vmem:[%s240 + $0xd8] sm:$0xff] %v760
      %793 = vst [vmem:[%s240 + $0xe0] sm:$0xff] %v761
      %794 = vst [vmem:[%s240 + $0xe8] sm:$0xff] %v762
      %795 = vst [vmem:[%s240 + $0xf0] sm:$0xff] %v763
      %796 = vst [vmem:[%s240 + $0xf8] sm:$0xff] %v764
      %p797 = scmp.lt.s32.totalorder %s18, 1
      %s798 = scalar_select %p797, %s18, 1
      %p799 = scmp.lt.s32.totalorder %s19, 0
      %s800 = scalar_select %p799, %s19, 0
      %s801 = smul.addr %s800, 32
      %s802 = smul.addr %s798, 32
      %s803 = sadd.s32 %s801, %s802
      %s804 = smul.addr %s803, 8
      %s805 = scalar_lea.vmem %s3, %s804
      // Predicated region
      $region33: #{gated_conv_block_3d.3} parent=31 // pred_check
        %p806 = pneg %p126
      $region34: #{gated_conv_block_3d.3} parent=31 // pred_check_branch
        %808 = sbr.rel (%p806) target = $region36
      $region35: #{gated_conv_block_3d.3} parent=31 // pred_region
        _
      $region36: #{gated_conv_block_3d.3} parent=31 // pred_fallthru
        _
    $region32: #{gated_conv_block_3d.3} parent=5 // pred_fallthru
      _
    %p809 = scmp.le.s32.totalorder 2, %s9
    // Predicated region
    $region37: #{gated_conv_block_3d.3} parent=5 // pred_check
      %p810 = pneg %p809
    $region38: #{gated_conv_block_3d.3} parent=5 // pred_check_branch
      %812 = sbr.rel (%p810) target = $region40
    $region39: #{gated_conv_block_3d.3} parent=5 // pred_region
      %s813 = ssub.s32 %s9, 2
      // Predicated region
      $region41: #{gated_conv_block_3d.3} parent=39 // pred_check
        %p814 = pneg %p132
      $region42: #{gated_conv_block_3d.3} parent=39 // pred_check_branch
        %816 = sbr.rel (%p814) target = $region44
      $region43: #{gated_conv_block_3d.3} parent=39 // pred_region
        %p817 = scmp.lt.s32.totalorder %s20, 1
        %s818 = scalar_select %p817, %s20, 1
        %p819 = scmp.lt.s32.totalorder %s21, 0
        %s820 = scalar_select %p819, %s21, 0
        %s821 = smul.addr %s820, 32
        %s822 = smul.addr %s818, 32
        %s823 = sadd.s32 %s821, %s822
        %s824 = smul.addr %s823, 8
        %s825 = scalar_lea.vmem %s3, %s824
      $region44: #{gated_conv_block_3d.3} parent=39 // pred_fallthru
        _
    $region40: #{gated_conv_block_3d.3} parent=5 // pred_fallthru
      _
  $region6: #{gated_conv_block_3d.3} parent=0 // loop_footer
    %s13 = sadd.s32 1, %s9
  $region7: #{gated_conv_block_3d.3} parent=0 // loop_footer_branch
    %8 = sbr.rel target = $region3
  $region8: #{gated_conv_block_3d.3} parent=0 // loop_exit
    _

// kernel: gated_conv_block_3d.2
$region0: #{gated_conv_block_3d.2}
  #allocation0 [shape = 'u32[]', space=smem, size = 0x4, offset = 0x4, fixed_abs, tag = 'smem constant byte address 0x4 - core index']
  #allocation1 [shape = 'u32[72,128]{1,0:T(1,128)}', space=vmem, size = 0x9000, scoped, tag = 'internal scratch']
  %s0 = inlined_call_operand.vmem [shape: f32[2,1,18,18,72], index: 0, kind: input, shape index: {}]
  %s1 = inlined_call_operand.vmem [shape: bf16[9,72,256], index: 1, kind: input, shape index: {}]
  %s2 = inlined_call_operand.vmem [shape: bf16[2,1,256,256], index: 2, kind: output, shape index: {0}]
  %s3 = inlined_call_operand.vmem [shape: f32[2,1,2,256], index: 3, kind: output, shape index: {1}]
  %4 = xla_tuple %s2, %s3
  %s5 = sld [smem:[#allocation0]]
  $region49: #{gated_conv_block_3d.2} parent=0
    _
  %s7 = ssub.s32 1, %s5
  %s8 = scalar_select 0, %s7, %s5
  loop: start=0, step=1, limit=4
  $region2: #{gated_conv_block_3d.2} parent=0 // loop_pre_header
    _
  $region3: #{gated_conv_block_3d.2} parent=0 // loop_header
    %s10 = sphi 0, %s14
    %p11 = scmp.ge.s32.totalorder %s10, 4
    %s17 = sphi 0, %s29
    %s18 = sphi 0, %s25
    %s19 = sphi 0, %s17
    %s20 = sphi 0, %s18
    %s21 = sphi 0, %s19
    %s22 = sphi 0, %s20
    %s34 = sphi 0, %s36
    %s37 = sphi 0, %s34
    %s38 = sphi 0, %s37
    %s54 = sphi 0, %s38
    %s58 = sphi 0, %s58
    %s60 = sphi 0, %s58
    %s61 = sphi 0, %s60
    %s75 = sphi 0, %s61
    %s83 = sphi 0, %s85
    %s86 = sphi 0, %s83
    %s87 = sphi 0, %s86
    %s103 = sphi 0, %s87
    %s111 = sphi 0, %s113
    %s114 = sphi 0, %s111
    %s115 = sphi 0, %s114
    %s131 = sphi 0, %s115
  $region4: #{gated_conv_block_3d.2} parent=0 // loop_header_branch
    %13 = sbr.rel (%p11) target = $region8
  $region5: #{gated_conv_block_3d.2} parent=0 // loop_body
    %s15 = ssub.s32 %s10, 1
    %s16 = ssub.s32 %s10, 2
    %s23 = sadd.s32 1, %s18
    %p24 = scmp.ge.s32.totalorder %s23, 1
    %s25 = scalar_select %p24, 0, %s23
    %s26 = sadd.s32 1, %s17
    %s27 = scalar_select %p24, %s26, %s17
    %p28 = scmp.ge.s32.totalorder %s27, 2
    %s29 = scalar_select %p28, 0, %s27
    %s30 = ssub.s32 %s17, %s29
    %s31 = ssub.s32 %s18, %s25
    %s32 = sor.u32 %s30, %s31
    %p33 = scmp.eq.s32.totalorder %s32, 0
    %s35 = sadd.s32 %s34, 1
    %s36 = scalar_select %p33, %s34, %s35
    %p39 = pneg %p33
    %p40 = scmp.eq.s32.totalorder %s10, 1
    %p41 = por %p39, %p40
    %p42 = scmp.ne.s32.totalorder %s34, %s37
    %p43 = scmp.eq.s32.totalorder %s10, 0
    %p44 = por %p42, %p43
    %p45 = scmp.ne.s32.totalorder %s34, %s37
    %p46 = scmp.eq.s32.totalorder %s15, 1
    %p47 = por %p45, %p46
    %p48 = scmp.ne.s32.totalorder %s37, %s38
    %p49 = scmp.eq.s32.totalorder %s15, 0
    %p50 = por %p48, %p49
    %p51 = scmp.ne.s32.totalorder %s37, %s38
    %p52 = scmp.eq.s32.totalorder %s16, 1
    %p53 = por %p51, %p52
    %p55 = scmp.ne.s32.totalorder %s38, %s54
    %p56 = scmp.eq.s32.totalorder %s16, 0
    %p57 = por %p55, %p56
    %s59 = sadd.s32 %s58, 1
    %p62 = scmp.eq.s32.totalorder %s10, 1
    %p63 = scmp.ne.s32.totalorder %s58, %s60
    %p64 = scmp.eq.s32.totalorder %s10, 0
    %p65 = por %p63, %p64
    %p66 = scmp.ne.s32.totalorder %s58, %s60
    %p67 = scmp.eq.s32.totalorder %s15, 1
    %p68 = por %p66, %p67
    %p69 = scmp.ne.s32.totalorder %s60, %s61
    %p70 = scmp.eq.s32.totalorder %s15, 0
    %p71 = por %p69, %p70
    %p72 = scmp.ne.s32.totalorder %s60, %s61
    %p73 = scmp.eq.s32.totalorder %s16, 1
    %p74 = por %p72, %p73
    %p76 = scmp.ne.s32.totalorder %s61, %s75
    %p77 = scmp.eq.s32.totalorder %s16, 0
    %p78 = por %p76, %p77
    %s79 = ssub.s32 %s17, %s29
    %s80 = ssub.s32 %s18, %s25
    %s81 = sor.u32 %s79, %s80
    %p82 = scmp.eq.s32.totalorder %s81, 0
    %s84 = sadd.s32 %s83, 1
    %s85 = scalar_select %p82, %s83, %s84
    %p88 = pneg %p82
    %p89 = scmp.eq.s32.totalorder %s10, 1
    %p90 = por %p88, %p89
    %p91 = scmp.ne.s32.totalorder %s83, %s86
    %p92 = scmp.eq.s32.totalorder %s10, 0
    %p93 = por %p91, %p92
    %p94 = scmp.ne.s32.totalorder %s83, %s86
    %p95 = scmp.eq.s32.totalorder %s15, 1
    %p96 = por %p94, %p95
    %p97 = scmp.ne.s32.totalorder %s86, %s87
    %p98 = scmp.eq.s32.totalorder %s15, 0
    %p99 = por %p97, %p98
    %p100 = scmp.ne.s32.totalorder %s86, %s87
    %p101 = scmp.eq.s32.totalorder %s16, 1
    %p102 = por %p100, %p101
    %p104 = scmp.ne.s32.totalorder %s87, %s103
    %p105 = scmp.eq.s32.totalorder %s16, 0
    %p106 = por %p104, %p105
    %s107 = ssub.s32 %s17, %s29
    %s108 = ssub.s32 %s18, %s25
    %s109 = sor.u32 %s107, %s108
    %p110 = scmp.eq.s32.totalorder %s109, 0
    %s112 = sadd.s32 %s111, 1
    %s113 = scalar_select %p110, %s111, %s112
    %p116 = pneg %p110
    %p117 = scmp.eq.s32.totalorder %s10, 1
    %p118 = por %p116, %p117
    %p119 = scmp.ne.s32.totalorder %s111, %s114
    %p120 = scmp.eq.s32.totalorder %s10, 0
    %p121 = por %p119, %p120
    %p122 = scmp.ne.s32.totalorder %s111, %s114
    %p123 = scmp.eq.s32.totalorder %s15, 1
    %p124 = por %p122, %p123
    %p125 = scmp.ne.s32.totalorder %s114, %s115
    %p126 = scmp.eq.s32.totalorder %s15, 0
    %p127 = por %p125, %p126
    %p128 = scmp.ne.s32.totalorder %s114, %s115
    %p129 = scmp.eq.s32.totalorder %s16, 1
    %p130 = por %p128, %p129
    %p132 = scmp.ne.s32.totalorder %s115, %s131
    %p133 = scmp.eq.s32.totalorder %s16, 0
    %p134 = por %p132, %p133
    %p135 = scmp.le.s32.totalorder 1, %s10
    %p136 = scmp.lt.s32.totalorder %s10, 3
    %p137 = pnand %p135, %p136
    %p138 = pneg %p137
    // Predicated region
    $region9: #{gated_conv_block_3d.2} parent=5 // pred_check
      _
    $region10: #{gated_conv_block_3d.2} parent=5 // pred_check_branch
      %140 = sbr.rel (%p137) target = $region12
    $region11: #{gated_conv_block_3d.2} parent=5 // pred_region
      %s141 = ssub.s32 %s10, 1
      // Predicated region
      $region13: #{gated_conv_block_3d.2} parent=11 // pred_check
        %p142 = pneg %p71
      $region14: #{gated_conv_block_3d.2} parent=11 // pred_check_branch
        %144 = sbr.rel (%p142) target = $region16
      $region15: #{gated_conv_block_3d.2} parent=11 // pred_region
        _
      $region16: #{gated_conv_block_3d.2} parent=11 // pred_fallthru
        _
    $region12: #{gated_conv_block_3d.2} parent=5 // pred_fallthru
      _
    %p145 = scmp.lt.s32.totalorder %s10, 2
    // Predicated region
    $region17: #{gated_conv_block_3d.2} parent=5 // pred_check
      %p146 = pneg %p145
    $region18: #{gated_conv_block_3d.2} parent=5 // pred_check_branch
      %148 = sbr.rel (%p146) target = $region20
    $region19: #{gated_conv_block_3d.2} parent=5 // pred_region
      // Predicated region
      $region21: #{gated_conv_block_3d.2} parent=19 // pred_check
        %p149 = pneg %p44
      $region22: #{gated_conv_block_3d.2} parent=19 // pred_check_branch
        %151 = sbr.rel (%p149) target = $region24
      $region23: #{gated_conv_block_3d.2} parent=19 // pred_region
        %p152 = scmp.lt.s32.totalorder %s17, 1
        %s153 = scalar_select %p152, %s17, 1
        %p154 = scmp.lt.s32.totalorder %s18, 0
        %s155 = scalar_select %p154, %s18, 0
        %s156 = smul.addr %s155, 54
        %s157 = smul.addr %s153, 54
        %s158 = sadd.s32 %s156, %s157
        %s159 = smul.addr %s158, 8
        %s160 = scalar_lea.vmem %s0, %s159
      $region24: #{gated_conv_block_3d.2} parent=19 // pred_fallthru
        _
    $region20: #{gated_conv_block_3d.2} parent=5 // pred_fallthru
      _
    %p161 = scmp.le.s32.totalorder 1, %s10
    %p162 = scmp.lt.s32.totalorder %s10, 3
    %p163 = pnand %p161, %p162
    %p164 = pneg %p163
    // Predicated region
    $region25: #{gated_conv_block_3d.2} parent=5 // pred_check
      _
    $region26: #{gated_conv_block_3d.2} parent=5 // pred_check_branch
      %166 = sbr.rel (%p163) target = $region28
    $region27: #{gated_conv_block_3d.2} parent=5 // pred_region
      %s167 = ssub.s32 %s10, 1
      %p168 = scmp.lt.s32.totalorder %s19, 1
      %s169 = scalar_select %p168, %s19, 1
      %p170 = scmp.lt.s32.totalorder %s20, 0
      %s171 = scalar_select %p170, %s20, 0
      %s172 = smul.addr %s171, 54
      %s173 = smul.addr %s169, 54
      %s174 = sadd.s32 %s172, %s173
      %s175 = smul.addr %s174, 8
      %s176 = scalar_lea.vmem %s0, %s175
      %p177 = pneg %p50
      %p178 = pneg %p47
      %p179 = pneg %p71
      %p180 = pneg %p68
      %p181 = pneg %p99
      %p182 = pneg %p96
      %p183 = scmp.lt.s32.totalorder %s19, 1
      %s184 = scalar_select %p183, %s19, 1
      %p185 = scmp.lt.s32.totalorder %s20, 0
      %s186 = scalar_select %p185, %s20, 0
      %s187 = smul.addr %s186, 64
      %s188 = smul.addr %s184, 64
      %s189 = sadd.s32 %s187, %s188
      %s190 = smul.addr %s189, 4
      %s191 = scalar_lea.vmem %s2, %s190
      %p192 = pneg %p127
      %p193 = pneg %p124
      %p194 = scmp.lt.s32.totalorder %s19, 1
      %s195 = scalar_select %p194, %s19, 1
      %p196 = scmp.lt.s32.totalorder %s20, 0
      %s197 = scalar_select %p196, %s20, 0
      %s198 = smul.addr %s197, 2
      %s199 = smul.addr %s195, 2
      %s200 = sadd.s32 %s198, %s199
      %s201 = smul.addr %s200, 2
      %s202 = scalar_lea.vmem %s3, %s201
      %p203 = scmp.lt.s32.totalorder %s19, 1
      %s204 = scalar_select %p203, %s19, 1
      %p205 = scmp.lt.s32.totalorder %s20, 0
      %s206 = scalar_select %p205, %s20, 0
      %s207 = smul.addr %s206, 54
      %s208 = smul.addr %s204, 54
      %s209 = sadd.s32 %s207, %s208
      %s210 = smul.addr %s209, 8
      %s211 = scalar_lea.vmem %s0, %s210
      %p212 = scmp.lt.s32.totalorder %s19, 1
      %s213 = scalar_select %p212, %s19, 1
      %p214 = scmp.lt.s32.totalorder %s20, 0
      %s215 = scalar_select %p214, %s20, 0
      %s216 = smul.addr %s215, 64
      %s217 = smul.addr %s213, 64
      %s218 = sadd.s32 %s216, %s217
      %s219 = smul.addr %s218, 4
      %s220 = scalar_lea.vmem %s2, %s219
      %p221 = scmp.lt.s32.totalorder %s19, 1
      %s222 = scalar_select %p221, %s19, 1
      %p223 = scmp.lt.s32.totalorder %s20, 0
      %s224 = scalar_select %p223, %s20, 0
      %s225 = smul.addr %s224, 2
      %s226 = smul.addr %s222, 2
      %s227 = sadd.s32 %s225, %s226
      %s228 = smul.addr %s227, 2
      %s229 = scalar_lea.vmem %s3, %s228
      %v231 = vld [vmem:[%s211] sm:$0xff]
      %v232 = vld [vmem:[%s211 + $0x8] sm:$0xff]
      %v233 = vld [vmem:[%s211 + $0x10] sm:$0x3]
      %v234 = vld [vmem:[%s211 + $0x18] sm:$0xff]
      %v235 = vld [vmem:[%s211 + $0x20] sm:$0xff]
      %v236 = vld [vmem:[%s211 + $0x28] sm:$0x3]
      %v237 = vld [vmem:[%s211 + $0x30] sm:$0xff]
      %v238 = vld [vmem:[%s211 + $0x38] sm:$0xff]
      %v239 = vld [vmem:[%s211 + $0x40] sm:$0x3]
      %v240 = vld [vmem:[%s211 + $0x48] sm:$0xff]
      %v241 = vld [vmem:[%s211 + $0x50] sm:$0xff]
      %v242 = vld [vmem:[%s211 + $0x58] sm:$0x3]
      %v243 = vld [vmem:[%s211 + $0x60] sm:$0xff]
      %v244 = vld [vmem:[%s211 + $0x68] sm:$0xff]
      %v245 = vld [vmem:[%s211 + $0x70] sm:$0x3]
      %v246 = vld [vmem:[%s211 + $0x78] sm:$0xff]
      %v247 = vld [vmem:[%s211 + $0x80] sm:$0xff]
      %v248 = vld [vmem:[%s211 + $0x88] sm:$0x3]
      %v249 = vld [vmem:[%s211 + $0x90] sm:$0xff]
      %v250 = vld [vmem:[%s211 + $0x98] sm:$0xff]
      %v251 = vld [vmem:[%s211 + $0xa0] sm:$0x3]
      %v252 = vld [vmem:[%s211 + $0xa8] sm:$0xff]
      %v253 = vld [vmem:[%s211 + $0xb0] sm:$0xff]
      %v254 = vld [vmem:[%s211 + $0xb8] sm:$0x3]
      %v255 = vld [vmem:[%s211 + $0xc0] sm:$0xff]
      %v256 = vld [vmem:[%s211 + $0xc8] sm:$0xff]
      %v257 = vld [vmem:[%s211 + $0xd0] sm:$0x3]
      %v258 = vld [vmem:[%s211 + $0xd8] sm:$0xff]
      %v259 = vld [vmem:[%s211 + $0xe0] sm:$0xff]
      %v260 = vld [vmem:[%s211 + $0xe8] sm:$0x3]
      %v261 = vld [vmem:[%s211 + $0xf0] sm:$0xff]
      %v262 = vld [vmem:[%s211 + $0xf8] sm:$0xff]
      %v263 = vld [vmem:[%s211 + $0x100] sm:$0x3]
      %v264 = vld [vmem:[%s211 + $0x108] sm:$0xff]
      %v265 = vld [vmem:[%s211 + $0x110] sm:$0xff]
      %v266 = vld [vmem:[%s211 + $0x118] sm:$0x3]
      %v267 = vld [vmem:[%s211 + $0x120] sm:$0xff]
      %v268 = vld [vmem:[%s211 + $0x128] sm:$0xff]
      %v269 = vld [vmem:[%s211 + $0x130] sm:$0x3]
      %v270 = vld [vmem:[%s211 + $0x138] sm:$0xff]
      %v271 = vld [vmem:[%s211 + $0x140] sm:$0xff]
      %v272 = vld [vmem:[%s211 + $0x148] sm:$0x3]
      %v273 = vld [vmem:[%s211 + $0x150] sm:$0xff]
      %v274 = vld [vmem:[%s211 + $0x158] sm:$0xff]
      %v275 = vld [vmem:[%s211 + $0x160] sm:$0x3]
      %v276 = vld [vmem:[%s211 + $0x168] sm:$0xff]
      %v277 = vld [vmem:[%s211 + $0x170] sm:$0xff]
      %v278 = vld [vmem:[%s211 + $0x178] sm:$0x3]
      %v279 = vpack.c.bf16 %v232, %v231
      %v280 = vpack.c.bf16 %v235, %v234
      %v281 = vpack.c.bf16 %v238, %v237
      %v282 = vpack.c.bf16 %v241, %v240
      %v283 = vpack.c.bf16 %v244, %v243
      %v284 = vpack.c.bf16 %v247, %v246
      %v285 = vpack.c.bf16 %v250, %v249
      %v286 = vpack.c.bf16 %v253, %v252
      %v287 = vpack.c.bf16 %v256, %v255
      %v288 = vpack.c.bf16 %v259, %v258
      %v289 = vpack.c.bf16 %v262, %v261
      %v290 = vpack.c.bf16 %v265, %v264
      %v291 = vpack.c.bf16 %v268, %v267
      %v292 = vpack.c.bf16 %v271, %v270
      %v293 = vpack.c.bf16 %v274, %v273
      %v294 = vpack.c.bf16 %v277, %v276
      %v295 = vld [vmem:[%s1] sm:$0xff]
      %v296 = vld [vmem:[%s1 + $0x8] sm:$0xff]
      %v297 = vld [vmem:[%s1 + $0x10] sm:$0xff]
      %v298 = vld [vmem:[%s1 + $0x18] sm:$0xff]
      %v299 = vld [vmem:[%s1 + $0x20] sm:$0xff]
      %v300 = vld [vmem:[%s1 + $0x28] sm:$0xff]
      %v301 = vld [vmem:[%s1 + $0x30] sm:$0xff]
      %v302 = vld [vmem:[%s1 + $0x38] sm:$0xff]
      %v303 = vld [vmem:[%s1 + $0x40] sm:$0xff]
      %vm352 = vcmask 1046528
      %v353 = vrot.slane %v231, 1
      %v354 = vrot.slane %v232, 1
      %v355 = vsel %vm352, %v353, %v354
      %v356 = vrot.slane %v233, 1
      %v357 = vsel %vm352, %v354, %v356
      %v358 = vrot.slane %v234, 1
      %v359 = vrot.slane %v235, 1
      %v360 = vsel %vm352, %v358, %v359
      %v361 = vrot.slane %v236, 1
      %v362 = vsel %vm352, %v359, %v361
      %v363 = vrot.slane %v237, 1
      %v364 = vrot.slane %v238, 1
      %v365 = vsel %vm352, %v363, %v364
      %v366 = vrot.slane %v239, 1
      %v367 = vsel %vm352, %v364, %v366
      %v368 = vrot.slane %v240, 1
      %v369 = vrot.slane %v241, 1
      %v370 = vsel %vm352, %v368, %v369
      %v371 = vrot.slane %v242, 1
      %v372 = vsel %vm352, %v369, %v371
      %v373 = vrot.slane %v243, 1
      %v374 = vrot.slane %v244, 1
      %v375 = vsel %vm352, %v373, %v374
      %v376 = vrot.slane %v245, 1
      %v377 = vsel %vm352, %v374, %v376
      %v378 = vrot.slane %v246, 1
      %v379 = vrot.slane %v247, 1
      %v380 = vsel %vm352, %v378, %v379
      %v381 = vrot.slane %v248, 1
      %v382 = vsel %vm352, %v379, %v381
      %v383 = vrot.slane %v249, 1
      %v384 = vrot.slane %v250, 1
      %v385 = vsel %vm352, %v383, %v384
      %v386 = vrot.slane %v251, 1
      %v387 = vsel %vm352, %v384, %v386
      %v388 = vrot.slane %v252, 1
      %v389 = vrot.slane %v253, 1
      %v390 = vsel %vm352, %v388, %v389
      %v391 = vrot.slane %v254, 1
      %v392 = vsel %vm352, %v389, %v391
      %v393 = vrot.slane %v255, 1
      %v394 = vrot.slane %v256, 1
      %v395 = vsel %vm352, %v393, %v394
      %v396 = vrot.slane %v257, 1
      %v397 = vsel %vm352, %v394, %v396
      %v398 = vrot.slane %v258, 1
      %v399 = vrot.slane %v259, 1
      %v400 = vsel %vm352, %v398, %v399
      %v401 = vrot.slane %v260, 1
      %v402 = vsel %vm352, %v399, %v401
      %v403 = vrot.slane %v261, 1
      %v404 = vrot.slane %v262, 1
      %v405 = vsel %vm352, %v403, %v404
      %v406 = vrot.slane %v263, 1
      %v407 = vsel %vm352, %v404, %v406
      %v408 = vrot.slane %v264, 1
      %v409 = vrot.slane %v265, 1
      %v410 = vsel %vm352, %v408, %v409
      %v411 = vrot.slane %v266, 1
      %v412 = vsel %vm352, %v409, %v411
      %v413 = vrot.slane %v267, 1
      %v414 = vrot.slane %v268, 1
      %v415 = vsel %vm352, %v413, %v414
      %v416 = vrot.slane %v269, 1
      %v417 = vsel %vm352, %v414, %v416
      %v418 = vrot.slane %v270, 1
      %v419 = vrot.slane %v271, 1
      %v420 = vsel %vm352, %v418, %v419
      %v421 = vrot.slane %v272, 1
      %v422 = vsel %vm352, %v419, %v421
      %v423 = vrot.slane %v273, 1
      %v424 = vrot.slane %v274, 1
      %v425 = vsel %vm352, %v423, %v424
      %v426 = vrot.slane %v275, 1
      %v427 = vsel %vm352, %v424, %v426
      %v428 = vrot.slane %v276, 1
      %v429 = vrot.slane %v277, 1
      %v430 = vsel %vm352, %v428, %v429
      %v431 = vrot.slane %v278, 1
      %v432 = vsel %vm352, %v429, %v431
      %v465 = vpack.c.bf16 %v357, %v355
      %v466 = vpack.c.bf16 %v362, %v360
      %v467 = vpack.c.bf16 %v367, %v365
      %v468 = vpack.c.bf16 %v372, %v370
      %v469 = vpack.c.bf16 %v377, %v375
      %v470 = vpack.c.bf16 %v382, %v380
      %v471 = vpack.c.bf16 %v387, %v385
      %v472 = vpack.c.bf16 %v392, %v390
      %v473 = vpack.c.bf16 %v397, %v395
      %v474 = vpack.c.bf16 %v402, %v400
      %v475 = vpack.c.bf16 %v407, %v405
      %v476 = vpack.c.bf16 %v412, %v410
      %v477 = vpack.c.bf16 %v417, %v415
      %v478 = vpack.c.bf16 %v422, %v420
      %v479 = vpack.c.bf16 %v427, %v425
      %v480 = vpack.c.bf16 %v432, %v430
      %s481 = scalar_lea.vmem %s1, 72
      %v482 = vld [vmem:[%s481] sm:$0xff]
      %v483 = vld [vmem:[%s481 + $0x8] sm:$0xff]
      %v484 = vld [vmem:[%s481 + $0x10] sm:$0xff]
      %v485 = vld [vmem:[%s481 + $0x18] sm:$0xff]
      %v486 = vld [vmem:[%s481 + $0x20] sm:$0xff]
      %v487 = vld [vmem:[%s481 + $0x28] sm:$0xff]
      %v488 = vld [vmem:[%s481 + $0x30] sm:$0xff]
      %v489 = vld [vmem:[%s481 + $0x38] sm:$0xff]
      %v490 = vld [vmem:[%s481 + $0x40] sm:$0xff]
      %v500 = vunpack.c.l.b16 %v482
      %v501 = vunpack.c.h.b16 %v482
      %v502 = vunpack.c.l.b16 %v483
      %v503 = vunpack.c.h.b16 %v483
      %v504 = vunpack.c.l.b16 %v484
      %v505 = vunpack.c.h.b16 %v484
      %v506 = vunpack.c.l.b16 %v485
      %v507 = vunpack.c.h.b16 %v485
      %v508 = vunpack.c.l.b16 %v486
      %v509 = vunpack.c.h.b16 %v486
      %v510 = vunpack.c.l.b16 %v487
      %v511 = vunpack.c.h.b16 %v487
      %v512 = vunpack.c.l.b16 %v488
      %v513 = vunpack.c.h.b16 %v488
      %v514 = vunpack.c.l.b16 %v489
      %v515 = vunpack.c.h.b16 %v489
      %v516 = vunpack.c.l.b16 %v490
      %v517 = vunpack.c.h.b16 %v490
      %v518 = vpack.c.b16 %v502, %v500
      %v519 = vpack.c.b16 %v503, %v501
      %v520 = vpack.c.b16 %v506, %v504
      %v521 = vpack.c.b16 %v507, %v505
      %v522 = vpack.c.b16 %v510, %v508
      %v523 = vpack.c.b16 %v511, %v509
      %v524 = vpack.c.b16 %v514, %v512
      %v525 = vpack.c.b16 %v515, %v513
      %v526 = vpack.c.b16 %v516, %v516
      %v527 = vpack.c.b16 %v517, %v517
      %vm536 = vcmask 588800
      %v538 = vsel %vm536, %v465, 0
      %v541 = vsel %vm536, %v466, 0
      %v544 = vsel %vm536, %v467, 0
      %v547 = vsel %vm536, %v468, 0
      %v550 = vsel %vm536, %v469, 0
      %v553 = vsel %vm536, %v470, 0
      %v556 = vsel %vm536, %v471, 0
      %v559 = vsel %vm536, %v472, 0
      %v562 = vsel %vm536, %v473, 0
      %v565 = vsel %vm536, %v474, 0
      %v568 = vsel %vm536, %v475, 0
      %v571 = vsel %vm536, %v476, 0
      %v574 = vsel %vm536, %v477, 0
      %v577 = vsel %vm536, %v478, 0
      %v580 = vsel %vm536, %v479, 0
      %v583 = vsel %vm536, %v480, 0
      %vm585 = vcmask 1043456
      %v587 = vsel %vm585, %v526, 0
      %v590 = vsel %vm585, %v527, 0
      %592 = vmatpush.bf16.msra.mxu0 0
      %593 = vmatpush.bf16.msra.mxu0 0
      %594 = vmatpush.bf16.msra.mxu0 0
      %595 = vmatpush.bf16.msra.mxu0 %v587
      %596 = vmatpush.bf16.msra.mxu0 %v524
      %597 = vmatpush.bf16.msra.mxu0 %v522
      %598 = vmatpush.bf16.msra.mxu0 %v520
      %599 = vmatpush.bf16.msra.mxu0 %v518
      %600 = vmatmul.bf16.gmra.mxu0 %v538
      %v601 = vpop.f32.mrf.mxu0
      %v602 = vadd.f32 0.0, %v601
      %v603 = vpop.f32.mrf.mxu0
      %v604 = vadd.f32 0.0, %v603
      %605 = vmatmul.bf16.gmra.mxu0 %v541
      %v606 = vpop.f32.mrf.mxu0
      %v607 = vadd.f32 0.0, %v606
      %v608 = vpop.f32.mrf.mxu0
      %v609 = vadd.f32 0.0, %v608
      %610 = vmatmul.bf16.gmra.mxu0 %v544
      %v611 = vpop.f32.mrf.mxu0
      %v612 = vadd.f32 0.0, %v611
      %v613 = vpop.f32.mrf.mxu0
      %v614 = vadd.f32 0.0, %v613
      %615 = vmatmul.bf16.gmra.mxu0 %v547
      %v616 = vpop.f32.mrf.mxu0
      %v617 = vadd.f32 0.0, %v616
      %v618 = vpop.f32.mrf.mxu0
      %v619 = vadd.f32 0.0, %v618
      %620 = vmatmul.bf16.gmra.mxu0 %v550
      %v621 = vpop.f32.mrf.mxu0
      %v622 = vadd.f32 0.0, %v621
      %v623 = vpop.f32.mrf.mxu0
      %v624 = vadd.f32 0.0, %v623
      %625 = vmatmul.bf16.gmra.mxu0 %v553
      %v626 = vpop.f32.mrf.mxu0
      %v627 = vadd.f32 0.0, %v626
      %v628 = vpop.f32.mrf.mxu0
      %v629 = vadd.f32 0.0, %v628
      %630 = vmatmul.bf16.gmra.mxu0 %v556
      %v631 = vpop.f32.mrf.mxu0
      %v632 = vadd.f32 0.0, %v631
      %v633 = vpop.f32.mrf.mxu0
      %v634 = vadd.f32 0.0, %v633
      %635 = vmatmul.bf16.gmra.mxu0 %v559
      %v636 = vpop.f32.mrf.mxu0
      %v637 = vadd.f32 0.0, %v636
      %v638 = vpop.f32.mrf.mxu0
      %v639 = vadd.f32 0.0, %v638
      %640 = vmatmul.bf16.gmra.mxu0 %v562
      %v641 = vpop.f32.mrf.mxu0
      %v642 = vadd.f32 0.0, %v641
      %v643 = vpop.f32.mrf.mxu0
      %v644 = vadd.f32 0.0, %v643
      %645 = vmatmul.bf16.gmra.mxu0 %v565
      %v646 = vpop.f32.mrf.mxu0
      %v647 = vadd.f32 0.0, %v646
      %v648 = vpop.f32.mrf.mxu0
      %v649 = vadd.f32 0.0, %v648
      %650 = vmatmul.bf16.gmra.mxu0 %v568
      %v651 = vpop.f32.mrf.mxu0
      %v652 = vadd.f32 0.0, %v651
      %v653 = vpop.f32.mrf.mxu0
      %v654 = vadd.f32 0.0, %v653
      %655 = vmatmul.bf16.gmra.mxu0 %v571
      %v656 = vpop.f32.mrf.mxu0
      %v657 = vadd.f32 0.0, %v656
      %v658 = vpop.f32.mrf.mxu0
      %v659 = vadd.f32 0.0, %v658
      %660 = vmatmul.bf16.gmra.mxu0 %v574
      %v661 = vpop.f32.mrf.mxu0
      %v662 = vadd.f32 0.0, %v661
      %v663 = vpop.f32.mrf.mxu0
      %v664 = vadd.f32 0.0, %v663
      %665 = vmatmul.bf16.gmra.mxu0 %v577
      %v666 = vpop.f32.mrf.mxu0
      %v667 = vadd.f32 0.0, %v666
      %v668 = vpop.f32.mrf.mxu0
      %v669 = vadd.f32 0.0, %v668
      %670 = vmatmul.bf16.gmra.mxu0 %v580
      %v671 = vpop.f32.mrf.mxu0
      %v672 = vadd.f32 0.0, %v671
      %v673 = vpop.f32.mrf.mxu0
      %v674 = vadd.f32 0.0, %v673
      %675 = vmatmul.bf16.gmra.mxu0 %v583
      %v676 = vpop.f32.mrf.mxu0
      %v677 = vadd.f32 0.0, %v676
      %v678 = vpop.f32.mrf.mxu0
      %v679 = vadd.f32 0.0, %v678
      %680 = vdwg.mxu0
      %681 = vmatpush.bf16.msra.mxu0 0
      %682 = vmatpush.bf16.msra.mxu0 0
      %683 = vmatpush.bf16.msra.mxu0 0
      %684 = vmatpush.bf16.msra.mxu0 %v590
      %685 = vmatpush.bf16.msra.mxu0 %v525
      %686 = vmatpush.bf16.msra.mxu0 %v523
      %687 = vmatpush.bf16.msra.mxu0 %v521
      %688 = vmatpush.bf16.msra.mxu0 %v519
      %689 = vmatmul.bf16.gmra.mxu0 %v538
      %v690 = vpop.f32.mrf.mxu0
      %v691 = vadd.f32 0.0, %v690
      %v692 = vpop.f32.mrf.mxu0
      %v693 = vadd.f32 0.0, %v692
      %694 = vmatmul.bf16.gmra.mxu0 %v541
      %v695 = vpop.f32.mrf.mxu0
      %v696 = vadd.f32 0.0, %v695
      %v697 = vpop.f32.mrf.mxu0
      %v698 = vadd.f32 0.0, %v697
      %699 = vmatmul.bf16.gmra.mxu0 %v544
      %v700 = vpop.f32.mrf.mxu0
      %v701 = vadd.f32 0.0, %v700
      %v702 = vpop.f32.mrf.mxu0
      %v703 = vadd.f32 0.0, %v702
      %704 = vmatmul.bf16.gmra.mxu0 %v547
      %v705 = vpop.f32.mrf.mxu0
      %v706 = vadd.f32 0.0, %v705
      %v707 = vpop.f32.mrf.mxu0
      %v708 = vadd.f32 0.0, %v707
      %709 = vmatmul.bf16.gmra.mxu0 %v550
      %v710 = vpop.f32.mrf.mxu0
      %v711 = vadd.f32 0.0, %v710
      %v712 = vpop.f32.mrf.mxu0
      %v713 = vadd.f32 0.0, %v712
      %714 = vmatmul.bf16.gmra.mxu0 %v553
      %v715 = vpop.f32.mrf.mxu0
      %v716 = vadd.f32 0.0, %v715
      %v717 = vpop.f32.mrf.mxu0
      %v718 = vadd.f32 0.0, %v717
      %719 = vmatmul.bf16.gmra.mxu0 %v556
      %v720 = vpop.f32.mrf.mxu0
      %v721 = vadd.f32 0.0, %v720
      %v722 = vpop.f32.mrf.mxu0
      %v723 = vadd.f32 0.0, %v722
      %724 = vmatmul.bf16.gmra.mxu0 %v559
      %v725 = vpop.f32.mrf.mxu0
      %v726 = vadd.f32 0.0, %v725
      %v727 = vpop.f32.mrf.mxu0
      %v728 = vadd.f32 0.0, %v727
      %729 = vmatmul.bf16.gmra.mxu0 %v562
      %v730 = vpop.f32.mrf.mxu0
      %v731 = vadd.f32 0.0, %v730
      %v732 = vpop.f32.mrf.mxu0
      %v733 = vadd.f32 0.0, %v732
      %734 = vmatmul.bf16.gmra.mxu0 %v565
      %v735 = vpop.f32.mrf.mxu0
      %v736 = vadd.f32 0.0, %v735
      %v737 = vpop.f32.mrf.mxu0
      %v738 = vadd.f32 0.0, %v737
      %739 = vmatmul.bf16.gmra.mxu0 %v568
      %v740 = vpop.f32.mrf.mxu0
      %v741 = vadd.f32 0.0, %v740
      %v742 = vpop.f32.mrf.mxu0
      %v743 = vadd.f32 0.0, %v742
      %744 = vmatmul.bf16.gmra.mxu0 %v571
      %v745 = vpop.f32.mrf.mxu0
      %v746 = vadd.f32 0.0, %v745
      %v747 = vpop.f32.mrf.mxu0
      %v748 = vadd.f32 0.0, %v747
      %749 = vmatmul.bf16.gmra.mxu0 %v574
      %v750 = vpop.f32.mrf.mxu0
      %v751 = vadd.f32 0.0, %v750
      %v752 = vpop.f32.mrf.mxu0
      %v753 = vadd.f32 0.0, %v752
      %754 = vmatmul.bf16.gmra.mxu0 %v577
      %v755 = vpop.f32.mrf.mxu0
      %v756 = vadd.f32 0.0, %v755
      %v757 = vpop.f32.mrf.mxu0
      %v758 = vadd.f32 0.0, %v757
      %759 = vmatmul.bf16.gmra.mxu0 %v580
      %v760 = vpop.f32.mrf.mxu0
      %v761 = vadd.f32 0.0, %v760
      %v762 = vpop.f32.mrf.mxu0
      %v763 = vadd.f32 0.0, %v762
      %764 = vmatmul.bf16.gmra.mxu0 %v583
      %v765 = vpop.f32.mrf.mxu0
      %v766 = vadd.f32 0.0, %v765
      %v767 = vpop.f32.mrf.mxu0
      %v768 = vadd.f32 0.0, %v767
      %769 = vdwg.mxu0
      %v779 = vunpack.c.l.b16 %v295
      %v780 = vunpack.c.h.b16 %v295
      %v781 = vunpack.c.l.b16 %v296
      %v782 = vunpack.c.h.b16 %v296
      %v783 = vunpack.c.l.b16 %v297
      %v784 = vunpack.c.h.b16 %v297
      %v785 = vunpack.c.l.b16 %v298
      %v786 = vunpack.c.h.b16 %v298
      %v787 = vunpack.c.l.b16 %v299
      %v788 = vunpack.c.h.b16 %v299
      %v789 = vunpack.c.l.b16 %v300
      %v790 = vunpack.c.h.b16 %v300
      %v791 = vunpack.c.l.b16 %v301
      %v792 = vunpack.c.h.b16 %v301
      %v793 = vunpack.c.l.b16 %v302
      %v794 = vunpack.c.h.b16 %v302
      %v795 = vunpack.c.l.b16 %v303
      %v796 = vunpack.c.h.b16 %v303
      %v797 = vpack.c.b16 %v781, %v779
      %v798 = vpack.c.b16 %v782, %v780
      %v799 = vpack.c.b16 %v785, %v783
      %v800 = vpack.c.b16 %v786, %v784
      %v801 = vpack.c.b16 %v789, %v787
      %v802 = vpack.c.b16 %v790, %v788
      %v803 = vpack.c.b16 %v793, %v791
      %v804 = vpack.c.b16 %v794, %v792
      %v805 = vpack.c.b16 %v795, %v795
      %v806 = vpack.c.b16 %v796, %v796
      %v816 = vsel %vm536, %v279, 0
      %v819 = vsel %vm536, %v280, 0
      %v822 = vsel %vm536, %v281, 0
      %v825 = vsel %vm536, %v282, 0
      %v828 = vsel %vm536, %v283, 0
      %v831 = vsel %vm536, %v284, 0
      %v834 = vsel %vm536, %v285, 0
      %v837 = vsel %vm536, %v286, 0
      %v840 = vsel %vm536, %v287, 0
      %v843 = vsel %vm536, %v288, 0
      %v846 = vsel %vm536, %v289, 0
      %v849 = vsel %vm536, %v290, 0
      %v852 = vsel %vm536, %v291, 0
      %v855 = vsel %vm536, %v292, 0
      %v858 = vsel %vm536, %v293, 0
      %v861 = vsel %vm536, %v294, 0
      %v864 = vsel %vm585, %v805, 0
      %v867 = vsel %vm585, %v806, 0
      %869 = vmatpush.bf16.msra.mxu0 0
      %870 = vmatpush.bf16.msra.mxu0 0
      %871 = vmatpush.bf16.msra.mxu0 0
      %872 = vmatpush.bf16.msra.mxu0 %v864
      %873 = vmatpush.bf16.msra.mxu0 %v803
      %874 = vmatpush.bf16.msra.mxu0 %v801
      %875 = vmatpush.bf16.msra.mxu0 %v799
      %876 = vmatpush.bf16.msra.mxu0 %v797
      %877 = vmatmul.bf16.gmra.mxu0 %v816
      %v878 = vpop.f32.mrf.mxu0
      %v879 = vadd.f32 %v602, %v878
      %v880 = vpop.f32.mrf.mxu0
      %v881 = vadd.f32 %v604, %v880
      %882 = vmatmul.bf16.gmra.mxu0 %v819
      %v883 = vpop.f32.mrf.mxu0
      %v884 = vadd.f32 %v607, %v883
      %v885 = vpop.f32.mrf.mxu0
      %v886 = vadd.f32 %v609, %v885
      %887 = vmatmul.bf16.gmra.mxu0 %v822
      %v888 = vpop.f32.mrf.mxu0
      %v889 = vadd.f32 %v612, %v888
      %v890 = vpop.f32.mrf.mxu0
      %v891 = vadd.f32 %v614, %v890
      %892 = vmatmul.bf16.gmra.mxu0 %v825
      %v893 = vpop.f32.mrf.mxu0
      %v894 = vadd.f32 %v617, %v893
      %v895 = vpop.f32.mrf.mxu0
      %v896 = vadd.f32 %v619, %v895
      %897 = vmatmul.bf16.gmra.mxu0 %v828
      %v898 = vpop.f32.mrf.mxu0
      %v899 = vadd.f32 %v622, %v898
      %v900 = vpop.f32.mrf.mxu0
      %v901 = vadd.f32 %v624, %v900
      %902 = vmatmul.bf16.gmra.mxu0 %v831
      %v903 = vpop.f32.mrf.mxu0
      %v904 = vadd.f32 %v627, %v903
      %v905 = vpop.f32.mrf.mxu0
      %v906 = vadd.f32 %v629, %v905
      %907 = vmatmul.bf16.gmra.mxu0 %v834
      %v908 = vpop.f32.mrf.mxu0
      %v909 = vadd.f32 %v632, %v908
      %v910 = vpop.f32.mrf.mxu0
      %v911 = vadd.f32 %v634, %v910
      %912 = vmatmul.bf16.gmra.mxu0 %v837
      %v913 = vpop.f32.mrf.mxu0
      %v914 = vadd.f32 %v637, %v913
      %v915 = vpop.f32.mrf.mxu0
      %v916 = vadd.f32 %v639, %v915
      %917 = vmatmul.bf16.gmra.mxu0 %v840
      %v918 = vpop.f32.mrf.mxu0
      %v919 = vadd.f32 %v642, %v918
      %v920 = vpop.f32.mrf.mxu0
      %v921 = vadd.f32 %v644, %v920
      %922 = vmatmul.bf16.gmra.mxu0 %v843
      %v923 = vpop.f32.mrf.mxu0
      %v924 = vadd.f32 %v647, %v923
      %v925 = vpop.f32.mrf.mxu0
      %v926 = vadd.f32 %v649, %v925
      %927 = vmatmul.bf16.gmra.mxu0 %v846
      %v928 = vpop.f32.mrf.mxu0
      %v929 = vadd.f32 %v652, %v928
      %v930 = vpop.f32.mrf.mxu0
      %v931 = vadd.f32 %v654, %v930
      %932 = vmatmul.bf16.gmra.mxu0 %v849
      %v933 = vpop.f32.mrf.mxu0
      %v934 = vadd.f32 %v657, %v933
      %v935 = vpop.f32.mrf.mxu0
      %v936 = vadd.f32 %v659, %v935
      %937 = vmatmul.bf16.gmra.mxu0 %v852
      %v938 = vpop.f32.mrf.mxu0
      %v939 = vadd.f32 %v662, %v938
      %v940 = vpop.f32.mrf.mxu0
      %v941 = vadd.f32 %v664, %v940
      %942 = vmatmul.bf16.gmra.mxu0 %v855
      %v943 = vpop.f32.mrf.mxu0
      %v944 = vadd.f32 %v667, %v943
      %v945 = vpop.f32.mrf.mxu0
      %v946 = vadd.f32 %v669, %v945
      %947 = vmatmul.bf16.gmra.mxu0 %v858
      %v948 = vpop.f32.mrf.mxu0
      %v949 = vadd.f32 %v672, %v948
      %v950 = vpop.f32.mrf.mxu0
      %v951 = vadd.f32 %v674, %v950
      %952 = vmatmul.bf16.gmra.mxu0 %v861
      %v953 = vpop.f32.mrf.mxu0
      %v954 = vadd.f32 %v677, %v953
      %v955 = vpop.f32.mrf.mxu0
      %v956 = vadd.f32 %v679, %v955
      %957 = vdwg.mxu0
      %958 = vmatpush.bf16.msra.mxu0 0
      %959 = vmatpush.bf16.msra.mxu0 0
      %960 = vmatpush.bf16.msra.mxu0 0
      %961 = vmatpush.bf16.msra.mxu0 %v867
      %962 = vmatpush.bf16.msra.mxu0 %v804
      %963 = vmatpush.bf16.msra.mxu0 %v802
      %964 = vmatpush.bf16.msra.mxu0 %v800
      %965 = vmatpush.bf16.msra.mxu0 %v798
      %966 = vmatmul.bf16.gmra.mxu0 %v816
      %v967 = vpop.f32.mrf.mxu0
      %v968 = vadd.f32 %v691, %v967
      %v969 = vpop.f32.mrf.mxu0
      %v970 = vadd.f32 %v693, %v969
      %971 = vmatmul.bf16.gmra.mxu0 %v819
      %v972 = vpop.f32.mrf.mxu0
      %v973 = vadd.f32 %v696, %v972
      %v974 = vpop.f32.mrf.mxu0
      %v975 = vadd.f32 %v698, %v974
      %976 = vmatmul.bf16.gmra.mxu0 %v822
      %v977 = vpop.f32.mrf.mxu0
      %v978 = vadd.f32 %v701, %v977
      %v979 = vpop.f32.mrf.mxu0
      %v980 = vadd.f32 %v703, %v979
      %981 = vmatmul.bf16.gmra.mxu0 %v825
      %v982 = vpop.f32.mrf.mxu0
      %v983 = vadd.f32 %v706, %v982
      %v984 = vpop.f32.mrf.mxu0
      %v985 = vadd.f32 %v708, %v984
      %986 = vmatmul.bf16.gmra.mxu0 %v828
      %v987 = vpop.f32.mrf.mxu0
      %v988 = vadd.f32 %v711, %v987
      %v989 = vpop.f32.mrf.mxu0
      %v990 = vadd.f32 %v713, %v989
      %991 = vmatmul.bf16.gmra.mxu0 %v831
      %v992 = vpop.f32.mrf.mxu0
      %v993 = vadd.f32 %v716, %v992
      %v994 = vpop.f32.mrf.mxu0
      %v995 = vadd.f32 %v718, %v994
      %996 = vmatmul.bf16.gmra.mxu0 %v834
      %v997 = vpop.f32.mrf.mxu0
      %v998 = vadd.f32 %v721, %v997
      %v999 = vpop.f32.mrf.mxu0
      %v1000 = vadd.f32 %v723, %v999
      %1001 = vmatmul.bf16.gmra.mxu0 %v837
      %v1002 = vpop.f32.mrf.mxu0
      %v1003 = vadd.f32 %v726, %v1002
      %v1004 = vpop.f32.mrf.mxu0
      %v1005 = vadd.f32 %v728, %v1004
      %1006 = vmatmul.bf16.gmra.mxu0 %v840
      %v1007 = vpop.f32.mrf.mxu0
      %v1008 = vadd.f32 %v731, %v1007
      %v1009 = vpop.f32.mrf.mxu0
      %v1010 = vadd.f32 %v733, %v1009
      %1011 = vmatmul.bf16.gmra.mxu0 %v843
      %v1012 = vpop.f32.mrf.mxu0
      %v1013 = vadd.f32 %v736, %v1012
      %v1014 = vpop.f32.mrf.mxu0
      %v1015 = vadd.f32 %v738, %v1014
      %1016 = vmatmul.bf16.gmra.mxu0 %v846
      %v1017 = vpop.f32.mrf.mxu0
      %v1018 = vadd.f32 %v741, %v1017
      %v1019 = vpop.f32.mrf.mxu0
      %v1020 = vadd.f32 %v743, %v1019
      %1021 = vmatmul.bf16.gmra.mxu0 %v849
      %v1022 = vpop.f32.mrf.mxu0
      %v1023 = vadd.f32 %v746, %v1022
      %v1024 = vpop.f32.mrf.mxu0
      %v1025 = vadd.f32 %v748, %v1024
      %1026 = vmatmul.bf16.gmra.mxu0 %v852
      %v1027 = vpop.f32.mrf.mxu0
      %v1028 = vadd.f32 %v751, %v1027
      %v1029 = vpop.f32.mrf.mxu0
      %v1030 = vadd.f32 %v753, %v1029
      %1031 = vmatmul.bf16.gmra.mxu0 %v855
      %v1032 = vpop.f32.mrf.mxu0
      %v1033 = vadd.f32 %v756, %v1032
      %v1034 = vpop.f32.mrf.mxu0
      %v1035 = vadd.f32 %v758, %v1034
      %1036 = vmatmul.bf16.gmra.mxu0 %v858
      %v1037 = vpop.f32.mrf.mxu0
      %v1038 = vadd.f32 %v761, %v1037
      %v1039 = vpop.f32.mrf.mxu0
      %v1040 = vadd.f32 %v763, %v1039
      %1041 = vmatmul.bf16.gmra.mxu0 %v861
      %v1042 = vpop.f32.mrf.mxu0
      %v1043 = vadd.f32 %v766, %v1042
      %v1044 = vpop.f32.mrf.mxu0
      %v1045 = vadd.f32 %v768, %v1044
      %1046 = vdwg.mxu0
      %vm1047 = vcmask 1045504
      %v1048 = vrot.slane %v231, 2
      %v1049 = vrot.slane %v232, 2
      %v1050 = vsel %vm1047, %v1048, %v1049
      %v1051 = vrot.slane %v233, 2
      %v1052 = vsel %vm1047, %v1049, %v1051
      %v1053 = vrot.slane %v234, 2
      %v1054 = vrot.slane %v235, 2
      %v1055 = vsel %vm1047, %v1053, %v1054
      %v1056 = vrot.slane %v236, 2
      %v1057 = vsel %vm1047, %v1054, %v1056
      %v1058 = vrot.slane %v237, 2
      %v1059 = vrot.slane %v238, 2
      %v1060 = vsel %vm1047, %v1058, %v1059
      %v1061 = vrot.slane %v239, 2
      %v1062 = vsel %vm1047, %v1059, %v1061
      %v1063 = vrot.slane %v240, 2
      %v1064 = vrot.slane %v241, 2
      %v1065 = vsel %vm1047, %v1063, %v1064
      %v1066 = vrot.slane %v242, 2
      %v1067 = vsel %vm1047, %v1064, %v1066
      %v1068 = vrot.slane %v243, 2
      %v1069 = vrot.slane %v244, 2
      %v1070 = vsel %vm1047, %v1068, %v1069
      %v1071 = vrot.slane %v245, 2
      %v1072 = vsel %vm1047, %v1069, %v1071
      %v1073 = vrot.slane %v246, 2
      %v1074 = vrot.slane %v247, 2
      %v1075 = vsel %vm1047, %v1073, %v1074
      %v1076 = vrot.slane %v248, 2
      %v1077 = vsel %vm1047, %v1074, %v1076
      %v1078 = vrot.slane %v249, 2
      %v1079 = vrot.slane %v250, 2
      %v1080 = vsel %vm1047, %v1078, %v1079
      %v1081 = vrot.slane %v251, 2
      %v1082 = vsel %vm1047, %v1079, %v1081
      %v1083 = vrot.slane %v252, 2
      %v1084 = vrot.slane %v253, 2
      %v1085 = vsel %vm1047, %v1083, %v1084
      %v1086 = vrot.slane %v254, 2
      %v1087 = vsel %vm1047, %v1084, %v1086
      %v1088 = vrot.slane %v255, 2
      %v1089 = vrot.slane %v256, 2
      %v1090 = vsel %vm1047, %v1088, %v1089
      %v1091 = vrot.slane %v257, 2
      %v1092 = vsel %vm1047, %v1089, %v1091
      %v1093 = vrot.slane %v258, 2
      %v1094 = vrot.slane %v259, 2
      %v1095 = vsel %vm1047, %v1093, %v1094
      %v1096 = vrot.slane %v260, 2
      %v1097 = vsel %vm1047, %v1094, %v1096
      %v1098 = vrot.slane %v261, 2
      %v1099 = vrot.slane %v262, 2
      %v1100 = vsel %vm1047, %v1098, %v1099
      %v1101 = vrot.slane %v263, 2
      %v1102 = vsel %vm1047, %v1099, %v1101
      %v1103 = vrot.slane %v264, 2
      %v1104 = vrot.slane %v265, 2
      %v1105 = vsel %vm1047, %v1103, %v1104
      %v1106 = vrot.slane %v266, 2
      %v1107 = vsel %vm1047, %v1104, %v1106
      %v1108 = vrot.slane %v267, 2
      %v1109 = vrot.slane %v268, 2
      %v1110 = vsel %vm1047, %v1108, %v1109
      %v1111 = vrot.slane %v269, 2
      %v1112 = vsel %vm1047, %v1109, %v1111
      %v1113 = vrot.slane %v270, 2
      %v1114 = vrot.slane %v271, 2
      %v1115 = vsel %vm1047, %v1113, %v1114
      %v1116 = vrot.slane %v272, 2
      %v1117 = vsel %vm1047, %v1114, %v1116
      %v1118 = vrot.slane %v273, 2
      %v1119 = vrot.slane %v274, 2
      %v1120 = vsel %vm1047, %v1118, %v1119
      %v1121 = vrot.slane %v275, 2
      %v1122 = vsel %vm1047, %v1119, %v1121
      %v1123 = vrot.slane %v276, 2
      %v1124 = vrot.slane %v277, 2
      %v1125 = vsel %vm1047, %v1123, %v1124
      %v1126 = vrot.slane %v278, 2
      %v1127 = vsel %vm1047, %v1124, %v1126
      %v1160 = vpack.c.bf16 %v1052, %v1050
      %v1161 = vpack.c.bf16 %v1057, %v1055
      %v1162 = vpack.c.bf16 %v1062, %v1060
      %v1163 = vpack.c.bf16 %v1067, %v1065
      %v1164 = vpack.c.bf16 %v1072, %v1070
      %v1165 = vpack.c.bf16 %v1077, %v1075
      %v1166 = vpack.c.bf16 %v1082, %v1080
      %v1167 = vpack.c.bf16 %v1087, %v1085
      %v1168 = vpack.c.bf16 %v1092, %v1090
      %v1169 = vpack.c.bf16 %v1097, %v1095
      %v1170 = vpack.c.bf16 %v1102, %v1100
      %v1171 = vpack.c.bf16 %v1107, %v1105
      %v1172 = vpack.c.bf16 %v1112, %v1110
      %v1173 = vpack.c.bf16 %v1117, %v1115
      %v1174 = vpack.c.bf16 %v1122, %v1120
      %v1175 = vpack.c.bf16 %v1127, %v1125
      %s1176 = scalar_lea.vmem %s1, 144
      %v1177 = vld [vmem:[%s1176] sm:$0xff]
      %v1178 = vld [vmem:[%s1176 + $0x8] sm:$0xff]
      %v1179 = vld [vmem:[%s1176 + $0x10] sm:$0xff]
      %v1180 = vld [vmem:[%s1176 + $0x18] sm:$0xff]
      %v1181 = vld [vmem:[%s1176 + $0x20] sm:$0xff]
      %v1182 = vld [vmem:[%s1176 + $0x28] sm:$0xff]
      %v1183 = vld [vmem:[%s1176 + $0x30] sm:$0xff]
      %v1184 = vld [vmem:[%s1176 + $0x38] sm:$0xff]
      %v1185 = vld [vmem:[%s1176 + $0x40] sm:$0xff]
      %v1195 = vunpack.c.l.b16 %v1177
      %v1196 = vunpack.c.h.b16 %v1177
      %v1197 = vunpack.c.l.b16 %v1178
      %v1198 = vunpack.c.h.b16 %v1178
      %v1199 = vunpack.c.l.b16 %v1179
      %v1200 = vunpack.c.h.b16 %v1179
      %v1201 = vunpack.c.l.b16 %v1180
      %v1202 = vunpack.c.h.b16 %v1180
      %v1203 = vunpack.c.l.b16 %v1181
      %v1204 = vunpack.c.h.b16 %v1181
      %v1205 = vunpack.c.l.b16 %v1182
      %v1206 = vunpack.c.h.b16 %v1182
      %v1207 = vunpack.c.l.b16 %v1183
      %v1208 = vunpack.c.h.b16 %v1183
      %v1209 = vunpack.c.l.b16 %v1184
      %v1210 = vunpack.c.h.b16 %v1184
      %v1211 = vunpack.c.l.b16 %v1185
      %v1212 = vunpack.c.h.b16 %v1185
      %v1213 = vpack.c.b16 %v1197, %v1195
      %v1214 = vpack.c.b16 %v1198, %v1196
      %v1215 = vpack.c.b16 %v1201, %v1199
      %v1216 = vpack.c.b16 %v1202, %v1200
      %v1217 = vpack.c.b16 %v1205, %v1203
      %v1218 = vpack.c.b16 %v1206, %v1204
      %v1219 = vpack.c.b16 %v1209, %v1207
      %v1220 = vpack.c.b16 %v1210, %v1208
      %v1221 = vpack.c.b16 %v1211, %v1211
      %v1222 = vpack.c.b16 %v1212, %v1212
      %v1232 = vsel %vm536, %v1160, 0
      %v1235 = vsel %vm536, %v1161, 0
      %v1238 = vsel %vm536, %v1162, 0
      %v1241 = vsel %vm536, %v1163, 0
      %v1244 = vsel %vm536, %v1164, 0
      %v1247 = vsel %vm536, %v1165, 0
      %v1250 = vsel %vm536, %v1166, 0
      %v1253 = vsel %vm536, %v1167, 0
      %v1256 = vsel %vm536, %v1168, 0
      %v1259 = vsel %vm536, %v1169, 0
      %v1262 = vsel %vm536, %v1170, 0
      %v1265 = vsel %vm536, %v1171, 0
      %v1268 = vsel %vm536, %v1172, 0
      %v1271 = vsel %vm536, %v1173, 0
      %v1274 = vsel %vm536, %v1174, 0
      %v1277 = vsel %vm536, %v1175, 0
      %v1280 = vsel %vm585, %v1221, 0
      %v1283 = vsel %vm585, %v1222, 0
      %1285 = vmatpush.bf16.msra.mxu0 0
      %1286 = vmatpush.bf16.msra.mxu0 0
      %1287 = vmatpush.bf16.msra.mxu0 0
      %1288 = vmatpush.bf16.msra.mxu0 %v1280
      %1289 = vmatpush.bf16.msra.mxu0 %v1219
      %1290 = vmatpush.bf16.msra.mxu0 %v1217
      %1291 = vmatpush.bf16.msra.mxu0 %v1215
      %1292 = vmatpush.bf16.msra.mxu0 %v1213
      %1293 = vmatmul.bf16.gmra.mxu0 %v1232
      %v1294 = vpop.f32.mrf.mxu0
      %v1295 = vadd.f32 0.0, %v1294
      %v1296 = vpop.f32.mrf.mxu0
      %v1297 = vadd.f32 0.0, %v1296
      %1298 = vmatmul.bf16.gmra.mxu0 %v1235
      %v1299 = vpop.f32.mrf.mxu0
      %v1300 = vadd.f32 0.0, %v1299
      %v1301 = vpop.f32.mrf.mxu0
      %v1302 = vadd.f32 0.0, %v1301
      %1303 = vmatmul.bf16.gmra.mxu0 %v1238
      %v1304 = vpop.f32.mrf.mxu0
      %v1305 = vadd.f32 0.0, %v1304
      %v1306 = vpop.f32.mrf.mxu0
      %v1307 = vadd.f32 0.0, %v1306
      %1308 = vmatmul.bf16.gmra.mxu0 %v1241
      %v1309 = vpop.f32.mrf.mxu0
      %v1310 = vadd.f32 0.0, %v1309
      %v1311 = vpop.f32.mrf.mxu0
      %v1312 = vadd.f32 0.0, %v1311
      %1313 = vmatmul.bf16.gmra.mxu0 %v1244
      %v1314 = vpop.f32.mrf.mxu0
      %v1315 = vadd.f32 0.0, %v1314
      %v1316 = vpop.f32.mrf.mxu0
      %v1317 = vadd.f32 0.0, %v1316
      %1318 = vmatmul.bf16.gmra.mxu0 %v1247
      %v1319 = vpop.f32.mrf.mxu0
      %v1320 = vadd.f32 0.0, %v1319
      %v1321 = vpop.f32.mrf.mxu0
      %v1322 = vadd.f32 0.0, %v1321
      %1323 = vmatmul.bf16.gmra.mxu0 %v1250
      %v1324 = vpop.f32.mrf.mxu0
      %v1325 = vadd.f32 0.0, %v1324
      %v1326 = vpop.f32.mrf.mxu0
      %v1327 = vadd.f32 0.0, %v1326
      %1328 = vmatmul.bf16.gmra.mxu0 %v1253
      %v1329 = vpop.f32.mrf.mxu0
      %v1330 = vadd.f32 0.0, %v1329
      %v1331 = vpop.f32.mrf.mxu0
      %v1332 = vadd.f32 0.0, %v1331
      %1333 = vmatmul.bf16.gmra.mxu0 %v1256
      %v1334 = vpop.f32.mrf.mxu0
      %v1335 = vadd.f32 0.0, %v1334
      %v1336 = vpop.f32.mrf.mxu0
      %v1337 = vadd.f32 0.0, %v1336
      %1338 = vmatmul.bf16.gmra.mxu0 %v1259
      %v1339 = vpop.f32.mrf.mxu0
      %v1340 = vadd.f32 0.0, %v1339
      %v1341 = vpop.f32.mrf.mxu0
      %v1342 = vadd.f32 0.0, %v1341
      %1343 = vmatmul.bf16.gmra.mxu0 %v1262
      %v1344 = vpop.f32.mrf.mxu0
      %v1345 = vadd.f32 0.0, %v1344
      %v1346 = vpop.f32.mrf.mxu0
      %v1347 = vadd.f32 0.0, %v1346
      %1348 = vmatmul.bf16.gmra.mxu0 %v1265
      %v1349 = vpop.f32.mrf.mxu0
      %v1350 = vadd.f32 0.0, %v1349
      %v1351 = vpop.f32.mrf.mxu0
      %v1352 = vadd.f32 0.0, %v1351
      %1353 = vmatmul.bf16.gmra.mxu0 %v1268
      %v1354 = vpop.f32.mrf.mxu0
      %v1355 = vadd.f32 0.0, %v1354
      %v1356 = vpop.f32.mrf.mxu0
      %v1357 = vadd.f32 0.0, %v1356
      %1358 = vmatmul.bf16.gmra.mxu0 %v1271
      %v1359 = vpop.f32.mrf.mxu0
      %v1360 = vadd.f32 0.0, %v1359
      %v1361 = vpop.f32.mrf.mxu0
      %v1362 = vadd.f32 0.0, %v1361
      %1363 = vmatmul.bf16.gmra.mxu0 %v1274
      %v1364 = vpop.f32.mrf.mxu0
      %v1365 = vadd.f32 0.0, %v1364
      %v1366 = vpop.f32.mrf.mxu0
      %v1367 = vadd.f32 0.0, %v1366
      %1368 = vmatmul.bf16.gmra.mxu0 %v1277
      %v1369 = vpop.f32.mrf.mxu0
      %v1370 = vadd.f32 0.0, %v1369
      %v1371 = vpop.f32.mrf.mxu0
      %v1372 = vadd.f32 0.0, %v1371
      %1373 = vdwg.mxu0
      %1374 = vmatpush.bf16.msra.mxu0 0
      %1375 = vmatpush.bf16.msra.mxu0 0
      %1376 = vmatpush.bf16.msra.mxu0 0
      %1377 = vmatpush.bf16.msra.mxu0 %v1283
      %1378 = vmatpush.bf16.msra.mxu0 %v1220
      %1379 = vmatpush.bf16.msra.mxu0 %v1218
      %1380 = vmatpush.bf16.msra.mxu0 %v1216
      %1381 = vmatpush.bf16.msra.mxu0 %v1214
      %1382 = vmatmul.bf16.gmra.mxu0 %v1232
      %v1383 = vpop.f32.mrf.mxu0
      %v1384 = vadd.f32 0.0, %v1383
      %v1385 = vpop.f32.mrf.mxu0
      %v1386 = vadd.f32 0.0, %v1385
      %1387 = vmatmul.bf16.gmra.mxu0 %v1235
      %v1388 = vpop.f32.mrf.mxu0
      %v1389 = vadd.f32 0.0, %v1388
      %v1390 = vpop.f32.mrf.mxu0
      %v1391 = vadd.f32 0.0, %v1390
      %1392 = vmatmul.bf16.gmra.mxu0 %v1238
      %v1393 = vpop.f32.mrf.mxu0
      %v1394 = vadd.f32 0.0, %v1393
      %v1395 = vpop.f32.mrf.mxu0
      %v1396 = vadd.f32 0.0, %v1395
      %1397 = vmatmul.bf16.gmra.mxu0 %v1241
      %v1398 = vpop.f32.mrf.mxu0
      %v1399 = vadd.f32 0.0, %v1398
      %v1400 = vpop.f32.mrf.mxu0
      %v1401 = vadd.f32 0.0, %v1400
      %1402 = vmatmul.bf16.gmra.mxu0 %v1244
      %v1403 = vpop.f32.mrf.mxu0
      %v1404 = vadd.f32 0.0, %v1403
      %v1405 = vpop.f32.mrf.mxu0
      %v1406 = vadd.f32 0.0, %v1405
      %1407 = vmatmul.bf16.gmra.mxu0 %v1247
      %v1408 = vpop.f32.mrf.mxu0
      %v1409 = vadd.f32 0.0, %v1408
      %v1410 = vpop.f32.mrf.mxu0
      %v1411 = vadd.f32 0.0, %v1410
      %1412 = vmatmul.bf16.gmra.mxu0 %v1250
      %v1413 = vpop.f32.mrf.mxu0
      %v1414 = vadd.f32 0.0, %v1413
      %v1415 = vpop.f32.mrf.mxu0
      %v1416 = vadd.f32 0.0, %v1415
      %1417 = vmatmul.bf16.gmra.mxu0 %v1253
      %v1418 = vpop.f32.mrf.mxu0
      %v1419 = vadd.f32 0.0, %v1418
      %v1420 = vpop.f32.mrf.mxu0
      %v1421 = vadd.f32 0.0, %v1420
      %1422 = vmatmul.bf16.gmra.mxu0 %v1256
      %v1423 = vpop.f32.mrf.mxu0
      %v1424 = vadd.f32 0.0, %v1423
      %v1425 = vpop.f32.mrf.mxu0
      %v1426 = vadd.f32 0.0, %v1425
      %1427 = vmatmul.bf16.gmra.mxu0 %v1259
      %v1428 = vpop.f32.mrf.mxu0
      %v1429 = vadd.f32 0.0, %v1428
      %v1430 = vpop.f32.mrf.mxu0
      %v1431 = vadd.f32 0.0, %v1430
      %1432 = vmatmul.bf16.gmra.mxu0 %v1262
      %v1433 = vpop.f32.mrf.mxu0
      %v1434 = vadd.f32 0.0, %v1433
      %v1435 = vpop.f32.mrf.mxu0
      %v1436 = vadd.f32 0.0, %v1435
      %1437 = vmatmul.bf16.gmra.mxu0 %v1265
      %v1438 = vpop.f32.mrf.mxu0
      %v1439 = vadd.f32 0.0, %v1438
      %v1440 = vpop.f32.mrf.mxu0
      %v1441 = vadd.f32 0.0, %v1440
      %1442 = vmatmul.bf16.gmra.mxu0 %v1268
      %v1443 = vpop.f32.mrf.mxu0
      %v1444 = vadd.f32 0.0, %v1443
      %v1445 = vpop.f32.mrf.mxu0
      %v1446 = vadd.f32 0.0, %v1445
      %1447 = vmatmul.bf16.gmra.mxu0 %v1271
      %v1448 = vpop.f32.mrf.mxu0
      %v1449 = vadd.f32 0.0, %v1448
      %v1450 = vpop.f32.mrf.mxu0
      %v1451 = vadd.f32 0.0, %v1450
      %1452 = vmatmul.bf16.gmra.mxu0 %v1274
      %v1453 = vpop.f32.mrf.mxu0
      %v1454 = vadd.f32 0.0, %v1453
      %v1455 = vpop.f32.mrf.mxu0
      %v1456 = vadd.f32 0.0, %v1455
      %1457 = vmatmul.bf16.gmra.mxu0 %v1277
      %v1458 = vpop.f32.mrf.mxu0
      %v1459 = vadd.f32 0.0, %v1458
      %v1460 = vpop.f32.mrf.mxu0
      %v1461 = vadd.f32 0.0, %v1460
      %1462 = vdwg.mxu0
      %v1463 = vadd.f32 %v879, %v1295
      %v1464 = vadd.f32 %v968, %v1384
      %v1465 = vadd.f32 %v881, %v1297
      %v1466 = vadd.f32 %v970, %v1386
      %v1467 = vadd.f32 %v884, %v1300
      %v1468 = vadd.f32 %v973, %v1389
      %v1469 = vadd.f32 %v886, %v1302
      %v1470 = vadd.f32 %v975, %v1391
      %v1471 = vadd.f32 %v889, %v1305
      %v1472 = vadd.f32 %v978, %v1394
      %v1473 = vadd.f32 %v891, %v1307
      %v1474 = vadd.f32 %v980, %v1396
      %v1475 = vadd.f32 %v894, %v1310
      %v1476 = vadd.f32 %v983, %v1399
      %v1477 = vadd.f32 %v896, %v1312
      %v1478 = vadd.f32 %v985, %v1401
      %v1479 = vadd.f32 %v899, %v1315
      %v1480 = vadd.f32 %v988, %v1404
      %v1481 = vadd.f32 %v901, %v1317
      %v1482 = vadd.f32 %v990, %v1406
      %v1483 = vadd.f32 %v904, %v1320
      %v1484 = vadd.f32 %v993, %v1409
      %v1485 = vadd.f32 %v906, %v1322
      %v1486 = vadd.f32 %v995, %v1411
      %v1487 = vadd.f32 %v909, %v1325
      %v1488 = vadd.f32 %v998, %v1414
      %v1489 = vadd.f32 %v911, %v1327
      %v1490 = vadd.f32 %v1000, %v1416
      %v1491 = vadd.f32 %v914, %v1330
      %v1492 = vadd.f32 %v1003, %v1419
      %v1493 = vadd.f32 %v916, %v1332
      %v1494 = vadd.f32 %v1005, %v1421
      %v1495 = vadd.f32 %v919, %v1335
      %v1496 = vadd.f32 %v1008, %v1424
      %v1497 = vadd.f32 %v921, %v1337
      %v1498 = vadd.f32 %v1010, %v1426
      %v1499 = vadd.f32 %v924, %v1340
      %v1500 = vadd.f32 %v1013, %v1429
      %v1501 = vadd.f32 %v926, %v1342
      %v1502 = vadd.f32 %v1015, %v1431
      %v1503 = vadd.f32 %v929, %v1345
      %v1504 = vadd.f32 %v1018, %v1434
      %v1505 = vadd.f32 %v931, %v1347
      %v1506 = vadd.f32 %v1020, %v1436
      %v1507 = vadd.f32 %v934, %v1350
      %v1508 = vadd.f32 %v1023, %v1439
      %v1509 = vadd.f32 %v936, %v1352
      %v1510 = vadd.f32 %v1025, %v1441
      %v1511 = vadd.f32 %v939, %v1355
      %v1512 = vadd.f32 %v1028, %v1444
      %v1513 = vadd.f32 %v941, %v1357
      %v1514 = vadd.f32 %v1030, %v1446
      %v1515 = vadd.f32 %v944, %v1360
      %v1516 = vadd.f32 %v1033, %v1449
      %v1517 = vadd.f32 %v946, %v1362
      %v1518 = vadd.f32 %v1035, %v1451
      %v1519 = vadd.f32 %v949, %v1365
      %v1520 = vadd.f32 %v1038, %v1454
      %v1521 = vadd.f32 %v951, %v1367
      %v1522 = vadd.f32 %v1040, %v1456
      %v1523 = vadd.f32 %v954, %v1370
      %v1524 = vadd.f32 %v1043, %v1459
      %v1525 = vadd.f32 %v956, %v1372
      %v1526 = vadd.f32 %v1045, %v1461
      %s1527 = scalar_lea.vmem %s211, 24
      %v1528 = vld [vmem:[%s1527] sm:$0xff]
      %v1529 = vld [vmem:[%s1527 + $0x8] sm:$0xff]
      %v1530 = vld [vmem:[%s1527 + $0x10] sm:$0x3]
      %v1531 = vld [vmem:[%s1527 + $0x18] sm:$0xff]
      %v1532 = vld [vmem:[%s1527 + $0x20] sm:$0xff]
      %v1533 = vld [vmem:[%s1527 + $0x28] sm:$0x3]
      %v1534 = vld [vmem:[%s1527 + $0x30] sm:$0xff]
      %v1535 = vld [vmem:[%s1527 + $0x38] sm:$0xff]
      %v1536 = vld [vmem:[%s1527 + $0x40] sm:$0x3]
      %v1537 = vld [vmem:[%s1527 + $0x48] sm:$0xff]
      %v1538 = vld [vmem:[%s1527 + $0x50] sm:$0xff]
      %v1539 = vld [vmem:[%s1527 + $0x58] sm:$0x3]
      %v1540 = vld [vmem:[%s1527 + $0x60] sm:$0xff]
      %v1541 = vld [vmem:[%s1527 + $0x68] sm:$0xff]
      %v1542 = vld [vmem:[%s1527 + $0x70] sm:$0x3]
      %v1543 = vld [vmem:[%s1527 + $0x78] sm:$0xff]
      %v1544 = vld [vmem:[%s1527 + $0x80] sm:$0xff]
      %v1545 = vld [vmem:[%s1527 + $0x88] sm:$0x3]
      %v1546 = vld [vmem:[%s1527 + $0x90] sm:$0xff]
      %v1547 = vld [vmem:[%s1527 + $0x98] sm:$0xff]
      %v1548 = vld [vmem:[%s1527 + $0xa0] sm:$0x3]
      %v1549 = vld [vmem:[%s1527 + $0xa8] sm:$0xff]
      %v1550 = vld [vmem:[%s1527 + $0xb0] sm:$0xff]
      %v1551 = vld [vmem:[%s1527 + $0xb8] sm:$0x3]
      %v1552 = vld [vmem:[%s1527 + $0xc0] sm:$0xff]
      %v1553 = vld [vmem:[%s1527 + $0xc8] sm:$0xff]
      %v1554 = vld [vmem:[%s1527 + $0xd0] sm:$0x3]
      %v1555 = vld [vmem:[%s1527 + $0xd8] sm:$0xff]
      %v1556 = vld [vmem:[%s1527 + $0xe0] sm:$0xff]
      %v1557 = vld [vmem:[%s1527 + $0xe8] sm:$0x3]
      %v1558 = vld [vmem:[%s1527 + $0xf0] sm:$0xff]
      %v1559 = vld [vmem:[%s1527 + $0xf8] sm:$0xff]
      %v1560 = vld [vmem:[%s1527 + $0x100] sm:$0x3]
      %v1561 = vld [vmem:[%s1527 + $0x108] sm:$0xff]
      %v1562 = vld [vmem:[%s1527 + $0x110] sm:$0xff]
      %v1563 = vld [vmem:[%s1527 + $0x118] sm:$0x3]
      %v1564 = vld [vmem:[%s1527 + $0x120] sm:$0xff]
      %v1565 = vld [vmem:[%s1527 + $0x128] sm:$0xff]
      %v1566 = vld [vmem:[%s1527 + $0x130] sm:$0x3]
      %v1567 = vld [vmem:[%s1527 + $0x138] sm:$0xff]
      %v1568 = vld [vmem:[%s1527 + $0x140] sm:$0xff]
      %v1569 = vld [vmem:[%s1527 + $0x148] sm:$0x3]
      %v1570 = vld [vmem:[%s1527 + $0x150] sm:$0xff]
      %v1571 = vld [vmem:[%s1527 + $0x158] sm:$0xff]
      %v1572 = vld [vmem:[%s1527 + $0x160] sm:$0x3]
      %v1573 = vld [vmem:[%s1527 + $0x168] sm:$0xff]
      %v1574 = vld [vmem:[%s1527 + $0x170] sm:$0xff]
      %v1575 = vld [vmem:[%s1527 + $0x178] sm:$0x3]
      %v1576 = vpack.c.bf16 %v1529, %v1528
      %v1577 = vpack.c.bf16 %v1532, %v1531
      %v1578 = vpack.c.bf16 %v1535, %v1534
      %v1579 = vpack.c.bf16 %v1538, %v1537
      %v1580 = vpack.c.bf16 %v1541, %v1540
      %v1581 = vpack.c.bf16 %v1544, %v1543
      %v1582 = vpack.c.bf16 %v1547, %v1546
      %v1583 = vpack.c.bf16 %v1550, %v1549
      %v1584 = vpack.c.bf16 %v1553, %v1552
      %v1585 = vpack.c.bf16 %v1556, %v1555
      %v1586 = vpack.c.bf16 %v1559, %v1558
      %v1587 = vpack.c.bf16 %v1562, %v1561
      %v1588 = vpack.c.bf16 %v1565, %v1564
      %v1589 = vpack.c.bf16 %v1568, %v1567
      %v1590 = vpack.c.bf16 %v1571, %v1570
      %v1591 = vpack.c.bf16 %v1574, %v1573
      %s1592 = scalar_lea.vmem %s1, 216
      %v1593 = vld [vmem:[%s1592] sm:$0xff]
      %v1594 = vld [vmem:[%s1592 + $0x8] sm:$0xff]
      %v1595 = vld [vmem:[%s1592 + $0x10] sm:$0xff]
      %v1596 = vld [vmem:[%s1592 + $0x18] sm:$0xff]
      %v1597 = vld [vmem:[%s1592 + $0x20] sm:$0xff]
      %v1598 = vld [vmem:[%s1592 + $0x28] sm:$0xff]
      %v1599 = vld [vmem:[%s1592 + $0x30] sm:$0xff]
      %v1600 = vld [vmem:[%s1592 + $0x38] sm:$0xff]
      %v1601 = vld [vmem:[%s1592 + $0x40] sm:$0xff]
      %v1611 = vunpack.c.l.b16 %v1593
      %v1612 = vunpack.c.h.b16 %v1593
      %v1613 = vunpack.c.l.b16 %v1594
      %v1614 = vunpack.c.h.b16 %v1594
      %v1615 = vunpack.c.l.b16 %v1595
      %v1616 = vunpack.c.h.b16 %v1595
      %v1617 = vunpack.c.l.b16 %v1596
      %v1618 = vunpack.c.h.b16 %v1596
      %v1619 = vunpack.c.l.b16 %v1597
      %v1620 = vunpack.c.h.b16 %v1597
      %v1621 = vunpack.c.l.b16 %v1598
      %v1622 = vunpack.c.h.b16 %v1598
      %v1623 = vunpack.c.l.b16 %v1599
      %v1624 = vunpack.c.h.b16 %v1599
      %v1625 = vunpack.c.l.b16 %v1600
      %v1626 = vunpack.c.h.b16 %v1600
      %v1627 = vunpack.c.l.b16 %v1601
      %v1628 = vunpack.c.h.b16 %v1601
      %v1629 = vpack.c.b16 %v1613, %v1611
      %v1630 = vpack.c.b16 %v1614, %v1612
      %v1631 = vpack.c.b16 %v1617, %v1615
      %v1632 = vpack.c.b16 %v1618, %v1616
      %v1633 = vpack.c.b16 %v1621, %v1619
      %v1634 = vpack.c.b16 %v1622, %v1620
      %v1635 = vpack.c.b16 %v1625, %v1623
      %v1636 = vpack.c.b16 %v1626, %v1624
      %v1637 = vpack.c.b16 %v1627, %v1627
      %v1638 = vpack.c.b16 %v1628, %v1628
      %v1648 = vsel %vm536, %v1576, 0
      %v1651 = vsel %vm536, %v1577, 0
      %v1654 = vsel %vm536, %v1578, 0
      %v1657 = vsel %vm536, %v1579, 0
      %v1660 = vsel %vm536, %v1580, 0
      %v1663 = vsel %vm536, %v1581, 0
      %v1666 = vsel %vm536, %v1582, 0
      %v1669 = vsel %vm536, %v1583, 0
      %v1672 = vsel %vm536, %v1584, 0
      %v1675 = vsel %vm536, %v1585, 0
      %v1678 = vsel %vm536, %v1586, 0
      %v1681 = vsel %vm536, %v1587, 0
      %v1684 = vsel %vm536, %v1588, 0
      %v1687 = vsel %vm536, %v1589, 0
      %v1690 = vsel %vm536, %v1590, 0
      %v1693 = vsel %vm536, %v1591, 0
      %v1696 = vsel %vm585, %v1637, 0
      %v1699 = vsel %vm585, %v1638, 0
      %1701 = vmatpush.bf16.msra.mxu0 0
      %1702 = vmatpush.bf16.msra.mxu0 0
      %1703 = vmatpush.bf16.msra.mxu0 0
      %1704 = vmatpush.bf16.msra.mxu0 %v1696
      %1705 = vmatpush.bf16.msra.mxu0 %v1635
      %1706 = vmatpush.bf16.msra.mxu0 %v1633
      %1707 = vmatpush.bf16.msra.mxu0 %v1631
      %1708 = vmatpush.bf16.msra.mxu0 %v1629
      %1709 = vmatmul.bf16.gmra.mxu0 %v1648
      %v1710 = vpop.f32.mrf.mxu0
      %v1711 = vadd.f32 0.0, %v1710
      %v1712 = vpop.f32.mrf.mxu0
      %v1713 = vadd.f32 0.0, %v1712
      %1714 = vmatmul.bf16.gmra.mxu0 %v1651
      %v1715 = vpop.f32.mrf.mxu0
      %v1716 = vadd.f32 0.0, %v1715
      %v1717 = vpop.f32.mrf.mxu0
      %v1718 = vadd.f32 0.0, %v1717
      %1719 = vmatmul.bf16.gmra.mxu0 %v1654
      %v1720 = vpop.f32.mrf.mxu0
      %v1721 = vadd.f32 0.0, %v1720
      %v1722 = vpop.f32.mrf.mxu0
      %v1723 = vadd.f32 0.0, %v1722
      %1724 = vmatmul.bf16.gmra.mxu0 %v1657
      %v1725 = vpop.f32.mrf.mxu0
      %v1726 = vadd.f32 0.0, %v1725
      %v1727 = vpop.f32.mrf.mxu0
      %v1728 = vadd.f32 0.0, %v1727
      %1729 = vmatmul.bf16.gmra.mxu0 %v1660
      %v1730 = vpop.f32.mrf.mxu0
      %v1731 = vadd.f32 0.0, %v1730
      %v1732 = vpop.f32.mrf.mxu0
      %v1733 = vadd.f32 0.0, %v1732
      %1734 = vmatmul.bf16.gmra.mxu0 %v1663
      %v1735 = vpop.f32.mrf.mxu0
      %v1736 = vadd.f32 0.0, %v1735
      %v1737 = vpop.f32.mrf.mxu0
      %v1738 = vadd.f32 0.0, %v1737
      %1739 = vmatmul.bf16.gmra.mxu0 %v1666
      %v1740 = vpop.f32.mrf.mxu0
      %v1741 = vadd.f32 0.0, %v1740
      %v1742 = vpop.f32.mrf.mxu0
      %v1743 = vadd.f32 0.0, %v1742
      %1744 = vmatmul.bf16.gmra.mxu0 %v1669
      %v1745 = vpop.f32.mrf.mxu0
      %v1746 = vadd.f32 0.0, %v1745
      %v1747 = vpop.f32.mrf.mxu0
      %v1748 = vadd.f32 0.0, %v1747
      %1749 = vmatmul.bf16.gmra.mxu0 %v1672
      %v1750 = vpop.f32.mrf.mxu0
      %v1751 = vadd.f32 0.0, %v1750
      %v1752 = vpop.f32.mrf.mxu0
      %v1753 = vadd.f32 0.0, %v1752
      %1754 = vmatmul.bf16.gmra.mxu0 %v1675
      %v1755 = vpop.f32.mrf.mxu0
      %v1756 = vadd.f32 0.0, %v1755
      %v1757 = vpop.f32.mrf.mxu0
      %v1758 = vadd.f32 0.0, %v1757
      %1759 = vmatmul.bf16.gmra.mxu0 %v1678
      %v1760 = vpop.f32.mrf.mxu0
      %v1761 = vadd.f32 0.0, %v1760
      %v1762 = vpop.f32.mrf.mxu0
      %v1763 = vadd.f32 0.0, %v1762
      %1764 = vmatmul.bf16.gmra.mxu0 %v1681
      %v1765 = vpop.f32.mrf.mxu0
      %v1766 = vadd.f32 0.0, %v1765
      %v1767 = vpop.f32.mrf.mxu0
      %v1768 = vadd.f32 0.0, %v1767
      %1769 = vmatmul.bf16.gmra.mxu0 %v1684
      %v1770 = vpop.f32.mrf.mxu0
      %v1771 = vadd.f32 0.0, %v1770
      %v1772 = vpop.f32.mrf.mxu0
      %v1773 = vadd.f32 0.0, %v1772
      %1774 = vmatmul.bf16.gmra.mxu0 %v1687
      %v1775 = vpop.f32.mrf.mxu0
      %v1776 = vadd.f32 0.0, %v1775
      %v1777 = vpop.f32.mrf.mxu0
      %v1778 = vadd.f32 0.0, %v1777
      %1779 = vmatmul.bf16.gmra.mxu0 %v1690
      %v1780 = vpop.f32.mrf.mxu0
      %v1781 = vadd.f32 0.0, %v1780
      %v1782 = vpop.f32.mrf.mxu0
      %v1783 = vadd.f32 0.0, %v1782
      %1784 = vmatmul.bf16.gmra.mxu0 %v1693
      %v1785 = vpop.f32.mrf.mxu0
      %v1786 = vadd.f32 0.0, %v1785
      %v1787 = vpop.f32.mrf.mxu0
      %v1788 = vadd.f32 0.0, %v1787
      %1789 = vdwg.mxu0
      %1790 = vmatpush.bf16.msra.mxu0 0
      %1791 = vmatpush.bf16.msra.mxu0 0
      %1792 = vmatpush.bf16.msra.mxu0 0
      %1793 = vmatpush.bf16.msra.mxu0 %v1699
      %1794 = vmatpush.bf16.msra.mxu0 %v1636
      %1795 = vmatpush.bf16.msra.mxu0 %v1634
      %1796 = vmatpush.bf16.msra.mxu0 %v1632
      %1797 = vmatpush.bf16.msra.mxu0 %v1630
      %1798 = vmatmul.bf16.gmra.mxu0 %v1648
      %v1799 = vpop.f32.mrf.mxu0
      %v1800 = vadd.f32 0.0, %v1799
      %v1801 = vpop.f32.mrf.mxu0
      %v1802 = vadd.f32 0.0, %v1801
      %1803 = vmatmul.bf16.gmra.mxu0 %v1651
      %v1804 = vpop.f32.mrf.mxu0
      %v1805 = vadd.f32 0.0, %v1804
      %v1806 = vpop.f32.mrf.mxu0
      %v1807 = vadd.f32 0.0, %v1806
      %1808 = vmatmul.bf16.gmra.mxu0 %v1654
      %v1809 = vpop.f32.mrf.mxu0
      %v1810 = vadd.f32 0.0, %v1809
      %v1811 = vpop.f32.mrf.mxu0
      %v1812 = vadd.f32 0.0, %v1811
      %1813 = vmatmul.bf16.gmra.mxu0 %v1657
      %v1814 = vpop.f32.mrf.mxu0
      %v1815 = vadd.f32 0.0, %v1814
      %v1816 = vpop.f32.mrf.mxu0
      %v1817 = vadd.f32 0.0, %v1816
      %1818 = vmatmul.bf16.gmra.mxu0 %v1660
      %v1819 = vpop.f32.mrf.mxu0
      %v1820 = vadd.f32 0.0, %v1819
      %v1821 = vpop.f32.mrf.mxu0
      %v1822 = vadd.f32 0.0, %v1821
      %1823 = vmatmul.bf16.gmra.mxu0 %v1663
      %v1824 = vpop.f32.mrf.mxu0
      %v1825 = vadd.f32 0.0, %v1824
      %v1826 = vpop.f32.mrf.mxu0
      %v1827 = vadd.f32 0.0, %v1826
      %1828 = vmatmul.bf16.gmra.mxu0 %v1666
      %v1829 = vpop.f32.mrf.mxu0
      %v1830 = vadd.f32 0.0, %v1829
      %v1831 = vpop.f32.mrf.mxu0
      %v1832 = vadd.f32 0.0, %v1831
      %1833 = vmatmul.bf16.gmra.mxu0 %v1669
      %v1834 = vpop.f32.mrf.mxu0
      %v1835 = vadd.f32 0.0, %v1834
      %v1836 = vpop.f32.mrf.mxu0
      %v1837 = vadd.f32 0.0, %v1836
      %1838 = vmatmul.bf16.gmra.mxu0 %v1672
      %v1839 = vpop.f32.mrf.mxu0
      %v1840 = vadd.f32 0.0, %v1839
      %v1841 = vpop.f32.mrf.mxu0
      %v1842 = vadd.f32 0.0, %v1841
      %1843 = vmatmul.bf16.gmra.mxu0 %v1675
      %v1844 = vpop.f32.mrf.mxu0
      %v1845 = vadd.f32 0.0, %v1844
      %v1846 = vpop.f32.mrf.mxu0
      %v1847 = vadd.f32 0.0, %v1846
      %1848 = vmatmul.bf16.gmra.mxu0 %v1678
      %v1849 = vpop.f32.mrf.mxu0
      %v1850 = vadd.f32 0.0, %v1849
      %v1851 = vpop.f32.mrf.mxu0
      %v1852 = vadd.f32 0.0, %v1851
      %1853 = vmatmul.bf16.gmra.mxu0 %v1681
      %v1854 = vpop.f32.mrf.mxu0
      %v1855 = vadd.f32 0.0, %v1854
      %v1856 = vpop.f32.mrf.mxu0
      %v1857 = vadd.f32 0.0, %v1856
      %1858 = vmatmul.bf16.gmra.mxu0 %v1684
      %v1859 = vpop.f32.mrf.mxu0
      %v1860 = vadd.f32 0.0, %v1859
      %v1861 = vpop.f32.mrf.mxu0
      %v1862 = vadd.f32 0.0, %v1861
      %1863 = vmatmul.bf16.gmra.mxu0 %v1687
      %v1864 = vpop.f32.mrf.mxu0
      %v1865 = vadd.f32 0.0, %v1864
      %v1866 = vpop.f32.mrf.mxu0
      %v1867 = vadd.f32 0.0, %v1866
      %1868 = vmatmul.bf16.gmra.mxu0 %v1690
      %v1869 = vpop.f32.mrf.mxu0
      %v1870 = vadd.f32 0.0, %v1869
      %v1871 = vpop.f32.mrf.mxu0
      %v1872 = vadd.f32 0.0, %v1871
      %1873 = vmatmul.bf16.gmra.mxu0 %v1693
      %v1874 = vpop.f32.mrf.mxu0
      %v1875 = vadd.f32 0.0, %v1874
      %v1876 = vpop.f32.mrf.mxu0
      %v1877 = vadd.f32 0.0, %v1876
      %1878 = vdwg.mxu0
      %v1879 = vadd.f32 %v1463, %v1711
      %v1880 = vadd.f32 %v1464, %v1800
      %v1881 = vadd.f32 %v1465, %v1713
      %v1882 = vadd.f32 %v1466, %v1802
      %v1883 = vadd.f32 %v1467, %v1716
      %v1884 = vadd.f32 %v1468, %v1805
      %v1885 = vadd.f32 %v1469, %v1718
      %v1886 = vadd.f32 %v1470, %v1807
      %v1887 = vadd.f32 %v1471, %v1721
      %v1888 = vadd.f32 %v1472, %v1810
      %v1889 = vadd.f32 %v1473, %v1723
      %v1890 = vadd.f32 %v1474, %v1812
      %v1891 = vadd.f32 %v1475, %v1726
      %v1892 = vadd.f32 %v1476, %v1815
      %v1893 = vadd.f32 %v1477, %v1728
      %v1894 = vadd.f32 %v1478, %v1817
      %v1895 = vadd.f32 %v1479, %v1731
      %v1896 = vadd.f32 %v1480, %v1820
      %v1897 = vadd.f32 %v1481, %v1733
      %v1898 = vadd.f32 %v1482, %v1822
      %v1899 = vadd.f32 %v1483, %v1736
      %v1900 = vadd.f32 %v1484, %v1825
      %v1901 = vadd.f32 %v1485, %v1738
      %v1902 = vadd.f32 %v1486, %v1827
      %v1903 = vadd.f32 %v1487, %v1741
      %v1904 = vadd.f32 %v1488, %v1830
      %v1905 = vadd.f32 %v1489, %v1743
      %v1906 = vadd.f32 %v1490, %v1832
      %v1907 = vadd.f32 %v1491, %v1746
      %v1908 = vadd.f32 %v1492, %v1835
      %v1909 = vadd.f32 %v1493, %v1748
      %v1910 = vadd.f32 %v1494, %v1837
      %v1911 = vadd.f32 %v1495, %v1751
      %v1912 = vadd.f32 %v1496, %v1840
      %v1913 = vadd.f32 %v1497, %v1753
      %v1914 = vadd.f32 %v1498, %v1842
      %v1915 = vadd.f32 %v1499, %v1756
      %v1916 = vadd.f32 %v1500, %v1845
      %v1917 = vadd.f32 %v1501, %v1758
      %v1918 = vadd.f32 %v1502, %v1847
      %v1919 = vadd.f32 %v1503, %v1761
      %v1920 = vadd.f32 %v1504, %v1850
      %v1921 = vadd.f32 %v1505, %v1763
      %v1922 = vadd.f32 %v1506, %v1852
      %v1923 = vadd.f32 %v1507, %v1766
      %v1924 = vadd.f32 %v1508, %v1855
      %v1925 = vadd.f32 %v1509, %v1768
      %v1926 = vadd.f32 %v1510, %v1857
      %v1927 = vadd.f32 %v1511, %v1771
      %v1928 = vadd.f32 %v1512, %v1860
      %v1929 = vadd.f32 %v1513, %v1773
      %v1930 = vadd.f32 %v1514, %v1862
      %v1931 = vadd.f32 %v1515, %v1776
      %v1932 = vadd.f32 %v1516, %v1865
      %v1933 = vadd.f32 %v1517, %v1778
      %v1934 = vadd.f32 %v1518, %v1867
      %v1935 = vadd.f32 %v1519, %v1781
      %v1936 = vadd.f32 %v1520, %v1870
      %v1937 = vadd.f32 %v1521, %v1783
      %v1938 = vadd.f32 %v1522, %v1872
      %v1939 = vadd.f32 %v1523, %v1786
      %v1940 = vadd.f32 %v1524, %v1875
      %v1941 = vadd.f32 %v1525, %v1788
      %v1942 = vadd.f32 %v1526, %v1877
      %v1991 = vrot.slane %v1528, 1
      %v1992 = vrot.slane %v1529, 1
      %v1993 = vsel %vm352, %v1991, %v1992
      %v1994 = vrot.slane %v1530, 1
      %v1995 = vsel %vm352, %v1992, %v1994
      %v1996 = vrot.slane %v1531, 1
      %v1997 = vrot.slane %v1532, 1
      %v1998 = vsel %vm352, %v1996, %v1997
      %v1999 = vrot.slane %v1533, 1
      %v2000 = vsel %vm352, %v1997, %v1999
      %v2001 = vrot.slane %v1534, 1
      %v2002 = vrot.slane %v1535, 1
      %v2003 = vsel %vm352, %v2001, %v2002
      %v2004 = vrot.slane %v1536, 1
      %v2005 = vsel %vm352, %v2002, %v2004
      %v2006 = vrot.slane %v1537, 1
      %v2007 = vrot.slane %v1538, 1
      %v2008 = vsel %vm352, %v2006, %v2007
      %v2009 = vrot.slane %v1539, 1
      %v2010 = vsel %vm352, %v2007, %v2009
      %v2011 = vrot.slane %v1540, 1
      %v2012 = vrot.slane %v1541, 1
      %v2013 = vsel %vm352, %v2011, %v2012
      %v2014 = vrot.slane %v1542, 1
      %v2015 = vsel %vm352, %v2012, %v2014
      %v2016 = vrot.slane %v1543, 1
      %v2017 = vrot.slane %v1544, 1
      %v2018 = vsel %vm352, %v2016, %v2017
      %v2019 = vrot.slane %v1545, 1
      %v2020 = vsel %vm352, %v2017, %v2019
      %v2021 = vrot.slane %v1546, 1
      %v2022 = vrot.slane %v1547, 1
      %v2023 = vsel %vm352, %v2021, %v2022
      %v2024 = vrot.slane %v1548, 1
      %v2025 = vsel %vm352, %v2022, %v2024
      %v2026 = vrot.slane %v1549, 1
      %v2027 = vrot.slane %v1550, 1
      %v2028 = vsel %vm352, %v2026, %v2027
      %v2029 = vrot.slane %v1551, 1
      %v2030 = vsel %vm352, %v2027, %v2029
      %v2031 = vrot.slane %v1552, 1
      %v2032 = vrot.slane %v1553, 1
      %v2033 = vsel %vm352, %v2031, %v2032
      %v2034 = vrot.slane %v1554, 1
      %v2035 = vsel %vm352, %v2032, %v2034
      %v2036 = vrot.slane %v1555, 1
      %v2037 = vrot.slane %v1556, 1
      %v2038 = vsel %vm352, %v2036, %v2037
      %v2039 = vrot.slane %v1557, 1
      %v2040 = vsel %vm352, %v2037, %v2039
      %v2041 = vrot.slane %v1558, 1
      %v2042 = vrot.slane %v1559, 1
      %v2043 = vsel %vm352, %v2041, %v2042
      %v2044 = vrot.slane %v1560, 1
      %v2045 = vsel %vm352, %v2042, %v2044
      %v2046 = vrot.slane %v1561, 1
      %v2047 = vrot.slane %v1562, 1
      %v2048 = vsel %vm352, %v2046, %v2047
      %v2049 = vrot.slane %v1563, 1
      %v2050 = vsel %vm352, %v2047, %v2049
      %v2051 = vrot.slane %v1564, 1
      %v2052 = vrot.slane %v1565, 1
      %v2053 = vsel %vm352, %v2051, %v2052
      %v2054 = vrot.slane %v1566, 1
      %v2055 = vsel %vm352, %v2052, %v2054
      %v2056 = vrot.slane %v1567, 1
      %v2057 = vrot.slane %v1568, 1
      %v2058 = vsel %vm352, %v2056, %v2057
      %v2059 = vrot.slane %v1569, 1
      %v2060 = vsel %vm352, %v2057, %v2059
      %v2061 = vrot.slane %v1570, 1
      %v2062 = vrot.slane %v1571, 1
      %v2063 = vsel %vm352, %v2061, %v2062
      %v2064 = vrot.slane %v1572, 1
      %v2065 = vsel %vm352, %v2062, %v2064
      %v2066 = vrot.slane %v1573, 1
      %v2067 = vrot.slane %v1574, 1
      %v2068 = vsel %vm352, %v2066, %v2067
      %v2069 = vrot.slane %v1575, 1
      %v2070 = vsel %vm352, %v2067, %v2069
      %v2103 = vpack.c.bf16 %v1995, %v1993
      %v2104 = vpack.c.bf16 %v2000, %v1998
      %v2105 = vpack.c.bf16 %v2005, %v2003
      %v2106 = vpack.c.bf16 %v2010, %v2008
      %v2107 = vpack.c.bf16 %v2015, %v2013
      %v2108 = vpack.c.bf16 %v2020, %v2018
      %v2109 = vpack.c.bf16 %v2025, %v2023
      %v2110 = vpack.c.bf16 %v2030, %v2028
      %v2111 = vpack.c.bf16 %v2035, %v2033
      %v2112 = vpack.c.bf16 %v2040, %v2038
      %v2113 = vpack.c.bf16 %v2045, %v2043
      %v2114 = vpack.c.bf16 %v2050, %v2048
      %v2115 = vpack.c.bf16 %v2055, %v2053
      %v2116 = vpack.c.bf16 %v2060, %v2058
      %v2117 = vpack.c.bf16 %v2065, %v2063
      %v2118 = vpack.c.bf16 %v2070, %v2068
      %s2119 = scalar_lea.vmem %s1, 288
      %v2120 = vld [vmem:[%s2119] sm:$0xff]
      %v2121 = vld [vmem:[%s2119 + $0x8] sm:$0xff]
      %v2122 = vld [vmem:[%s2119 + $0x10] sm:$0xff]
      %v2123 = vld [vmem:[%s2119 + $0x18] sm:$0xff]
      %v2124 = vld [vmem:[%s2119 + $0x20] sm:$0xff]
      %v2125 = vld [vmem:[%s2119 + $0x28] sm:$0xff]
      %v2126 = vld [vmem:[%s2119 + $0x30] sm:$0xff]
      %v2127 = vld [vmem:[%s2119 + $0x38] sm:$0xff]
      %v2128 = vld [vmem:[%s2119 + $0x40] sm:$0xff]
      %v2138 = vunpack.c.l.b16 %v2120
      %v2139 = vunpack.c.h.b16 %v2120
      %v2140 = vunpack.c.l.b16 %v2121
      %v2141 = vunpack.c.h.b16 %v2121
      %v2142 = vunpack.c.l.b16 %v2122
      %v2143 = vunpack.c.h.b16 %v2122
      %v2144 = vunpack.c.l.b16 %v2123
      %v2145 = vunpack.c.h.b16 %v2123
      %v2146 = vunpack.c.l.b16 %v2124
      %v2147 = vunpack.c.h.b16 %v2124
      %v2148 = vunpack.c.l.b16 %v2125
      %v2149 = vunpack.c.h.b16 %v2125
      %v2150 = vunpack.c.l.b16 %v2126
      %v2151 = vunpack.c.h.b16 %v2126
      %v2152 = vunpack.c.l.b16 %v2127
      %v2153 = vunpack.c.h.b16 %v2127
      %v2154 = vunpack.c.l.b16 %v2128
      %v2155 = vunpack.c.h.b16 %v2128
      %v2156 = vpack.c.b16 %v2140, %v2138
      %v2157 = vpack.c.b16 %v2141, %v2139
      %v2158 = vpack.c.b16 %v2144, %v2142
      %v2159 = vpack.c.b16 %v2145, %v2143
      %v2160 = vpack.c.b16 %v2148, %v2146
      %v2161 = vpack.c.b16 %v2149, %v2147
      %v2162 = vpack.c.b16 %v2152, %v2150
      %v2163 = vpack.c.b16 %v2153, %v2151
      %v2164 = vpack.c.b16 %v2154, %v2154
      %v2165 = vpack.c.b16 %v2155, %v2155
      %v2175 = vsel %vm536, %v2103, 0
      %v2178 = vsel %vm536, %v2104, 0
      %v2181 = vsel %vm536, %v2105, 0
      %v2184 = vsel %vm536, %v2106, 0
      %v2187 = vsel %vm536, %v2107, 0
      %v2190 = vsel %vm536, %v2108, 0
      %v2193 = vsel %vm536, %v2109, 0
      %v2196 = vsel %vm536, %v2110, 0
      %v2199 = vsel %vm536, %v2111, 0
      %v2202 = vsel %vm536, %v2112, 0
      %v2205 = vsel %vm536, %v2113, 0
      %v2208 = vsel %vm536, %v2114, 0
      %v2211 = vsel %vm536, %v2115, 0
      %v2214 = vsel %vm536, %v2116, 0
      %v2217 = vsel %vm536, %v2117, 0
      %v2220 = vsel %vm536, %v2118, 0
      %v2223 = vsel %vm585, %v2164, 0
      %v2226 = vsel %vm585, %v2165, 0
      %2228 = vmatpush.bf16.msra.mxu0 0
      %2229 = vmatpush.bf16.msra.mxu0 0
      %2230 = vmatpush.bf16.msra.mxu0 0
      %2231 = vmatpush.bf16.msra.mxu0 %v2223
      %2232 = vmatpush.bf16.msra.mxu0 %v2162
      %2233 = vmatpush.bf16.msra.mxu0 %v2160
      %2234 = vmatpush.bf16.msra.mxu0 %v2158
      %2235 = vmatpush.bf16.msra.mxu0 %v2156
      %2236 = vmatmul.bf16.gmra.mxu0 %v2175
      %v2237 = vpop.f32.mrf.mxu0
      %v2238 = vadd.f32 0.0, %v2237
      %v2239 = vpop.f32.mrf.mxu0
      %v2240 = vadd.f32 0.0, %v2239
      %2241 = vmatmul.bf16.gmra.mxu0 %v2178
      %v2242 = vpop.f32.mrf.mxu0
      %v2243 = vadd.f32 0.0, %v2242
      %v2244 = vpop.f32.mrf.mxu0
      %v2245 = vadd.f32 0.0, %v2244
      %2246 = vmatmul.bf16.gmra.mxu0 %v2181
      %v2247 = vpop.f32.mrf.mxu0
      %v2248 = vadd.f32 0.0, %v2247
      %v2249 = vpop.f32.mrf.mxu0
      %v2250 = vadd.f32 0.0, %v2249
      %2251 = vmatmul.bf16.gmra.mxu0 %v2184
      %v2252 = vpop.f32.mrf.mxu0
      %v2253 = vadd.f32 0.0, %v2252
      %v2254 = vpop.f32.mrf.mxu0
      %v2255 = vadd.f32 0.0, %v2254
      %2256 = vmatmul.bf16.gmra.mxu0 %v2187
      %v2257 = vpop.f32.mrf.mxu0
      %v2258 = vadd.f32 0.0, %v2257
      %v2259 = vpop.f32.mrf.mxu0
      %v2260 = vadd.f32 0.0, %v2259
      %2261 = vmatmul.bf16.gmra.mxu0 %v2190
      %v2262 = vpop.f32.mrf.mxu0
      %v2263 = vadd.f32 0.0, %v2262
      %v2264 = vpop.f32.mrf.mxu0
      %v2265 = vadd.f32 0.0, %v2264
      %2266 = vmatmul.bf16.gmra.mxu0 %v2193
      %v2267 = vpop.f32.mrf.mxu0
      %v2268 = vadd.f32 0.0, %v2267
      %v2269 = vpop.f32.mrf.mxu0
      %v2270 = vadd.f32 0.0, %v2269
      %2271 = vmatmul.bf16.gmra.mxu0 %v2196
      %v2272 = vpop.f32.mrf.mxu0
      %v2273 = vadd.f32 0.0, %v2272
      %v2274 = vpop.f32.mrf.mxu0
      %v2275 = vadd.f32 0.0, %v2274
      %2276 = vmatmul.bf16.gmra.mxu0 %v2199
      %v2277 = vpop.f32.mrf.mxu0
      %v2278 = vadd.f32 0.0, %v2277
      %v2279 = vpop.f32.mrf.mxu0
      %v2280 = vadd.f32 0.0, %v2279
      %2281 = vmatmul.bf16.gmra.mxu0 %v2202
      %v2282 = vpop.f32.mrf.mxu0
      %v2283 = vadd.f32 0.0, %v2282
      %v2284 = vpop.f32.mrf.mxu0
      %v2285 = vadd.f32 0.0, %v2284
      %2286 = vmatmul.bf16.gmra.mxu0 %v2205
      %v2287 = vpop.f32.mrf.mxu0
      %v2288 = vadd.f32 0.0, %v2287
      %v2289 = vpop.f32.mrf.mxu0
      %v2290 = vadd.f32 0.0, %v2289
      %2291 = vmatmul.bf16.gmra.mxu0 %v2208
      %v2292 = vpop.f32.mrf.mxu0
      %v2293 = vadd.f32 0.0, %v2292
      %v2294 = vpop.f32.mrf.mxu0
      %v2295 = vadd.f32 0.0, %v2294
      %2296 = vmatmul.bf16.gmra.mxu0 %v2211
      %v2297 = vpop.f32.mrf.mxu0
      %v2298 = vadd.f32 0.0, %v2297
      %v2299 = vpop.f32.mrf.mxu0
      %v2300 = vadd.f32 0.0, %v2299
      %2301 = vmatmul.bf16.gmra.mxu0 %v2214
      %v2302 = vpop.f32.mrf.mxu0
      %v2303 = vadd.f32 0.0, %v2302
      %v2304 = vpop.f32.mrf.mxu0
      %v2305 = vadd.f32 0.0, %v2304
      %2306 = vmatmul.bf16.gmra.mxu0 %v2217
      %v2307 = vpop.f32.mrf.mxu0
      %v2308 = vadd.f32 0.0, %v2307
      %v2309 = vpop.f32.mrf.mxu0
      %v2310 = vadd.f32 0.0, %v2309
      %2311 = vmatmul.bf16.gmra.mxu0 %v2220
      %v2312 = vpop.f32.mrf.mxu0
      %v2313 = vadd.f32 0.0, %v2312
      %v2314 = vpop.f32.mrf.mxu0
      %v2315 = vadd.f32 0.0, %v2314
      %2316 = vdwg.mxu0
      %2317 = vmatpush.bf16.msra.mxu0 0
      %2318 = vmatpush.bf16.msra.mxu0 0
      %2319 = vmatpush.bf16.msra.mxu0 0
      %2320 = vmatpush.bf16.msra.mxu0 %v2226
      %2321 = vmatpush.bf16.msra.mxu0 %v2163
      %2322 = vmatpush.bf16.msra.mxu0 %v2161
      %2323 = vmatpush.bf16.msra.mxu0 %v2159
      %2324 = vmatpush.bf16.msra.mxu0 %v2157
      %2325 = vmatmul.bf16.gmra.mxu0 %v2175
      %v2326 = vpop.f32.mrf.mxu0
      %v2327 = vadd.f32 0.0, %v2326
      %v2328 = vpop.f32.mrf.mxu0
      %v2329 = vadd.f32 0.0, %v2328
      %2330 = vmatmul.bf16.gmra.mxu0 %v2178
      %v2331 = vpop.f32.mrf.mxu0
      %v2332 = vadd.f32 0.0, %v2331
      %v2333 = vpop.f32.mrf.mxu0
      %v2334 = vadd.f32 0.0, %v2333
      %2335 = vmatmul.bf16.gmra.mxu0 %v2181
      %v2336 = vpop.f32.mrf.mxu0
      %v2337 = vadd.f32 0.0, %v2336
      %v2338 = vpop.f32.mrf.mxu0
      %v2339 = vadd.f32 0.0, %v2338
      %2340 = vmatmul.bf16.gmra.mxu0 %v2184
      %v2341 = vpop.f32.mrf.mxu0
      %v2342 = vadd.f32 0.0, %v2341
      %v2343 = vpop.f32.mrf.mxu0
      %v2344 = vadd.f32 0.0, %v2343
      %2345 = vmatmul.bf16.gmra.mxu0 %v2187
      %v2346 = vpop.f32.mrf.mxu0
      %v2347 = vadd.f32 0.0, %v2346
      %v2348 = vpop.f32.mrf.mxu0
      %v2349 = vadd.f32 0.0, %v2348
      %2350 = vmatmul.bf16.gmra.mxu0 %v2190
      %v2351 = vpop.f32.mrf.mxu0
      %v2352 = vadd.f32 0.0, %v2351
      %v2353 = vpop.f32.mrf.mxu0
      %v2354 = vadd.f32 0.0, %v2353
      %2355 = vmatmul.bf16.gmra.mxu0 %v2193
      %v2356 = vpop.f32.mrf.mxu0
      %v2357 = vadd.f32 0.0, %v2356
      %v2358 = vpop.f32.mrf.mxu0
      %v2359 = vadd.f32 0.0, %v2358
      %2360 = vmatmul.bf16.gmra.mxu0 %v2196
      %v2361 = vpop.f32.mrf.mxu0
      %v2362 = vadd.f32 0.0, %v2361
      %v2363 = vpop.f32.mrf.mxu0
      %v2364 = vadd.f32 0.0, %v2363
      %2365 = vmatmul.bf16.gmra.mxu0 %v2199
      %v2366 = vpop.f32.mrf.mxu0
      %v2367 = vadd.f32 0.0, %v2366
      %v2368 = vpop.f32.mrf.mxu0
      %v2369 = vadd.f32 0.0, %v2368
      %2370 = vmatmul.bf16.gmra.mxu0 %v2202
      %v2371 = vpop.f32.mrf.mxu0
      %v2372 = vadd.f32 0.0, %v2371
      %v2373 = vpop.f32.mrf.mxu0
      %v2374 = vadd.f32 0.0, %v2373
      %2375 = vmatmul.bf16.gmra.mxu0 %v2205
      %v2376 = vpop.f32.mrf.mxu0
      %v2377 = vadd.f32 0.0, %v2376
      %v2378 = vpop.f32.mrf.mxu0
      %v2379 = vadd.f32 0.0, %v2378
      %2380 = vmatmul.bf16.gmra.mxu0 %v2208
      %v2381 = vpop.f32.mrf.mxu0
      %v2382 = vadd.f32 0.0, %v2381
      %v2383 = vpop.f32.mrf.mxu0
      %v2384 = vadd.f32 0.0, %v2383
      %2385 = vmatmul.bf16.gmra.mxu0 %v2211
      %v2386 = vpop.f32.mrf.mxu0
      %v2387 = vadd.f32 0.0, %v2386
      %v2388 = vpop.f32.mrf.mxu0
      %v2389 = vadd.f32 0.0, %v2388
      %2390 = vmatmul.bf16.gmra.mxu0 %v2214
      %v2391 = vpop.f32.mrf.mxu0
      %v2392 = vadd.f32 0.0, %v2391
      %v2393 = vpop.f32.mrf.mxu0
      %v2394 = vadd.f32 0.0, %v2393
      %2395 = vmatmul.bf16.gmra.mxu0 %v2217
      %v2396 = vpop.f32.mrf.mxu0
      %v2397 = vadd.f32 0.0, %v2396
      %v2398 = vpop.f32.mrf.mxu0
      %v2399 = vadd.f32 0.0, %v2398
      %2400 = vmatmul.bf16.gmra.mxu0 %v2220
      %v2401 = vpop.f32.mrf.mxu0
      %v2402 = vadd.f32 0.0, %v2401
      %v2403 = vpop.f32.mrf.mxu0
      %v2404 = vadd.f32 0.0, %v2403
      %2405 = vdwg.mxu0
      %v2406 = vadd.f32 %v1879, %v2238
      %v2407 = vadd.f32 %v1880, %v2327
      %v2408 = vadd.f32 %v1881, %v2240
      %v2409 = vadd.f32 %v1882, %v2329
      %v2410 = vadd.f32 %v1883, %v2243
      %v2411 = vadd.f32 %v1884, %v2332
      %v2412 = vadd.f32 %v1885, %v2245
      %v2413 = vadd.f32 %v1886, %v2334
      %v2414 = vadd.f32 %v1887, %v2248
      %v2415 = vadd.f32 %v1888, %v2337
      %v2416 = vadd.f32 %v1889, %v2250
      %v2417 = vadd.f32 %v1890, %v2339
      %v2418 = vadd.f32 %v1891, %v2253
      %v2419 = vadd.f32 %v1892, %v2342
      %v2420 = vadd.f32 %v1893, %v2255
      %v2421 = vadd.f32 %v1894, %v2344
      %v2422 = vadd.f32 %v1895, %v2258
      %v2423 = vadd.f32 %v1896, %v2347
      %v2424 = vadd.f32 %v1897, %v2260
      %v2425 = vadd.f32 %v1898, %v2349
      %v2426 = vadd.f32 %v1899, %v2263
      %v2427 = vadd.f32 %v1900, %v2352
      %v2428 = vadd.f32 %v1901, %v2265
      %v2429 = vadd.f32 %v1902, %v2354
      %v2430 = vadd.f32 %v1903, %v2268
      %v2431 = vadd.f32 %v1904, %v2357
      %v2432 = vadd.f32 %v1905, %v2270
      %v2433 = vadd.f32 %v1906, %v2359
      %v2434 = vadd.f32 %v1907, %v2273
      %v2435 = vadd.f32 %v1908, %v2362
      %v2436 = vadd.f32 %v1909, %v2275
      %v2437 = vadd.f32 %v1910, %v2364
      %v2438 = vadd.f32 %v1911, %v2278
      %v2439 = vadd.f32 %v1912, %v2367
      %v2440 = vadd.f32 %v1913, %v2280
      %v2441 = vadd.f32 %v1914, %v2369
      %v2442 = vadd.f32 %v1915, %v2283
      %v2443 = vadd.f32 %v1916, %v2372
      %v2444 = vadd.f32 %v1917, %v2285
      %v2445 = vadd.f32 %v1918, %v2374
      %v2446 = vadd.f32 %v1919, %v2288
      %v2447 = vadd.f32 %v1920, %v2377
      %v2448 = vadd.f32 %v1921, %v2290
      %v2449 = vadd.f32 %v1922, %v2379
      %v2450 = vadd.f32 %v1923, %v2293
      %v2451 = vadd.f32 %v1924, %v2382
      %v2452 = vadd.f32 %v1925, %v2295
      %v2453 = vadd.f32 %v1926, %v2384
      %v2454 = vadd.f32 %v1927, %v2298
      %v2455 = vadd.f32 %v1928, %v2387
      %v2456 = vadd.f32 %v1929, %v2300
      %v2457 = vadd.f32 %v1930, %v2389
      %v2458 = vadd.f32 %v1931, %v2303
      %v2459 = vadd.f32 %v1932, %v2392
      %v2460 = vadd.f32 %v1933, %v2305
      %v2461 = vadd.f32 %v1934, %v2394
      %v2462 = vadd.f32 %v1935, %v2308
      %v2463 = vadd.f32 %v1936, %v2397
      %v2464 = vadd.f32 %v1937, %v2310
      %v2465 = vadd.f32 %v1938, %v2399
      %v2466 = vadd.f32 %v1939, %v2313
      %v2467 = vadd.f32 %v1940, %v2402
      %v2468 = vadd.f32 %v1941, %v2315
      %v2469 = vadd.f32 %v1942, %v2404
      %v2470 = vrot.slane %v1528, 2
      %v2471 = vrot.slane %v1529, 2
      %v2472 = vsel %vm1047, %v2470, %v2471
      %v2473 = vrot.slane %v1530, 2
      %v2474 = vsel %vm1047, %v2471, %v2473
      %v2475 = vrot.slane %v1531, 2
      %v2476 = vrot.slane %v1532, 2
      %v2477 = vsel %vm1047, %v2475, %v2476
      %v2478 = vrot.slane %v1533, 2
      %v2479 = vsel %vm1047, %v2476, %v2478
      %v2480 = vrot.slane %v1534, 2
      %v2481 = vrot.slane %v1535, 2
      %v2482 = vsel %vm1047, %v2480, %v2481
      %v2483 = vrot.slane %v1536, 2
      %v2484 = vsel %vm1047, %v2481, %v2483
      %v2485 = vrot.slane %v1537, 2
      %v2486 = vrot.slane %v1538, 2
      %v2487 = vsel %vm1047, %v2485, %v2486
      %v2488 = vrot.slane %v1539, 2
      %v2489 = vsel %vm1047, %v2486, %v2488
      %v2490 = vrot.slane %v1540, 2
      %v2491 = vrot.slane %v1541, 2
      %v2492 = vsel %vm1047, %v2490, %v2491
      %v2493 = vrot.slane %v1542, 2
      %v2494 = vsel %vm1047, %v2491, %v2493
      %v2495 = vrot.slane %v1543, 2
      %v2496 = vrot.slane %v1544, 2
      %v2497 = vsel %vm1047, %v2495, %v2496
      %v2498 = vrot.slane %v1545, 2
      %v2499 = vsel %vm1047, %v2496, %v2498
      %v2500 = vrot.slane %v1546, 2
      %v2501 = vrot.slane %v1547, 2
      %v2502 = vsel %vm1047, %v2500, %v2501
      %v2503 = vrot.slane %v1548, 2
      %v2504 = vsel %vm1047, %v2501, %v2503
      %v2505 = vrot.slane %v1549, 2
      %v2506 = vrot.slane %v1550, 2
      %v2507 = vsel %vm1047, %v2505, %v2506
      %v2508 = vrot.slane %v1551, 2
      %v2509 = vsel %vm1047, %v2506, %v2508
      %v2510 = vrot.slane %v1552, 2
      %v2511 = vrot.slane %v1553, 2
      %v2512 = vsel %vm1047, %v2510, %v2511
      %v2513 = vrot.slane %v1554, 2
      %v2514 = vsel %vm1047, %v2511, %v2513
      %v2515 = vrot.slane %v1555, 2
      %v2516 = vrot.slane %v1556, 2
      %v2517 = vsel %vm1047, %v2515, %v2516
      %v2518 = vrot.slane %v1557, 2
      %v2519 = vsel %vm1047, %v2516, %v2518
      %v2520 = vrot.slane %v1558, 2
      %v2521 = vrot.slane %v1559, 2
      %v2522 = vsel %vm1047, %v2520, %v2521
      %v2523 = vrot.slane %v1560, 2
      %v2524 = vsel %vm1047, %v2521, %v2523
      %v2525 = vrot.slane %v1561, 2
      %v2526 = vrot.slane %v1562, 2
      %v2527 = vsel %vm1047, %v2525, %v2526
      %v2528 = vrot.slane %v1563, 2
      %v2529 = vsel %vm1047, %v2526, %v2528
      %v2530 = vrot.slane %v1564, 2
      %v2531 = vrot.slane %v1565, 2
      %v2532 = vsel %vm1047, %v2530, %v2531
      %v2533 = vrot.slane %v1566, 2
      %v2534 = vsel %vm1047, %v2531, %v2533
      %v2535 = vrot.slane %v1567, 2
      %v2536 = vrot.slane %v1568, 2
      %v2537 = vsel %vm1047, %v2535, %v2536
      %v2538 = vrot.slane %v1569, 2
      %v2539 = vsel %vm1047, %v2536, %v2538
      %v2540 = vrot.slane %v1570, 2
      %v2541 = vrot.slane %v1571, 2
      %v2542 = vsel %vm1047, %v2540, %v2541
      %v2543 = vrot.slane %v1572, 2
      %v2544 = vsel %vm1047, %v2541, %v2543
      %v2545 = vrot.slane %v1573, 2
      %v2546 = vrot.slane %v1574, 2
      %v2547 = vsel %vm1047, %v2545, %v2546
      %v2548 = vrot.slane %v1575, 2
      %v2549 = vsel %vm1047, %v2546, %v2548
      %v2582 = vpack.c.bf16 %v2474, %v2472
      %v2583 = vpack.c.bf16 %v2479, %v2477
      %v2584 = vpack.c.bf16 %v2484, %v2482
      %v2585 = vpack.c.bf16 %v2489, %v2487
      %v2586 = vpack.c.bf16 %v2494, %v2492
      %v2587 = vpack.c.bf16 %v2499, %v2497
      %v2588 = vpack.c.bf16 %v2504, %v2502
      %v2589 = vpack.c.bf16 %v2509, %v2507
      %v2590 = vpack.c.bf16 %v2514, %v2512
      %v2591 = vpack.c.bf16 %v2519, %v2517
      %v2592 = vpack.c.bf16 %v2524, %v2522
      %v2593 = vpack.c.bf16 %v2529, %v2527
      %v2594 = vpack.c.bf16 %v2534, %v2532
      %v2595 = vpack.c.bf16 %v2539, %v2537
      %v2596 = vpack.c.bf16 %v2544, %v2542
      %v2597 = vpack.c.bf16 %v2549, %v2547
      %s2598 = scalar_lea.vmem %s1, 360
      %v2599 = vld [vmem:[%s2598] sm:$0xff]
      %v2600 = vld [vmem:[%s2598 + $0x8] sm:$0xff]
      %v2601 = vld [vmem:[%s2598 + $0x10] sm:$0xff]
      %v2602 = vld [vmem:[%s2598 + $0x18] sm:$0xff]
      %v2603 = vld [vmem:[%s2598 + $0x20] sm:$0xff]
      %v2604 = vld [vmem:[%s2598 + $0x28] sm:$0xff]
      %v2605 = vld [vmem:[%s2598 + $0x30] sm:$0xff]
      %v2606 = vld [vmem:[%s2598 + $0x38] sm:$0xff]
      %v2607 = vld [vmem:[%s2598 + $0x40] sm:$0xff]
      %v2617 = vunpack.c.l.b16 %v2599
      %v2618 = vunpack.c.h.b16 %v2599
      %v2619 = vunpack.c.l.b16 %v2600
      %v2620 = vunpack.c.h.b16 %v2600
      %v2621 = vunpack.c.l.b16 %v2601
      %v2622 = vunpack.c.h.b16 %v2601
      %v2623 = vunpack.c.l.b16 %v2602
      %v2624 = vunpack.c.h.b16 %v2602
      %v2625 = vunpack.c.l.b16 %v2603
      %v2626 = vunpack.c.h.b16 %v2603
      %v2627 = vunpack.c.l.b16 %v2604
      %v2628 = vunpack.c.h.b16 %v2604
      %v2629 = vunpack.c.l.b16 %v2605
      %v2630 = vunpack.c.h.b16 %v2605
      %v2631 = vunpack.c.l.b16 %v2606
      %v2632 = vunpack.c.h.b16 %v2606
      %v2633 = vunpack.c.l.b16 %v2607
      %v2634 = vunpack.c.h.b16 %v2607
      %v2635 = vpack.c.b16 %v2619, %v2617
      %v2636 = vpack.c.b16 %v2620, %v2618
      %v2637 = vpack.c.b16 %v2623, %v2621
      %v2638 = vpack.c.b16 %v2624, %v2622
      %v2639 = vpack.c.b16 %v2627, %v2625
      %v2640 = vpack.c.b16 %v2628, %v2626
      %v2641 = vpack.c.b16 %v2631, %v2629
      %v2642 = vpack.c.b16 %v2632, %v2630
      %v2643 = vpack.c.b16 %v2633, %v2633
      %v2644 = vpack.c.b16 %v2634, %v2634
      %v2654 = vsel %vm536, %v2582, 0
      %v2657 = vsel %vm536, %v2583, 0
      %v2660 = vsel %vm536, %v2584, 0
      %v2663 = vsel %vm536, %v2585, 0
      %v2666 = vsel %vm536, %v2586, 0
      %v2669 = vsel %vm536, %v2587, 0
      %v2672 = vsel %vm536, %v2588, 0
      %v2675 = vsel %vm536, %v2589, 0
      %v2678 = vsel %vm536, %v2590, 0
      %v2681 = vsel %vm536, %v2591, 0
      %v2684 = vsel %vm536, %v2592, 0
      %v2687 = vsel %vm536, %v2593, 0
      %v2690 = vsel %vm536, %v2594, 0
      %v2693 = vsel %vm536, %v2595, 0
      %v2696 = vsel %vm536, %v2596, 0
      %v2699 = vsel %vm536, %v2597, 0
      %v2702 = vsel %vm585, %v2643, 0
      %v2705 = vsel %vm585, %v2644, 0
      %2707 = vmatpush.bf16.msra.mxu0 0
      %2708 = vmatpush.bf16.msra.mxu0 0
      %2709 = vmatpush.bf16.msra.mxu0 0
      %2710 = vmatpush.bf16.msra.mxu0 %v2702
      %2711 = vmatpush.bf16.msra.mxu0 %v2641
      %2712 = vmatpush.bf16.msra.mxu0 %v2639
      %2713 = vmatpush.bf16.msra.mxu0 %v2637
      %2714 = vmatpush.bf16.msra.mxu0 %v2635
      %2715 = vmatmul.bf16.gmra.mxu0 %v2654
      %v2716 = vpop.f32.mrf.mxu0
      %v2717 = vadd.f32 0.0, %v2716
      %v2718 = vpop.f32.mrf.mxu0
      %v2719 = vadd.f32 0.0, %v2718
      %2720 = vmatmul.bf16.gmra.mxu0 %v2657
      %v2721 = vpop.f32.mrf.mxu0
      %v2722 = vadd.f32 0.0, %v2721
      %v2723 = vpop.f32.mrf.mxu0
      %v2724 = vadd.f32 0.0, %v2723
      %2725 = vmatmul.bf16.gmra.mxu0 %v2660
      %v2726 = vpop.f32.mrf.mxu0
      %v2727 = vadd.f32 0.0, %v2726
      %v2728 = vpop.f32.mrf.mxu0
      %v2729 = vadd.f32 0.0, %v2728
      %2730 = vmatmul.bf16.gmra.mxu0 %v2663
      %v2731 = vpop.f32.mrf.mxu0
      %v2732 = vadd.f32 0.0, %v2731
      %v2733 = vpop.f32.mrf.mxu0
      %v2734 = vadd.f32 0.0, %v2733
      %2735 = vmatmul.bf16.gmra.mxu0 %v2666
      %v2736 = vpop.f32.mrf.mxu0
      %v2737 = vadd.f32 0.0, %v2736
      %v2738 = vpop.f32.mrf.mxu0
      %v2739 = vadd.f32 0.0, %v2738
      %2740 = vmatmul.bf16.gmra.mxu0 %v2669
      %v2741 = vpop.f32.mrf.mxu0
      %v2742 = vadd.f32 0.0, %v2741
      %v2743 = vpop.f32.mrf.mxu0
      %v2744 = vadd.f32 0.0, %v2743
      %2745 = vmatmul.bf16.gmra.mxu0 %v2672
      %v2746 = vpop.f32.mrf.mxu0
      %v2747 = vadd.f32 0.0, %v2746
      %v2748 = vpop.f32.mrf.mxu0
      %v2749 = vadd.f32 0.0, %v2748
      %2750 = vmatmul.bf16.gmra.mxu0 %v2675
      %v2751 = vpop.f32.mrf.mxu0
      %v2752 = vadd.f32 0.0, %v2751
      %v2753 = vpop.f32.mrf.mxu0
      %v2754 = vadd.f32 0.0, %v2753
      %2755 = vmatmul.bf16.gmra.mxu0 %v2678
      %v2756 = vpop.f32.mrf.mxu0
      %v2757 = vadd.f32 0.0, %v2756
      %v2758 = vpop.f32.mrf.mxu0
      %v2759 = vadd.f32 0.0, %v2758
      %2760 = vmatmul.bf16.gmra.mxu0 %v2681
      %v2761 = vpop.f32.mrf.mxu0
      %v2762 = vadd.f32 0.0, %v2761
      %v2763 = vpop.f32.mrf.mxu0
      %v2764 = vadd.f32 0.0, %v2763
      %2765 = vmatmul.bf16.gmra.mxu0 %v2684
      %v2766 = vpop.f32.mrf.mxu0
      %v2767 = vadd.f32 0.0, %v2766
      %v2768 = vpop.f32.mrf.mxu0
      %v2769 = vadd.f32 0.0, %v2768
      %2770 = vmatmul.bf16.gmra.mxu0 %v2687
      %v2771 = vpop.f32.mrf.mxu0
      %v2772 = vadd.f32 0.0, %v2771
      %v2773 = vpop.f32.mrf.mxu0
      %v2774 = vadd.f32 0.0, %v2773
      %2775 = vmatmul.bf16.gmra.mxu0 %v2690
      %v2776 = vpop.f32.mrf.mxu0
      %v2777 = vadd.f32 0.0, %v2776
      %v2778 = vpop.f32.mrf.mxu0
      %v2779 = vadd.f32 0.0, %v2778
      %2780 = vmatmul.bf16.gmra.mxu0 %v2693
      %v2781 = vpop.f32.mrf.mxu0
      %v2782 = vadd.f32 0.0, %v2781
      %v2783 = vpop.f32.mrf.mxu0
      %v2784 = vadd.f32 0.0, %v2783
      %2785 = vmatmul.bf16.gmra.mxu0 %v2696
      %v2786 = vpop.f32.mrf.mxu0
      %v2787 = vadd.f32 0.0, %v2786
      %v2788 = vpop.f32.mrf.mxu0
      %v2789 = vadd.f32 0.0, %v2788
      %2790 = vmatmul.bf16.gmra.mxu0 %v2699
      %v2791 = vpop.f32.mrf.mxu0
      %v2792 = vadd.f32 0.0, %v2791
      %v2793 = vpop.f32.mrf.mxu0
      %v2794 = vadd.f32 0.0, %v2793
      %2795 = vdwg.mxu0
      %2796 = vmatpush.bf16.msra.mxu0 0
      %2797 = vmatpush.bf16.msra.mxu0 0
      %2798 = vmatpush.bf16.msra.mxu0 0
      %2799 = vmatpush.bf16.msra.mxu0 %v2705
      %2800 = vmatpush.bf16.msra.mxu0 %v2642
      %2801 = vmatpush.bf16.msra.mxu0 %v2640
      %2802 = vmatpush.bf16.msra.mxu0 %v2638
      %2803 = vmatpush.bf16.msra.mxu0 %v2636
      %2804 = vmatmul.bf16.gmra.mxu0 %v2654
      %v2805 = vpop.f32.mrf.mxu0
      %v2806 = vadd.f32 0.0, %v2805
      %v2807 = vpop.f32.mrf.mxu0
      %v2808 = vadd.f32 0.0, %v2807
      %2809 = vmatmul.bf16.gmra.mxu0 %v2657
      %v2810 = vpop.f32.mrf.mxu0
      %v2811 = vadd.f32 0.0, %v2810
      %v2812 = vpop.f32.mrf.mxu0
      %v2813 = vadd.f32 0.0, %v2812
      %2814 = vmatmul.bf16.gmra.mxu0 %v2660
      %v2815 = vpop.f32.mrf.mxu0
      %v2816 = vadd.f32 0.0, %v2815
      %v2817 = vpop.f32.mrf.mxu0
      %v2818 = vadd.f32 0.0, %v2817
      %2819 = vmatmul.bf16.gmra.mxu0 %v2663
      %v2820 = vpop.f32.mrf.mxu0
      %v2821 = vadd.f32 0.0, %v2820
      %v2822 = vpop.f32.mrf.mxu0
      %v2823 = vadd.f32 0.0, %v2822
      %2824 = vmatmul.bf16.gmra.mxu0 %v2666
      %v2825 = vpop.f32.mrf.mxu0
      %v2826 = vadd.f32 0.0, %v2825
      %v2827 = vpop.f32.mrf.mxu0
      %v2828 = vadd.f32 0.0, %v2827
      %2829 = vmatmul.bf16.gmra.mxu0 %v2669
      %v2830 = vpop.f32.mrf.mxu0
      %v2831 = vadd.f32 0.0, %v2830
      %v2832 = vpop.f32.mrf.mxu0
      %v2833 = vadd.f32 0.0, %v2832
      %2834 = vmatmul.bf16.gmra.mxu0 %v2672
      %v2835 = vpop.f32.mrf.mxu0
      %v2836 = vadd.f32 0.0, %v2835
      %v2837 = vpop.f32.mrf.mxu0
      %v2838 = vadd.f32 0.0, %v2837
      %2839 = vmatmul.bf16.gmra.mxu0 %v2675
      %v2840 = vpop.f32.mrf.mxu0
      %v2841 = vadd.f32 0.0, %v2840
      %v2842 = vpop.f32.mrf.mxu0
      %v2843 = vadd.f32 0.0, %v2842
      %2844 = vmatmul.bf16.gmra.mxu0 %v2678
      %v2845 = vpop.f32.mrf.mxu0
      %v2846 = vadd.f32 0.0, %v2845
      %v2847 = vpop.f32.mrf.mxu0
      %v2848 = vadd.f32 0.0, %v2847
      %2849 = vmatmul.bf16.gmra.mxu0 %v2681
      %v2850 = vpop.f32.mrf.mxu0
      %v2851 = vadd.f32 0.0, %v2850
      %v2852 = vpop.f32.mrf.mxu0
      %v2853 = vadd.f32 0.0, %v2852
      %2854 = vmatmul.bf16.gmra.mxu0 %v2684
      %v2855 = vpop.f32.mrf.mxu0
      %v2856 = vadd.f32 0.0, %v2855
      %v2857 = vpop.f32.mrf.mxu0
      %v2858 = vadd.f32 0.0, %v2857
      %2859 = vmatmul.bf16.gmra.mxu0 %v2687
      %v2860 = vpop.f32.mrf.mxu0
      %v2861 = vadd.f32 0.0, %v2860
      %v2862 = vpop.f32.mrf.mxu0
      %v2863 = vadd.f32 0.0, %v2862
      %2864 = vmatmul.bf16.gmra.mxu0 %v2690
      %v2865 = vpop.f32.mrf.mxu0
      %v2866 = vadd.f32 0.0, %v2865
      %v2867 = vpop.f32.mrf.mxu0
      %v2868 = vadd.f32 0.0, %v2867
      %2869 = vmatmul.bf16.gmra.mxu0 %v2693
      %v2870 = vpop.f32.mrf.mxu0
      %v2871 = vadd.f32 0.0, %v2870
      %v2872 = vpop.f32.mrf.mxu0
      %v2873 = vadd.f32 0.0, %v2872
      %2874 = vmatmul.bf16.gmra.mxu0 %v2696
      %v2875 = vpop.f32.mrf.mxu0
      %v2876 = vadd.f32 0.0, %v2875
      %v2877 = vpop.f32.mrf.mxu0
      %v2878 = vadd.f32 0.0, %v2877
      %2879 = vmatmul.bf16.gmra.mxu0 %v2699
      %v2880 = vpop.f32.mrf.mxu0
      %v2881 = vadd.f32 0.0, %v2880
      %v2882 = vpop.f32.mrf.mxu0
      %v2883 = vadd.f32 0.0, %v2882
      %2884 = vdwg.mxu0
      %v2885 = vadd.f32 %v2406, %v2717
      %v2886 = vadd.f32 %v2407, %v2806
      %v2887 = vadd.f32 %v2408, %v2719
      %v2888 = vadd.f32 %v2409, %v2808
      %v2889 = vadd.f32 %v2410, %v2722
      %v2890 = vadd.f32 %v2411, %v2811
      %v2891 = vadd.f32 %v2412, %v2724
      %v2892 = vadd.f32 %v2413, %v2813
      %v2893 = vadd.f32 %v2414, %v2727
      %v2894 = vadd.f32 %v2415, %v2816
      %v2895 = vadd.f32 %v2416, %v2729
      %v2896 = vadd.f32 %v2417, %v2818
      %v2897 = vadd.f32 %v2418, %v2732
      %v2898 = vadd.f32 %v2419, %v2821
      %v2899 = vadd.f32 %v2420, %v2734
      %v2900 = vadd.f32 %v2421, %v2823
      %v2901 = vadd.f32 %v2422, %v2737
      %v2902 = vadd.f32 %v2423, %v2826
      %v2903 = vadd.f32 %v2424, %v2739
      %v2904 = vadd.f32 %v2425, %v2828
      %v2905 = vadd.f32 %v2426, %v2742
      %v2906 = vadd.f32 %v2427, %v2831
      %v2907 = vadd.f32 %v2428, %v2744
      %v2908 = vadd.f32 %v2429, %v2833
      %v2909 = vadd.f32 %v2430, %v2747
      %v2910 = vadd.f32 %v2431, %v2836
      %v2911 = vadd.f32 %v2432, %v2749
      %v2912 = vadd.f32 %v2433, %v2838
      %v2913 = vadd.f32 %v2434, %v2752
      %v2914 = vadd.f32 %v2435, %v2841
      %v2915 = vadd.f32 %v2436, %v2754
      %v2916 = vadd.f32 %v2437, %v2843
      %v2917 = vadd.f32 %v2438, %v2757
      %v2918 = vadd.f32 %v2439, %v2846
      %v2919 = vadd.f32 %v2440, %v2759
      %v2920 = vadd.f32 %v2441, %v2848
      %v2921 = vadd.f32 %v2442, %v2762
      %v2922 = vadd.f32 %v2443, %v2851
      %v2923 = vadd.f32 %v2444, %v2764
      %v2924 = vadd.f32 %v2445, %v2853
      %v2925 = vadd.f32 %v2446, %v2767
      %v2926 = vadd.f32 %v2447, %v2856
      %v2927 = vadd.f32 %v2448, %v2769
      %v2928 = vadd.f32 %v2449, %v2858
      %v2929 = vadd.f32 %v2450, %v2772
      %v2930 = vadd.f32 %v2451, %v2861
      %v2931 = vadd.f32 %v2452, %v2774
      %v2932 = vadd.f32 %v2453, %v2863
      %v2933 = vadd.f32 %v2454, %v2777
      %v2934 = vadd.f32 %v2455, %v2866
      %v2935 = vadd.f32 %v2456, %v2779
      %v2936 = vadd.f32 %v2457, %v2868
      %v2937 = vadd.f32 %v2458, %v2782
      %v2938 = vadd.f32 %v2459, %v2871
      %v2939 = vadd.f32 %v2460, %v2784
      %v2940 = vadd.f32 %v2461, %v2873
      %v2941 = vadd.f32 %v2462, %v2787
      %v2942 = vadd.f32 %v2463, %v2876
      %v2943 = vadd.f32 %v2464, %v2789
      %v2944 = vadd.f32 %v2465, %v2878
      %v2945 = vadd.f32 %v2466, %v2792
      %v2946 = vadd.f32 %v2467, %v2881
      %v2947 = vadd.f32 %v2468, %v2794
      %v2948 = vadd.f32 %v2469, %v2883
      %s2949 = scalar_lea.vmem %s211, 48
      %v2950 = vld [vmem:[%s2949] sm:$0xff]
      %v2951 = vld [vmem:[%s2949 + $0x8] sm:$0xff]
      %v2952 = vld [vmem:[%s2949 + $0x10] sm:$0x3]
      %v2953 = vld [vmem:[%s2949 + $0x18] sm:$0xff]
      %v2954 = vld [vmem:[%s2949 + $0x20] sm:$0xff]
      %v2955 = vld [vmem:[%s2949 + $0x28] sm:$0x3]
      %v2956 = vld [vmem:[%s2949 + $0x30] sm:$0xff]
      %v2957 = vld [vmem:[%s2949 + $0x38] sm:$0xff]
      %v2958 = vld [vmem:[%s2949 + $0x40] sm:$0x3]
      %v2959 = vld [vmem:[%s2949 + $0x48] sm:$0xff]
      %v2960 = vld [vmem:[%s2949 + $0x50] sm:$0xff]
      %v2961 = vld [vmem:[%s2949 + $0x58] sm:$0x3]
      %v2962 = vld [vmem:[%s2949 + $0x60] sm:$0xff]
      %v2963 = vld [vmem:[%s2949 + $0x68] sm:$0xff]
      %v2964 = vld [vmem:[%s2949 + $0x70] sm:$0x3]
      %v2965 = vld [vmem:[%s2949 + $0x78] sm:$0xff]
      %v2966 = vld [vmem:[%s2949 + $0x80] sm:$0xff]
      %v2967 = vld [vmem:[%s2949 + $0x88] sm:$0x3]
      %v2968 = vld [vmem:[%s2949 + $0x90] sm:$0xff]
      %v2969 = vld [vmem:[%s2949 + $0x98] sm:$0xff]
      %v2970 = vld [vmem:[%s2949 + $0xa0] sm:$0x3]
      %v2971 = vld [vmem:[%s2949 + $0xa8] sm:$0xff]
      %v2972 = vld [vmem:[%s2949 + $0xb0] sm:$0xff]
      %v2973 = vld [vmem:[%s2949 + $0xb8] sm:$0x3]
      %v2974 = vld [vmem:[%s2949 + $0xc0] sm:$0xff]
      %v2975 = vld [vmem:[%s2949 + $0xc8] sm:$0xff]
      %v2976 = vld [vmem:[%s2949 + $0xd0] sm:$0x3]
      %v2977 = vld [vmem:[%s2949 + $0xd8] sm:$0xff]
      %v2978 = vld [vmem:[%s2949 + $0xe0] sm:$0xff]
      %v2979 = vld [vmem:[%s2949 + $0xe8] sm:$0x3]
      %v2980 = vld [vmem:[%s2949 + $0xf0] sm:$0xff]
      %v2981 = vld [vmem:[%s2949 + $0xf8] sm:$0xff]
      %v2982 = vld [vmem:[%s2949 + $0x100] sm:$0x3]
      %v2983 = vld [vmem:[%s2949 + $0x108] sm:$0xff]
      %v2984 = vld [vmem:[%s2949 + $0x110] sm:$0xff]
      %v2985 = vld [vmem:[%s2949 + $0x118] sm:$0x3]
      %v2986 = vld [vmem:[%s2949 + $0x120] sm:$0xff]
      %v2987 = vld [vmem:[%s2949 + $0x128] sm:$0xff]
      %v2988 = vld [vmem:[%s2949 + $0x130] sm:$0x3]
      %v2989 = vld [vmem:[%s2949 + $0x138] sm:$0xff]
      %v2990 = vld [vmem:[%s2949 + $0x140] sm:$0xff]
      %v2991 = vld [vmem:[%s2949 + $0x148] sm:$0x3]
      %v2992 = vld [vmem:[%s2949 + $0x150] sm:$0xff]
      %v2993 = vld [vmem:[%s2949 + $0x158] sm:$0xff]
      %v2994 = vld [vmem:[%s2949 + $0x160] sm:$0x3]
      %v2995 = vld [vmem:[%s2949 + $0x168] sm:$0xff]
      %v2996 = vld [vmem:[%s2949 + $0x170] sm:$0xff]
      %v2997 = vld [vmem:[%s2949 + $0x178] sm:$0x3]
      %v2998 = vpack.c.bf16 %v2951, %v2950
      %v2999 = vpack.c.bf16 %v2954, %v2953
      %v3000 = vpack.c.bf16 %v2957, %v2956
      %v3001 = vpack.c.bf16 %v2960, %v2959
      %v3002 = vpack.c.bf16 %v2963, %v2962
      %v3003 = vpack.c.bf16 %v2966, %v2965
      %v3004 = vpack.c.bf16 %v2969, %v2968
      %v3005 = vpack.c.bf16 %v2972, %v2971
      %v3006 = vpack.c.bf16 %v2975, %v2974
      %v3007 = vpack.c.bf16 %v2978, %v2977
      %v3008 = vpack.c.bf16 %v2981, %v2980
      %v3009 = vpack.c.bf16 %v2984, %v2983
      %v3010 = vpack.c.bf16 %v2987, %v2986
      %v3011 = vpack.c.bf16 %v2990, %v2989
      %v3012 = vpack.c.bf16 %v2993, %v2992
      %v3013 = vpack.c.bf16 %v2996, %v2995
      %s3014 = scalar_lea.vmem %s1, 432
      %v3015 = vld [vmem:[%s3014] sm:$0xff]
      %v3016 = vld [vmem:[%s3014 + $0x8] sm:$0xff]
      %v3017 = vld [vmem:[%s3014 + $0x10] sm:$0xff]
      %v3018 = vld [vmem:[%s3014 + $0x18] sm:$0xff]
      %v3019 = vld [vmem:[%s3014 + $0x20] sm:$0xff]
      %v3020 = vld [vmem:[%s3014 + $0x28] sm:$0xff]
      %v3021 = vld [vmem:[%s3014 + $0x30] sm:$0xff]
      %v3022 = vld [vmem:[%s3014 + $0x38] sm:$0xff]
      %v3023 = vld [vmem:[%s3014 + $0x40] sm:$0xff]
      %v3033 = vunpack.c.l.b16 %v3015
      %v3034 = vunpack.c.h.b16 %v3015
      %v3035 = vunpack.c.l.b16 %v3016
      %v3036 = vunpack.c.h.b16 %v3016
      %v3037 = vunpack.c.l.b16 %v3017
      %v3038 = vunpack.c.h.b16 %v3017
      %v3039 = vunpack.c.l.b16 %v3018
      %v3040 = vunpack.c.h.b16 %v3018
      %v3041 = vunpack.c.l.b16 %v3019
      %v3042 = vunpack.c.h.b16 %v3019
      %v3043 = vunpack.c.l.b16 %v3020
      %v3044 = vunpack.c.h.b16 %v3020
      %v3045 = vunpack.c.l.b16 %v3021
      %v3046 = vunpack.c.h.b16 %v3021
      %v3047 = vunpack.c.l.b16 %v3022
      %v3048 = vunpack.c.h.b16 %v3022
      %v3049 = vunpack.c.l.b16 %v3023
      %v3050 = vunpack.c.h.b16 %v3023
      %v3051 = vpack.c.b16 %v3035, %v3033
      %v3052 = vpack.c.b16 %v3036, %v3034
      %v3053 = vpack.c.b16 %v3039, %v3037
      %v3054 = vpack.c.b16 %v3040, %v3038
      %v3055 = vpack.c.b16 %v3043, %v3041
      %v3056 = vpack.c.b16 %v3044, %v3042
      %v3057 = vpack.c.b16 %v3047, %v3045
      %v3058 = vpack.c.b16 %v3048, %v3046
      %v3059 = vpack.c.b16 %v3049, %v3049
      %v3060 = vpack.c.b16 %v3050, %v3050
      %v3070 = vsel %vm536, %v2998, 0
      %v3073 = vsel %vm536, %v2999, 0
      %v3076 = vsel %vm536, %v3000, 0
      %v3079 = vsel %vm536, %v3001, 0
      %v3082 = vsel %vm536, %v3002, 0
      %v3085 = vsel %vm536, %v3003, 0
      %v3088 = vsel %vm536, %v3004, 0
      %v3091 = vsel %vm536, %v3005, 0
      %v3094 = vsel %vm536, %v3006, 0
      %v3097 = vsel %vm536, %v3007, 0
      %v3100 = vsel %vm536, %v3008, 0
      %v3103 = vsel %vm536, %v3009, 0
      %v3106 = vsel %vm536, %v3010, 0
      %v3109 = vsel %vm536, %v3011, 0
      %v3112 = vsel %vm536, %v3012, 0
      %v3115 = vsel %vm536, %v3013, 0
      %v3118 = vsel %vm585, %v3059, 0
      %v3121 = vsel %vm585, %v3060, 0
      %3123 = vmatpush.bf16.msra.mxu0 0
      %3124 = vmatpush.bf16.msra.mxu0 0
      %3125 = vmatpush.bf16.msra.mxu0 0
      %3126 = vmatpush.bf16.msra.mxu0 %v3118
      %3127 = vmatpush.bf16.msra.mxu0 %v3057
      %3128 = vmatpush.bf16.msra.mxu0 %v3055
      %3129 = vmatpush.bf16.msra.mxu0 %v3053
      %3130 = vmatpush.bf16.msra.mxu0 %v3051
      %3131 = vmatmul.bf16.gmra.mxu0 %v3070
      %v3132 = vpop.f32.mrf.mxu0
      %v3133 = vadd.f32 0.0, %v3132
      %v3134 = vpop.f32.mrf.mxu0
      %v3135 = vadd.f32 0.0, %v3134
      %3136 = vmatmul.bf16.gmra.mxu0 %v3073
      %v3137 = vpop.f32.mrf.mxu0
      %v3138 = vadd.f32 0.0, %v3137
      %v3139 = vpop.f32.mrf.mxu0
      %v3140 = vadd.f32 0.0, %v3139
      %3141 = vmatmul.bf16.gmra.mxu0 %v3076
      %v3142 = vpop.f32.mrf.mxu0
      %v3143 = vadd.f32 0.0, %v3142
      %v3144 = vpop.f32.mrf.mxu0
      %v3145 = vadd.f32 0.0, %v3144
      %3146 = vmatmul.bf16.gmra.mxu0 %v3079
      %v3147 = vpop.f32.mrf.mxu0
      %v3148 = vadd.f32 0.0, %v3147
      %v3149 = vpop.f32.mrf.mxu0
      %v3150 = vadd.f32 0.0, %v3149
      %3151 = vmatmul.bf16.gmra.mxu0 %v3082
      %v3152 = vpop.f32.mrf.mxu0
      %v3153 = vadd.f32 0.0, %v3152
      %v3154 = vpop.f32.mrf.mxu0
      %v3155 = vadd.f32 0.0, %v3154
      %3156 = vmatmul.bf16.gmra.mxu0 %v3085
      %v3157 = vpop.f32.mrf.mxu0
      %v3158 = vadd.f32 0.0, %v3157
      %v3159 = vpop.f32.mrf.mxu0
      %v3160 = vadd.f32 0.0, %v3159
      %3161 = vmatmul.bf16.gmra.mxu0 %v3088
      %v3162 = vpop.f32.mrf.mxu0
      %v3163 = vadd.f32 0.0, %v3162
      %v3164 = vpop.f32.mrf.mxu0
      %v3165 = vadd.f32 0.0, %v3164
      %3166 = vmatmul.bf16.gmra.mxu0 %v3091
      %v3167 = vpop.f32.mrf.mxu0
      %v3168 = vadd.f32 0.0, %v3167
      %v3169 = vpop.f32.mrf.mxu0
      %v3170 = vadd.f32 0.0, %v3169
      %3171 = vmatmul.bf16.gmra.mxu0 %v3094
      %v3172 = vpop.f32.mrf.mxu0
      %v3173 = vadd.f32 0.0, %v3172
      %v3174 = vpop.f32.mrf.mxu0
      %v3175 = vadd.f32 0.0, %v3174
      %3176 = vmatmul.bf16.gmra.mxu0 %v3097
      %v3177 = vpop.f32.mrf.mxu0
      %v3178 = vadd.f32 0.0, %v3177
      %v3179 = vpop.f32.mrf.mxu0
      %v3180 = vadd.f32 0.0, %v3179
      %3181 = vmatmul.bf16.gmra.mxu0 %v3100
      %v3182 = vpop.f32.mrf.mxu0
      %v3183 = vadd.f32 0.0, %v3182
      %v3184 = vpop.f32.mrf.mxu0
      %v3185 = vadd.f32 0.0, %v3184
      %3186 = vmatmul.bf16.gmra.mxu0 %v3103
      %v3187 = vpop.f32.mrf.mxu0
      %v3188 = vadd.f32 0.0, %v3187
      %v3189 = vpop.f32.mrf.mxu0
      %v3190 = vadd.f32 0.0, %v3189
      %3191 = vmatmul.bf16.gmra.mxu0 %v3106
      %v3192 = vpop.f32.mrf.mxu0
      %v3193 = vadd.f32 0.0, %v3192
      %v3194 = vpop.f32.mrf.mxu0
      %v3195 = vadd.f32 0.0, %v3194
      %3196 = vmatmul.bf16.gmra.mxu0 %v3109
      %v3197 = vpop.f32.mrf.mxu0
      %v3198 = vadd.f32 0.0, %v3197
      %v3199 = vpop.f32.mrf.mxu0
      %v3200 = vadd.f32 0.0, %v3199
      %3201 = vmatmul.bf16.gmra.mxu0 %v3112
      %v3202 = vpop.f32.mrf.mxu0
      %v3203 = vadd.f32 0.0, %v3202
      %v3204 = vpop.f32.mrf.mxu0
      %v3205 = vadd.f32 0.0, %v3204
      %3206 = vmatmul.bf16.gmra.mxu0 %v3115
      %v3207 = vpop.f32.mrf.mxu0
      %v3208 = vadd.f32 0.0, %v3207
      %v3209 = vpop.f32.mrf.mxu0
      %v3210 = vadd.f32 0.0, %v3209
      %3211 = vdwg.mxu0
      %3212 = vmatpush.bf16.msra.mxu0 0
      %3213 = vmatpush.bf16.msra.mxu0 0
      %3214 = vmatpush.bf16.msra.mxu0 0
      %3215 = vmatpush.bf16.msra.mxu0 %v3121
      %3216 = vmatpush.bf16.msra.mxu0 %v3058
      %3217 = vmatpush.bf16.msra.mxu0 %v3056
      %3218 = vmatpush.bf16.msra.mxu0 %v3054
      %3219 = vmatpush.bf16.msra.mxu0 %v3052
      %3220 = vmatmul.bf16.gmra.mxu0 %v3070
      %v3221 = vpop.f32.mrf.mxu0
      %v3222 = vadd.f32 0.0, %v3221
      %v3223 = vpop.f32.mrf.mxu0
      %v3224 = vadd.f32 0.0, %v3223
      %3225 = vmatmul.bf16.gmra.mxu0 %v3073
      %v3226 = vpop.f32.mrf.mxu0
      %v3227 = vadd.f32 0.0, %v3226
      %v3228 = vpop.f32.mrf.mxu0
      %v3229 = vadd.f32 0.0, %v3228
      %3230 = vmatmul.bf16.gmra.mxu0 %v3076
      %v3231 = vpop.f32.mrf.mxu0
      %v3232 = vadd.f32 0.0, %v3231
      %v3233 = vpop.f32.mrf.mxu0
      %v3234 = vadd.f32 0.0, %v3233
      %3235 = vmatmul.bf16.gmra.mxu0 %v3079
      %v3236 = vpop.f32.mrf.mxu0
      %v3237 = vadd.f32 0.0, %v3236
      %v3238 = vpop.f32.mrf.mxu0
      %v3239 = vadd.f32 0.0, %v3238
      %3240 = vmatmul.bf16.gmra.mxu0 %v3082
      %v3241 = vpop.f32.mrf.mxu0
      %v3242 = vadd.f32 0.0, %v3241
      %v3243 = vpop.f32.mrf.mxu0
      %v3244 = vadd.f32 0.0, %v3243
      %3245 = vmatmul.bf16.gmra.mxu0 %v3085
      %v3246 = vpop.f32.mrf.mxu0
      %v3247 = vadd.f32 0.0, %v3246
      %v3248 = vpop.f32.mrf.mxu0
      %v3249 = vadd.f32 0.0, %v3248
      %3250 = vmatmul.bf16.gmra.mxu0 %v3088
      %v3251 = vpop.f32.mrf.mxu0
      %v3252 = vadd.f32 0.0, %v3251
      %v3253 = vpop.f32.mrf.mxu0
      %v3254 = vadd.f32 0.0, %v3253
      %3255 = vmatmul.bf16.gmra.mxu0 %v3091
      %v3256 = vpop.f32.mrf.mxu0
      %v3257 = vadd.f32 0.0, %v3256
      %v3258 = vpop.f32.mrf.mxu0
      %v3259 = vadd.f32 0.0, %v3258
      %3260 = vmatmul.bf16.gmra.mxu0 %v3094
      %v3261 = vpop.f32.mrf.mxu0
      %v3262 = vadd.f32 0.0, %v3261
      %v3263 = vpop.f32.mrf.mxu0
      %v3264 = vadd.f32 0.0, %v3263
      %3265 = vmatmul.bf16.gmra.mxu0 %v3097
      %v3266 = vpop.f32.mrf.mxu0
      %v3267 = vadd.f32 0.0, %v3266
      %v3268 = vpop.f32.mrf.mxu0
      %v3269 = vadd.f32 0.0, %v3268
      %3270 = vmatmul.bf16.gmra.mxu0 %v3100
      %v3271 = vpop.f32.mrf.mxu0
      %v3272 = vadd.f32 0.0, %v3271
      %v3273 = vpop.f32.mrf.mxu0
      %v3274 = vadd.f32 0.0, %v3273
      %3275 = vmatmul.bf16.gmra.mxu0 %v3103
      %v3276 = vpop.f32.mrf.mxu0
      %v3277 = vadd.f32 0.0, %v3276
      %v3278 = vpop.f32.mrf.mxu0
      %v3279 = vadd.f32 0.0, %v3278
      %3280 = vmatmul.bf16.gmra.mxu0 %v3106
      %v3281 = vpop.f32.mrf.mxu0
      %v3282 = vadd.f32 0.0, %v3281
      %v3283 = vpop.f32.mrf.mxu0
      %v3284 = vadd.f32 0.0, %v3283
      %3285 = vmatmul.bf16.gmra.mxu0 %v3109
      %v3286 = vpop.f32.mrf.mxu0
      %v3287 = vadd.f32 0.0, %v3286
      %v3288 = vpop.f32.mrf.mxu0
      %v3289 = vadd.f32 0.0, %v3288
      %3290 = vmatmul.bf16.gmra.mxu0 %v3112
      %v3291 = vpop.f32.mrf.mxu0
      %v3292 = vadd.f32 0.0, %v3291
      %v3293 = vpop.f32.mrf.mxu0
      %v3294 = vadd.f32 0.0, %v3293
      %3295 = vmatmul.bf16.gmra.mxu0 %v3115
      %v3296 = vpop.f32.mrf.mxu0
      %v3297 = vadd.f32 0.0, %v3296
      %v3298 = vpop.f32.mrf.mxu0
      %v3299 = vadd.f32 0.0, %v3298
      %3300 = vdwg.mxu0
      %v3301 = vadd.f32 %v2885, %v3133
      %v3302 = vadd.f32 %v2886, %v3222
      %v3303 = vadd.f32 %v2887, %v3135
      %v3304 = vadd.f32 %v2888, %v3224
      %v3305 = vadd.f32 %v2889, %v3138
      %v3306 = vadd.f32 %v2890, %v3227
      %v3307 = vadd.f32 %v2891, %v3140
      %v3308 = vadd.f32 %v2892, %v3229
      %v3309 = vadd.f32 %v2893, %v3143
      %v3310 = vadd.f32 %v2894, %v3232
      %v3311 = vadd.f32 %v2895, %v3145
      %v3312 = vadd.f32 %v2896, %v3234
      %v3313 = vadd.f32 %v2897, %v3148
      %v3314 = vadd.f32 %v2898, %v3237
      %v3315 = vadd.f32 %v2899, %v3150
      %v3316 = vadd.f32 %v2900, %v3239
      %v3317 = vadd.f32 %v2901, %v3153
      %v3318 = vadd.f32 %v2902, %v3242
      %v3319 = vadd.f32 %v2903, %v3155
      %v3320 = vadd.f32 %v2904, %v3244
      %v3321 = vadd.f32 %v2905, %v3158
      %v3322 = vadd.f32 %v2906, %v3247
      %v3323 = vadd.f32 %v2907, %v3160
      %v3324 = vadd.f32 %v2908, %v3249
      %v3325 = vadd.f32 %v2909, %v3163
      %v3326 = vadd.f32 %v2910, %v3252
      %v3327 = vadd.f32 %v2911, %v3165
      %v3328 = vadd.f32 %v2912, %v3254
      %v3329 = vadd.f32 %v2913, %v3168
      %v3330 = vadd.f32 %v2914, %v3257
      %v3331 = vadd.f32 %v2915, %v3170
      %v3332 = vadd.f32 %v2916, %v3259
      %v3333 = vadd.f32 %v2917, %v3173
      %v3334 = vadd.f32 %v2918, %v3262
      %v3335 = vadd.f32 %v2919, %v3175
      %v3336 = vadd.f32 %v2920, %v3264
      %v3337 = vadd.f32 %v2921, %v3178
      %v3338 = vadd.f32 %v2922, %v3267
      %v3339 = vadd.f32 %v2923, %v3180
      %v3340 = vadd.f32 %v2924, %v3269
      %v3341 = vadd.f32 %v2925, %v3183
      %v3342 = vadd.f32 %v2926, %v3272
      %v3343 = vadd.f32 %v2927, %v3185
      %v3344 = vadd.f32 %v2928, %v3274
      %v3345 = vadd.f32 %v2929, %v3188
      %v3346 = vadd.f32 %v2930, %v3277
      %v3347 = vadd.f32 %v2931, %v3190
      %v3348 = vadd.f32 %v2932, %v3279
      %v3349 = vadd.f32 %v2933, %v3193
      %v3350 = vadd.f32 %v2934, %v3282
      %v3351 = vadd.f32 %v2935, %v3195
      %v3352 = vadd.f32 %v2936, %v3284
      %v3353 = vadd.f32 %v2937, %v3198
      %v3354 = vadd.f32 %v2938, %v3287
      %v3355 = vadd.f32 %v2939, %v3200
      %v3356 = vadd.f32 %v2940, %v3289
      %v3357 = vadd.f32 %v2941, %v3203
      %v3358 = vadd.f32 %v2942, %v3292
      %v3359 = vadd.f32 %v2943, %v3205
      %v3360 = vadd.f32 %v2944, %v3294
      %v3361 = vadd.f32 %v2945, %v3208
      %v3362 = vadd.f32 %v2946, %v3297
      %v3363 = vadd.f32 %v2947, %v3210
      %v3364 = vadd.f32 %v2948, %v3299
      %v3413 = vrot.slane %v2950, 1
      %v3414 = vrot.slane %v2951, 1
      %v3415 = vsel %vm352, %v3413, %v3414
      %v3416 = vrot.slane %v2952, 1
      %v3417 = vsel %vm352, %v3414, %v3416
      %v3418 = vrot.slane %v2953, 1
      %v3419 = vrot.slane %v2954, 1
      %v3420 = vsel %vm352, %v3418, %v3419
      %v3421 = vrot.slane %v2955, 1
      %v3422 = vsel %vm352, %v3419, %v3421
      %v3423 = vrot.slane %v2956, 1
      %v3424 = vrot.slane %v2957, 1
      %v3425 = vsel %vm352, %v3423, %v3424
      %v3426 = vrot.slane %v2958, 1
      %v3427 = vsel %vm352, %v3424, %v3426
      %v3428 = vrot.slane %v2959, 1
      %v3429 = vrot.slane %v2960, 1
      %v3430 = vsel %vm352, %v3428, %v3429
      %v3431 = vrot.slane %v2961, 1
      %v3432 = vsel %vm352, %v3429, %v3431
      %v3433 = vrot.slane %v2962, 1
      %v3434 = vrot.slane %v2963, 1
      %v3435 = vsel %vm352, %v3433, %v3434
      %v3436 = vrot.slane %v2964, 1
      %v3437 = vsel %vm352, %v3434, %v3436
      %v3438 = vrot.slane %v2965, 1
      %v3439 = vrot.slane %v2966, 1
      %v3440 = vsel %vm352, %v3438, %v3439
      %v3441 = vrot.slane %v2967, 1
      %v3442 = vsel %vm352, %v3439, %v3441
      %v3443 = vrot.slane %v2968, 1
      %v3444 = vrot.slane %v2969, 1
      %v3445 = vsel %vm352, %v3443, %v3444
      %v3446 = vrot.slane %v2970, 1
      %v3447 = vsel %vm352, %v3444, %v3446
      %v3448 = vrot.slane %v2971, 1
      %v3449 = vrot.slane %v2972, 1
      %v3450 = vsel %vm352, %v3448, %v3449
      %v3451 = vrot.slane %v2973, 1
      %v3452 = vsel %vm352, %v3449, %v3451
      %v3453 = vrot.slane %v2974, 1
      %v3454 = vrot.slane %v2975, 1
      %v3455 = vsel %vm352, %v3453, %v3454
      %v3456 = vrot.slane %v2976, 1
      %v3457 = vsel %vm352, %v3454, %v3456
      %v3458 = vrot.slane %v2977, 1
      %v3459 = vrot.slane %v2978, 1
      %v3460 = vsel %vm352, %v3458, %v3459
      %v3461 = vrot.slane %v2979, 1
      %v3462 = vsel %vm352, %v3459, %v3461
      %v3463 = vrot.slane %v2980, 1
      %v3464 = vrot.slane %v2981, 1
      %v3465 = vsel %vm352, %v3463, %v3464
      %v3466 = vrot.slane %v2982, 1
      %v3467 = vsel %vm352, %v3464, %v3466
      %v3468 = vrot.slane %v2983, 1
      %v3469 = vrot.slane %v2984, 1
      %v3470 = vsel %vm352, %v3468, %v3469
      %v3471 = vrot.slane %v2985, 1
      %v3472 = vsel %vm352, %v3469, %v3471
      %v3473 = vrot.slane %v2986, 1
      %v3474 = vrot.slane %v2987, 1
      %v3475 = vsel %vm352, %v3473, %v3474
      %v3476 = vrot.slane %v2988, 1
      %v3477 = vsel %vm352, %v3474, %v3476
      %v3478 = vrot.slane %v2989, 1
      %v3479 = vrot.slane %v2990, 1
      %v3480 = vsel %vm352, %v3478, %v3479
      %v3481 = vrot.slane %v2991, 1
      %v3482 = vsel %vm352, %v3479, %v3481
      %v3483 = vrot.slane %v2992, 1
      %v3484 = vrot.slane %v2993, 1
      %v3485 = vsel %vm352, %v3483, %v3484
      %v3486 = vrot.slane %v2994, 1
      %v3487 = vsel %vm352, %v3484, %v3486
      %v3488 = vrot.slane %v2995, 1
      %v3489 = vrot.slane %v2996, 1
      %v3490 = vsel %vm352, %v3488, %v3489
      %v3491 = vrot.slane %v2997, 1
      %v3492 = vsel %vm352, %v3489, %v3491
      %v3525 = vpack.c.bf16 %v3417, %v3415
      %v3526 = vpack.c.bf16 %v3422, %v3420
      %v3527 = vpack.c.bf16 %v3427, %v3425
      %v3528 = vpack.c.bf16 %v3432, %v3430
      %v3529 = vpack.c.bf16 %v3437, %v3435
      %v3530 = vpack.c.bf16 %v3442, %v3440
      %v3531 = vpack.c.bf16 %v3447, %v3445
      %v3532 = vpack.c.bf16 %v3452, %v3450
      %v3533 = vpack.c.bf16 %v3457, %v3455
      %v3534 = vpack.c.bf16 %v3462, %v3460
      %v3535 = vpack.c.bf16 %v3467, %v3465
      %v3536 = vpack.c.bf16 %v3472, %v3470
      %v3537 = vpack.c.bf16 %v3477, %v3475
      %v3538 = vpack.c.bf16 %v3482, %v3480
      %v3539 = vpack.c.bf16 %v3487, %v3485
      %v3540 = vpack.c.bf16 %v3492, %v3490
      %s3541 = scalar_lea.vmem %s1, 504
      %v3542 = vld [vmem:[%s3541] sm:$0xff]
      %v3543 = vld [vmem:[%s3541 + $0x8] sm:$0xff]
      %v3544 = vld [vmem:[%s3541 + $0x10] sm:$0xff]
      %v3545 = vld [vmem:[%s3541 + $0x18] sm:$0xff]
      %v3546 = vld [vmem:[%s3541 + $0x20] sm:$0xff]
      %v3547 = vld [vmem:[%s3541 + $0x28] sm:$0xff]
      %v3548 = vld [vmem:[%s3541 + $0x30] sm:$0xff]
      %v3549 = vld [vmem:[%s3541 + $0x38] sm:$0xff]
      %v3550 = vld [vmem:[%s3541 + $0x40] sm:$0xff]
      %v3560 = vunpack.c.l.b16 %v3542
      %v3561 = vunpack.c.h.b16 %v3542
      %v3562 = vunpack.c.l.b16 %v3543
      %v3563 = vunpack.c.h.b16 %v3543
      %v3564 = vunpack.c.l.b16 %v3544
      %v3565 = vunpack.c.h.b16 %v3544
      %v3566 = vunpack.c.l.b16 %v3545
      %v3567 = vunpack.c.h.b16 %v3545
      %v3568 = vunpack.c.l.b16 %v3546
      %v3569 = vunpack.c.h.b16 %v3546
      %v3570 = vunpack.c.l.b16 %v3547
      %v3571 = vunpack.c.h.b16 %v3547
      %v3572 = vunpack.c.l.b16 %v3548
      %v3573 = vunpack.c.h.b16 %v3548
      %v3574 = vunpack.c.l.b16 %v3549
      %v3575 = vunpack.c.h.b16 %v3549
      %v3576 = vunpack.c.l.b16 %v3550
      %v3577 = vunpack.c.h.b16 %v3550
      %v3578 = vpack.c.b16 %v3562, %v3560
      %v3579 = vpack.c.b16 %v3563, %v3561
      %v3580 = vpack.c.b16 %v3566, %v3564
      %v3581 = vpack.c.b16 %v3567, %v3565
      %v3582 = vpack.c.b16 %v3570, %v3568
      %v3583 = vpack.c.b16 %v3571, %v3569
      %v3584 = vpack.c.b16 %v3574, %v3572
      %v3585 = vpack.c.b16 %v3575, %v3573
      %v3586 = vpack.c.b16 %v3576, %v3576
      %v3587 = vpack.c.b16 %v3577, %v3577
      %v3597 = vsel %vm536, %v3525, 0
      %v3600 = vsel %vm536, %v3526, 0
      %v3603 = vsel %vm536, %v3527, 0
      %v3606 = vsel %vm536, %v3528, 0
      %v3609 = vsel %vm536, %v3529, 0
      %v3612 = vsel %vm536, %v3530, 0
      %v3615 = vsel %vm536, %v3531, 0
      %v3618 = vsel %vm536, %v3532, 0
      %v3621 = vsel %vm536, %v3533, 0
      %v3624 = vsel %vm536, %v3534, 0
      %v3627 = vsel %vm536, %v3535, 0
      %v3630 = vsel %vm536, %v3536, 0
      %v3633 = vsel %vm536, %v3537, 0
      %v3636 = vsel %vm536, %v3538, 0
      %v3639 = vsel %vm536, %v3539, 0
      %v3642 = vsel %vm536, %v3540, 0
      %v3645 = vsel %vm585, %v3586, 0
      %v3648 = vsel %vm585, %v3587, 0
      %3650 = vmatpush.bf16.msra.mxu0 0
      %3651 = vmatpush.bf16.msra.mxu0 0
      %3652 = vmatpush.bf16.msra.mxu0 0
      %3653 = vmatpush.bf16.msra.mxu0 %v3645
      %3654 = vmatpush.bf16.msra.mxu0 %v3584
      %3655 = vmatpush.bf16.msra.mxu0 %v3582
      %3656 = vmatpush.bf16.msra.mxu0 %v3580
      %3657 = vmatpush.bf16.msra.mxu0 %v3578
      %3658 = vmatmul.bf16.gmra.mxu0 %v3597
      %v3659 = vpop.f32.mrf.mxu0
      %v3660 = vadd.f32 0.0, %v3659
      %v3661 = vpop.f32.mrf.mxu0
      %v3662 = vadd.f32 0.0, %v3661
      %3663 = vmatmul.bf16.gmra.mxu0 %v3600
      %v3664 = vpop.f32.mrf.mxu0
      %v3665 = vadd.f32 0.0, %v3664
      %v3666 = vpop.f32.mrf.mxu0
      %v3667 = vadd.f32 0.0, %v3666
      %3668 = vmatmul.bf16.gmra.mxu0 %v3603
      %v3669 = vpop.f32.mrf.mxu0
      %v3670 = vadd.f32 0.0, %v3669
      %v3671 = vpop.f32.mrf.mxu0
      %v3672 = vadd.f32 0.0, %v3671
      %3673 = vmatmul.bf16.gmra.mxu0 %v3606
      %v3674 = vpop.f32.mrf.mxu0
      %v3675 = vadd.f32 0.0, %v3674
      %v3676 = vpop.f32.mrf.mxu0
      %v3677 = vadd.f32 0.0, %v3676
      %3678 = vmatmul.bf16.gmra.mxu0 %v3609
      %v3679 = vpop.f32.mrf.mxu0
      %v3680 = vadd.f32 0.0, %v3679
      %v3681 = vpop.f32.mrf.mxu0
      %v3682 = vadd.f32 0.0, %v3681
      %3683 = vmatmul.bf16.gmra.mxu0 %v3612
      %v3684 = vpop.f32.mrf.mxu0
      %v3685 = vadd.f32 0.0, %v3684
      %v3686 = vpop.f32.mrf.mxu0
      %v3687 = vadd.f32 0.0, %v3686
      %3688 = vmatmul.bf16.gmra.mxu0 %v3615
      %v3689 = vpop.f32.mrf.mxu0
      %v3690 = vadd.f32 0.0, %v3689
      %v3691 = vpop.f32.mrf.mxu0
      %v3692 = vadd.f32 0.0, %v3691
      %3693 = vmatmul.bf16.gmra.mxu0 %v3618
      %v3694 = vpop.f32.mrf.mxu0
      %v3695 = vadd.f32 0.0, %v3694
      %v3696 = vpop.f32.mrf.mxu0
      %v3697 = vadd.f32 0.0, %v3696
      %3698 = vmatmul.bf16.gmra.mxu0 %v3621
      %v3699 = vpop.f32.mrf.mxu0
      %v3700 = vadd.f32 0.0, %v3699
      %v3701 = vpop.f32.mrf.mxu0
      %v3702 = vadd.f32 0.0, %v3701
      %3703 = vmatmul.bf16.gmra.mxu0 %v3624
      %v3704 = vpop.f32.mrf.mxu0
      %v3705 = vadd.f32 0.0, %v3704
      %v3706 = vpop.f32.mrf.mxu0
      %v3707 = vadd.f32 0.0, %v3706
      %3708 = vmatmul.bf16.gmra.mxu0 %v3627
      %v3709 = vpop.f32.mrf.mxu0
      %v3710 = vadd.f32 0.0, %v3709
      %v3711 = vpop.f32.mrf.mxu0
      %v3712 = vadd.f32 0.0, %v3711
      %3713 = vmatmul.bf16.gmra.mxu0 %v3630
      %v3714 = vpop.f32.mrf.mxu0
      %v3715 = vadd.f32 0.0, %v3714
      %v3716 = vpop.f32.mrf.mxu0
      %v3717 = vadd.f32 0.0, %v3716
      %3718 = vmatmul.bf16.gmra.mxu0 %v3633
      %v3719 = vpop.f32.mrf.mxu0
      %v3720 = vadd.f32 0.0, %v3719
      %v3721 = vpop.f32.mrf.mxu0
      %v3722 = vadd.f32 0.0, %v3721
      %3723 = vmatmul.bf16.gmra.mxu0 %v3636
      %v3724 = vpop.f32.mrf.mxu0
      %v3725 = vadd.f32 0.0, %v3724
      %v3726 = vpop.f32.mrf.mxu0
      %v3727 = vadd.f32 0.0, %v3726
      %3728 = vmatmul.bf16.gmra.mxu0 %v3639
      %v3729 = vpop.f32.mrf.mxu0
      %v3730 = vadd.f32 0.0, %v3729
      %v3731 = vpop.f32.mrf.mxu0
      %v3732 = vadd.f32 0.0, %v3731
      %3733 = vmatmul.bf16.gmra.mxu0 %v3642
      %v3734 = vpop.f32.mrf.mxu0
      %v3735 = vadd.f32 0.0, %v3734
      %v3736 = vpop.f32.mrf.mxu0
      %v3737 = vadd.f32 0.0, %v3736
      %3738 = vdwg.mxu0
      %3739 = vmatpush.bf16.msra.mxu0 0
      %3740 = vmatpush.bf16.msra.mxu0 0
      %3741 = vmatpush.bf16.msra.mxu0 0
      %3742 = vmatpush.bf16.msra.mxu0 %v3648
      %3743 = vmatpush.bf16.msra.mxu0 %v3585
      %3744 = vmatpush.bf16.msra.mxu0 %v3583
      %3745 = vmatpush.bf16.msra.mxu0 %v3581
      %3746 = vmatpush.bf16.msra.mxu0 %v3579
      %3747 = vmatmul.bf16.gmra.mxu0 %v3597
      %v3748 = vpop.f32.mrf.mxu0
      %v3749 = vadd.f32 0.0, %v3748
      %v3750 = vpop.f32.mrf.mxu0
      %v3751 = vadd.f32 0.0, %v3750
      %3752 = vmatmul.bf16.gmra.mxu0 %v3600
      %v3753 = vpop.f32.mrf.mxu0
      %v3754 = vadd.f32 0.0, %v3753
      %v3755 = vpop.f32.mrf.mxu0
      %v3756 = vadd.f32 0.0, %v3755
      %3757 = vmatmul.bf16.gmra.mxu0 %v3603
      %v3758 = vpop.f32.mrf.mxu0
      %v3759 = vadd.f32 0.0, %v3758
      %v3760 = vpop.f32.mrf.mxu0
      %v3761 = vadd.f32 0.0, %v3760
      %3762 = vmatmul.bf16.gmra.mxu0 %v3606
      %v3763 = vpop.f32.mrf.mxu0
      %v3764 = vadd.f32 0.0, %v3763
      %v3765 = vpop.f32.mrf.mxu0
      %v3766 = vadd.f32 0.0, %v3765
      %3767 = vmatmul.bf16.gmra.mxu0 %v3609
      %v3768 = vpop.f32.mrf.mxu0
      %v3769 = vadd.f32 0.0, %v3768
      %v3770 = vpop.f32.mrf.mxu0
      %v3771 = vadd.f32 0.0, %v3770
      %3772 = vmatmul.bf16.gmra.mxu0 %v3612
      %v3773 = vpop.f32.mrf.mxu0
      %v3774 = vadd.f32 0.0, %v3773
      %v3775 = vpop.f32.mrf.mxu0
      %v3776 = vadd.f32 0.0, %v3775
      %3777 = vmatmul.bf16.gmra.mxu0 %v3615
      %v3778 = vpop.f32.mrf.mxu0
      %v3779 = vadd.f32 0.0, %v3778
      %v3780 = vpop.f32.mrf.mxu0
      %v3781 = vadd.f32 0.0, %v3780
      %3782 = vmatmul.bf16.gmra.mxu0 %v3618
      %v3783 = vpop.f32.mrf.mxu0
      %v3784 = vadd.f32 0.0, %v3783
      %v3785 = vpop.f32.mrf.mxu0
      %v3786 = vadd.f32 0.0, %v3785
      %3787 = vmatmul.bf16.gmra.mxu0 %v3621
      %v3788 = vpop.f32.mrf.mxu0
      %v3789 = vadd.f32 0.0, %v3788
      %v3790 = vpop.f32.mrf.mxu0
      %v3791 = vadd.f32 0.0, %v3790
      %3792 = vmatmul.bf16.gmra.mxu0 %v3624
      %v3793 = vpop.f32.mrf.mxu0
      %v3794 = vadd.f32 0.0, %v3793
      %v3795 = vpop.f32.mrf.mxu0
      %v3796 = vadd.f32 0.0, %v3795
      %3797 = vmatmul.bf16.gmra.mxu0 %v3627
      %v3798 = vpop.f32.mrf.mxu0
      %v3799 = vadd.f32 0.0, %v3798
      %v3800 = vpop.f32.mrf.mxu0
      %v3801 = vadd.f32 0.0, %v3800
      %3802 = vmatmul.bf16.gmra.mxu0 %v3630
      %v3803 = vpop.f32.mrf.mxu0
      %v3804 = vadd.f32 0.0, %v3803
      %v3805 = vpop.f32.mrf.mxu0
      %v3806 = vadd.f32 0.0, %v3805
      %3807 = vmatmul.bf16.gmra.mxu0 %v3633
      %v3808 = vpop.f32.mrf.mxu0
      %v3809 = vadd.f32 0.0, %v3808
      %v3810 = vpop.f32.mrf.mxu0
      %v3811 = vadd.f32 0.0, %v3810
      %3812 = vmatmul.bf16.gmra.mxu0 %v3636
      %v3813 = vpop.f32.mrf.mxu0
      %v3814 = vadd.f32 0.0, %v3813
      %v3815 = vpop.f32.mrf.mxu0
      %v3816 = vadd.f32 0.0, %v3815
      %3817 = vmatmul.bf16.gmra.mxu0 %v3639
      %v3818 = vpop.f32.mrf.mxu0
      %v3819 = vadd.f32 0.0, %v3818
      %v3820 = vpop.f32.mrf.mxu0
      %v3821 = vadd.f32 0.0, %v3820
      %3822 = vmatmul.bf16.gmra.mxu0 %v3642
      %v3823 = vpop.f32.mrf.mxu0
      %v3824 = vadd.f32 0.0, %v3823
      %v3825 = vpop.f32.mrf.mxu0
      %v3826 = vadd.f32 0.0, %v3825
      %3827 = vdwg.mxu0
      %v3828 = vadd.f32 %v3301, %v3660
      %v3829 = vadd.f32 %v3302, %v3749
      %v3830 = vadd.f32 %v3303, %v3662
      %v3831 = vadd.f32 %v3304, %v3751
      %v3832 = vadd.f32 %v3305, %v3665
      %v3833 = vadd.f32 %v3306, %v3754
      %v3834 = vadd.f32 %v3307, %v3667
      %v3835 = vadd.f32 %v3308, %v3756
      %v3836 = vadd.f32 %v3309, %v3670
      %v3837 = vadd.f32 %v3310, %v3759
      %v3838 = vadd.f32 %v3311, %v3672
      %v3839 = vadd.f32 %v3312, %v3761
      %v3840 = vadd.f32 %v3313, %v3675
      %v3841 = vadd.f32 %v3314, %v3764
      %v3842 = vadd.f32 %v3315, %v3677
      %v3843 = vadd.f32 %v3316, %v3766
      %v3844 = vadd.f32 %v3317, %v3680
      %v3845 = vadd.f32 %v3318, %v3769
      %v3846 = vadd.f32 %v3319, %v3682
      %v3847 = vadd.f32 %v3320, %v3771
      %v3848 = vadd.f32 %v3321, %v3685
      %v3849 = vadd.f32 %v3322, %v3774
      %v3850 = vadd.f32 %v3323, %v3687
      %v3851 = vadd.f32 %v3324, %v3776
      %v3852 = vadd.f32 %v3325, %v3690
      %v3853 = vadd.f32 %v3326, %v3779
      %v3854 = vadd.f32 %v3327, %v3692
      %v3855 = vadd.f32 %v3328, %v3781
      %v3856 = vadd.f32 %v3329, %v3695
      %v3857 = vadd.f32 %v3330, %v3784
      %v3858 = vadd.f32 %v3331, %v3697
      %v3859 = vadd.f32 %v3332, %v3786
      %v3860 = vadd.f32 %v3333, %v3700
      %v3861 = vadd.f32 %v3334, %v3789
      %v3862 = vadd.f32 %v3335, %v3702
      %v3863 = vadd.f32 %v3336, %v3791
      %v3864 = vadd.f32 %v3337, %v3705
      %v3865 = vadd.f32 %v3338, %v3794
      %v3866 = vadd.f32 %v3339, %v3707
      %v3867 = vadd.f32 %v3340, %v3796
      %v3868 = vadd.f32 %v3341, %v3710
      %v3869 = vadd.f32 %v3342, %v3799
      %v3870 = vadd.f32 %v3343, %v3712
      %v3871 = vadd.f32 %v3344, %v3801
      %v3872 = vadd.f32 %v3345, %v3715
      %v3873 = vadd.f32 %v3346, %v3804
      %v3874 = vadd.f32 %v3347, %v3717
      %v3875 = vadd.f32 %v3348, %v3806
      %v3876 = vadd.f32 %v3349, %v3720
      %v3877 = vadd.f32 %v3350, %v3809
      %v3878 = vadd.f32 %v3351, %v3722
      %v3879 = vadd.f32 %v3352, %v3811
      %v3880 = vadd.f32 %v3353, %v3725
      %v3881 = vadd.f32 %v3354, %v3814
      %v3882 = vadd.f32 %v3355, %v3727
      %v3883 = vadd.f32 %v3356, %v3816
      %v3884 = vadd.f32 %v3357, %v3730
      %v3885 = vadd.f32 %v3358, %v3819
      %v3886 = vadd.f32 %v3359, %v3732
      %v3887 = vadd.f32 %v3360, %v3821
      %v3888 = vadd.f32 %v3361, %v3735
      %v3889 = vadd.f32 %v3362, %v3824
      %v3890 = vadd.f32 %v3363, %v3737
      %v3891 = vadd.f32 %v3364, %v3826
      %v3892 = vrot.slane %v2950, 2
      %v3893 = vrot.slane %v2951, 2
      %v3894 = vsel %vm1047, %v3892, %v3893
      %v3895 = vrot.slane %v2952, 2
      %v3896 = vsel %vm1047, %v3893, %v3895
      %v3897 = vrot.slane %v2953, 2
      %v3898 = vrot.slane %v2954, 2
      %v3899 = vsel %vm1047, %v3897, %v3898
      %v3900 = vrot.slane %v2955, 2
      %v3901 = vsel %vm1047, %v3898, %v3900
      %v3902 = vrot.slane %v2956, 2
      %v3903 = vrot.slane %v2957, 2
      %v3904 = vsel %vm1047, %v3902, %v3903
      %v3905 = vrot.slane %v2958, 2
      %v3906 = vsel %vm1047, %v3903, %v3905
      %v3907 = vrot.slane %v2959, 2
      %v3908 = vrot.slane %v2960, 2
      %v3909 = vsel %vm1047, %v3907, %v3908
      %v3910 = vrot.slane %v2961, 2
      %v3911 = vsel %vm1047, %v3908, %v3910
      %v3912 = vrot.slane %v2962, 2
      %v3913 = vrot.slane %v2963, 2
      %v3914 = vsel %vm1047, %v3912, %v3913
      %v3915 = vrot.slane %v2964, 2
      %v3916 = vsel %vm1047, %v3913, %v3915
      %v3917 = vrot.slane %v2965, 2
      %v3918 = vrot.slane %v2966, 2
      %v3919 = vsel %vm1047, %v3917, %v3918
      %v3920 = vrot.slane %v2967, 2
      %v3921 = vsel %vm1047, %v3918, %v3920
      %v3922 = vrot.slane %v2968, 2
      %v3923 = vrot.slane %v2969, 2
      %v3924 = vsel %vm1047, %v3922, %v3923
      %v3925 = vrot.slane %v2970, 2
      %v3926 = vsel %vm1047, %v3923, %v3925
      %v3927 = vrot.slane %v2971, 2
      %v3928 = vrot.slane %v2972, 2
      %v3929 = vsel %vm1047, %v3927, %v3928
      %v3930 = vrot.slane %v2973, 2
      %v3931 = vsel %vm1047, %v3928, %v3930
      %v3932 = vrot.slane %v2974, 2
      %v3933 = vrot.slane %v2975, 2
      %v3934 = vsel %vm1047, %v3932, %v3933
      %v3935 = vrot.slane %v2976, 2
      %v3936 = vsel %vm1047, %v3933, %v3935
      %v3937 = vrot.slane %v2977, 2
      %v3938 = vrot.slane %v2978, 2
      %v3939 = vsel %vm1047, %v3937, %v3938
      %v3940 = vrot.slane %v2979, 2
      %v3941 = vsel %vm1047, %v3938, %v3940
      %v3942 = vrot.slane %v2980, 2
      %v3943 = vrot.slane %v2981, 2
      %v3944 = vsel %vm1047, %v3942, %v3943
      %v3945 = vrot.slane %v2982, 2
      %v3946 = vsel %vm1047, %v3943, %v3945
      %v3947 = vrot.slane %v2983, 2
      %v3948 = vrot.slane %v2984, 2
      %v3949 = vsel %vm1047, %v3947, %v3948
      %v3950 = vrot.slane %v2985, 2
      %v3951 = vsel %vm1047, %v3948, %v3950
      %v3952 = vrot.slane %v2986, 2
      %v3953 = vrot.slane %v2987, 2
      %v3954 = vsel %vm1047, %v3952, %v3953
      %v3955 = vrot.slane %v2988, 2
      %v3956 = vsel %vm1047, %v3953, %v3955
      %v3957 = vrot.slane %v2989, 2
      %v3958 = vrot.slane %v2990, 2
      %v3959 = vsel %vm1047, %v3957, %v3958
      %v3960 = vrot.slane %v2991, 2
      %v3961 = vsel %vm1047, %v3958, %v3960
      %v3962 = vrot.slane %v2992, 2
      %v3963 = vrot.slane %v2993, 2
      %v3964 = vsel %vm1047, %v3962, %v3963
      %v3965 = vrot.slane %v2994, 2
      %v3966 = vsel %vm1047, %v3963, %v3965
      %v3967 = vrot.slane %v2995, 2
      %v3968 = vrot.slane %v2996, 2
      %v3969 = vsel %vm1047, %v3967, %v3968
      %v3970 = vrot.slane %v2997, 2
      %v3971 = vsel %vm1047, %v3968, %v3970
      %v4004 = vpack.c.bf16 %v3896, %v3894
      %v4005 = vpack.c.bf16 %v3901, %v3899
      %v4006 = vpack.c.bf16 %v3906, %v3904
      %v4007 = vpack.c.bf16 %v3911, %v3909
      %v4008 = vpack.c.bf16 %v3916, %v3914
      %v4009 = vpack.c.bf16 %v3921, %v3919
      %v4010 = vpack.c.bf16 %v3926, %v3924
      %v4011 = vpack.c.bf16 %v3931, %v3929
      %v4012 = vpack.c.bf16 %v3936, %v3934
      %v4013 = vpack.c.bf16 %v3941, %v3939
      %v4014 = vpack.c.bf16 %v3946, %v3944
      %v4015 = vpack.c.bf16 %v3951, %v3949
      %v4016 = vpack.c.bf16 %v3956, %v3954
      %v4017 = vpack.c.bf16 %v3961, %v3959
      %v4018 = vpack.c.bf16 %v3966, %v3964
      %v4019 = vpack.c.bf16 %v3971, %v3969
      %s4020 = scalar_lea.vmem %s1, 576
      %v4021 = vld [vmem:[%s4020] sm:$0xff]
      %v4022 = vld [vmem:[%s4020 + $0x8] sm:$0xff]
      %v4023 = vld [vmem:[%s4020 + $0x10] sm:$0xff]
      %v4024 = vld [vmem:[%s4020 + $0x18] sm:$0xff]
      %v4025 = vld [vmem:[%s4020 + $0x20] sm:$0xff]
      %v4026 = vld [vmem:[%s4020 + $0x28] sm:$0xff]
      %v4027 = vld [vmem:[%s4020 + $0x30] sm:$0xff]
      %v4028 = vld [vmem:[%s4020 + $0x38] sm:$0xff]
      %v4029 = vld [vmem:[%s4020 + $0x40] sm:$0xff]
      %v4039 = vunpack.c.l.b16 %v4021
      %v4040 = vunpack.c.h.b16 %v4021
      %v4041 = vunpack.c.l.b16 %v4022
      %v4042 = vunpack.c.h.b16 %v4022
      %v4043 = vunpack.c.l.b16 %v4023
      %v4044 = vunpack.c.h.b16 %v4023
      %v4045 = vunpack.c.l.b16 %v4024
      %v4046 = vunpack.c.h.b16 %v4024
      %v4047 = vunpack.c.l.b16 %v4025
      %v4048 = vunpack.c.h.b16 %v4025
      %v4049 = vunpack.c.l.b16 %v4026
      %v4050 = vunpack.c.h.b16 %v4026
      %v4051 = vunpack.c.l.b16 %v4027
      %v4052 = vunpack.c.h.b16 %v4027
      %v4053 = vunpack.c.l.b16 %v4028
      %v4054 = vunpack.c.h.b16 %v4028
      %v4055 = vunpack.c.l.b16 %v4029
      %v4056 = vunpack.c.h.b16 %v4029
      %v4057 = vpack.c.b16 %v4041, %v4039
      %v4058 = vpack.c.b16 %v4042, %v4040
      %v4059 = vpack.c.b16 %v4045, %v4043
      %v4060 = vpack.c.b16 %v4046, %v4044
      %v4061 = vpack.c.b16 %v4049, %v4047
      %v4062 = vpack.c.b16 %v4050, %v4048
      %v4063 = vpack.c.b16 %v4053, %v4051
      %v4064 = vpack.c.b16 %v4054, %v4052
      %v4065 = vpack.c.b16 %v4055, %v4055
      %v4066 = vpack.c.b16 %v4056, %v4056
      %v4076 = vsel %vm536, %v4004, 0
      %v4079 = vsel %vm536, %v4005, 0
      %v4082 = vsel %vm536, %v4006, 0
      %v4085 = vsel %vm536, %v4007, 0
      %v4088 = vsel %vm536, %v4008, 0
      %v4091 = vsel %vm536, %v4009, 0
      %v4094 = vsel %vm536, %v4010, 0
      %v4097 = vsel %vm536, %v4011, 0
      %v4100 = vsel %vm536, %v4012, 0
      %v4103 = vsel %vm536, %v4013, 0
      %v4106 = vsel %vm536, %v4014, 0
      %v4109 = vsel %vm536, %v4015, 0
      %v4112 = vsel %vm536, %v4016, 0
      %v4115 = vsel %vm536, %v4017, 0
      %v4118 = vsel %vm536, %v4018, 0
      %v4121 = vsel %vm536, %v4019, 0
      %v4124 = vsel %vm585, %v4065, 0
      %v4127 = vsel %vm585, %v4066, 0
      %4129 = vmatpush.bf16.msra.mxu0 0
      %4130 = vmatpush.bf16.msra.mxu0 0
      %4131 = vmatpush.bf16.msra.mxu0 0
      %4132 = vmatpush.bf16.msra.mxu0 %v4124
      %4133 = vmatpush.bf16.msra.mxu0 %v4063
      %4134 = vmatpush.bf16.msra.mxu0 %v4061
      %4135 = vmatpush.bf16.msra.mxu0 %v4059
      %4136 = vmatpush.bf16.msra.mxu0 %v4057
      %4137 = vmatmul.bf16.gmra.mxu0 %v4076
      %v4138 = vpop.f32.mrf.mxu0
      %v4139 = vadd.f32 0.0, %v4138
      %v4140 = vpop.f32.mrf.mxu0
      %v4141 = vadd.f32 0.0, %v4140
      %4142 = vmatmul.bf16.gmra.mxu0 %v4079
      %v4143 = vpop.f32.mrf.mxu0
      %v4144 = vadd.f32 0.0, %v4143
      %v4145 = vpop.f32.mrf.mxu0
      %v4146 = vadd.f32 0.0, %v4145
      %4147 = vmatmul.bf16.gmra.mxu0 %v4082
      %v4148 = vpop.f32.mrf.mxu0
      %v4149 = vadd.f32 0.0, %v4148
      %v4150 = vpop.f32.mrf.mxu0
      %v4151 = vadd.f32 0.0, %v4150
      %4152 = vmatmul.bf16.gmra.mxu0 %v4085
      %v4153 = vpop.f32.mrf.mxu0
      %v4154 = vadd.f32 0.0, %v4153
      %v4155 = vpop.f32.mrf.mxu0
      %v4156 = vadd.f32 0.0, %v4155
      %4157 = vmatmul.bf16.gmra.mxu0 %v4088
      %v4158 = vpop.f32.mrf.mxu0
      %v4159 = vadd.f32 0.0, %v4158
      %v4160 = vpop.f32.mrf.mxu0
      %v4161 = vadd.f32 0.0, %v4160
      %4162 = vmatmul.bf16.gmra.mxu0 %v4091
      %v4163 = vpop.f32.mrf.mxu0
      %v4164 = vadd.f32 0.0, %v4163
      %v4165 = vpop.f32.mrf.mxu0
      %v4166 = vadd.f32 0.0, %v4165
      %4167 = vmatmul.bf16.gmra.mxu0 %v4094
      %v4168 = vpop.f32.mrf.mxu0
      %v4169 = vadd.f32 0.0, %v4168
      %v4170 = vpop.f32.mrf.mxu0
      %v4171 = vadd.f32 0.0, %v4170
      %4172 = vmatmul.bf16.gmra.mxu0 %v4097
      %v4173 = vpop.f32.mrf.mxu0
      %v4174 = vadd.f32 0.0, %v4173
      %v4175 = vpop.f32.mrf.mxu0
      %v4176 = vadd.f32 0.0, %v4175
      %4177 = vmatmul.bf16.gmra.mxu0 %v4100
      %v4178 = vpop.f32.mrf.mxu0
      %v4179 = vadd.f32 0.0, %v4178
      %v4180 = vpop.f32.mrf.mxu0
      %v4181 = vadd.f32 0.0, %v4180
      %4182 = vmatmul.bf16.gmra.mxu0 %v4103
      %v4183 = vpop.f32.mrf.mxu0
      %v4184 = vadd.f32 0.0, %v4183
      %v4185 = vpop.f32.mrf.mxu0
      %v4186 = vadd.f32 0.0, %v4185
      %4187 = vmatmul.bf16.gmra.mxu0 %v4106
      %v4188 = vpop.f32.mrf.mxu0
      %v4189 = vadd.f32 0.0, %v4188
      %v4190 = vpop.f32.mrf.mxu0
      %v4191 = vadd.f32 0.0, %v4190
      %4192 = vmatmul.bf16.gmra.mxu0 %v4109
      %v4193 = vpop.f32.mrf.mxu0
      %v4194 = vadd.f32 0.0, %v4193
      %v4195 = vpop.f32.mrf.mxu0
      %v4196 = vadd.f32 0.0, %v4195
      %4197 = vmatmul.bf16.gmra.mxu0 %v4112
      %v4198 = vpop.f32.mrf.mxu0
      %v4199 = vadd.f32 0.0, %v4198
      %v4200 = vpop.f32.mrf.mxu0
      %v4201 = vadd.f32 0.0, %v4200
      %4202 = vmatmul.bf16.gmra.mxu0 %v4115
      %v4203 = vpop.f32.mrf.mxu0
      %v4204 = vadd.f32 0.0, %v4203
      %v4205 = vpop.f32.mrf.mxu0
      %v4206 = vadd.f32 0.0, %v4205
      %4207 = vmatmul.bf16.gmra.mxu0 %v4118
      %v4208 = vpop.f32.mrf.mxu0
      %v4209 = vadd.f32 0.0, %v4208
      %v4210 = vpop.f32.mrf.mxu0
      %v4211 = vadd.f32 0.0, %v4210
      %4212 = vmatmul.bf16.gmra.mxu0 %v4121
      %v4213 = vpop.f32.mrf.mxu0
      %v4214 = vadd.f32 0.0, %v4213
      %v4215 = vpop.f32.mrf.mxu0
      %v4216 = vadd.f32 0.0, %v4215
      %4217 = vdwg.mxu0
      %4218 = vmatpush.bf16.msra.mxu0 0
      %4219 = vmatpush.bf16.msra.mxu0 0
      %4220 = vmatpush.bf16.msra.mxu0 0
      %4221 = vmatpush.bf16.msra.mxu0 %v4127
      %4222 = vmatpush.bf16.msra.mxu0 %v4064
      %4223 = vmatpush.bf16.msra.mxu0 %v4062
      %4224 = vmatpush.bf16.msra.mxu0 %v4060
      %4225 = vmatpush.bf16.msra.mxu0 %v4058
      %4226 = vmatmul.bf16.gmra.mxu0 %v4076
      %v4227 = vpop.f32.mrf.mxu0
      %v4228 = vadd.f32 0.0, %v4227
      %v4229 = vpop.f32.mrf.mxu0
      %v4230 = vadd.f32 0.0, %v4229
      %4231 = vmatmul.bf16.gmra.mxu0 %v4079
      %v4232 = vpop.f32.mrf.mxu0
      %v4233 = vadd.f32 0.0, %v4232
      %v4234 = vpop.f32.mrf.mxu0
      %v4235 = vadd.f32 0.0, %v4234
      %4236 = vmatmul.bf16.gmra.mxu0 %v4082
      %v4237 = vpop.f32.mrf.mxu0
      %v4238 = vadd.f32 0.0, %v4237
      %v4239 = vpop.f32.mrf.mxu0
      %v4240 = vadd.f32 0.0, %v4239
      %4241 = vmatmul.bf16.gmra.mxu0 %v4085
      %v4242 = vpop.f32.mrf.mxu0
      %v4243 = vadd.f32 0.0, %v4242
      %v4244 = vpop.f32.mrf.mxu0
      %v4245 = vadd.f32 0.0, %v4244
      %4246 = vmatmul.bf16.gmra.mxu0 %v4088
      %v4247 = vpop.f32.mrf.mxu0
      %v4248 = vadd.f32 0.0, %v4247
      %v4249 = vpop.f32.mrf.mxu0
      %v4250 = vadd.f32 0.0, %v4249
      %4251 = vmatmul.bf16.gmra.mxu0 %v4091
      %v4252 = vpop.f32.mrf.mxu0
      %v4253 = vadd.f32 0.0, %v4252
      %v4254 = vpop.f32.mrf.mxu0
      %v4255 = vadd.f32 0.0, %v4254
      %4256 = vmatmul.bf16.gmra.mxu0 %v4094
      %v4257 = vpop.f32.mrf.mxu0
      %v4258 = vadd.f32 0.0, %v4257
      %v4259 = vpop.f32.mrf.mxu0
      %v4260 = vadd.f32 0.0, %v4259
      %4261 = vmatmul.bf16.gmra.mxu0 %v4097
      %v4262 = vpop.f32.mrf.mxu0
      %v4263 = vadd.f32 0.0, %v4262
      %v4264 = vpop.f32.mrf.mxu0
      %v4265 = vadd.f32 0.0, %v4264
      %4266 = vmatmul.bf16.gmra.mxu0 %v4100
      %v4267 = vpop.f32.mrf.mxu0
      %v4268 = vadd.f32 0.0, %v4267
      %v4269 = vpop.f32.mrf.mxu0
      %v4270 = vadd.f32 0.0, %v4269
      %4271 = vmatmul.bf16.gmra.mxu0 %v4103
      %v4272 = vpop.f32.mrf.mxu0
      %v4273 = vadd.f32 0.0, %v4272
      %v4274 = vpop.f32.mrf.mxu0
      %v4275 = vadd.f32 0.0, %v4274
      %4276 = vmatmul.bf16.gmra.mxu0 %v4106
      %v4277 = vpop.f32.mrf.mxu0
      %v4278 = vadd.f32 0.0, %v4277
      %v4279 = vpop.f32.mrf.mxu0
      %v4280 = vadd.f32 0.0, %v4279
      %4281 = vmatmul.bf16.gmra.mxu0 %v4109
      %v4282 = vpop.f32.mrf.mxu0
      %v4283 = vadd.f32 0.0, %v4282
      %v4284 = vpop.f32.mrf.mxu0
      %v4285 = vadd.f32 0.0, %v4284
      %4286 = vmatmul.bf16.gmra.mxu0 %v4112
      %v4287 = vpop.f32.mrf.mxu0
      %v4288 = vadd.f32 0.0, %v4287
      %v4289 = vpop.f32.mrf.mxu0
      %v4290 = vadd.f32 0.0, %v4289
      %4291 = vmatmul.bf16.gmra.mxu0 %v4115
      %v4292 = vpop.f32.mrf.mxu0
      %v4293 = vadd.f32 0.0, %v4292
      %v4294 = vpop.f32.mrf.mxu0
      %v4295 = vadd.f32 0.0, %v4294
      %4296 = vmatmul.bf16.gmra.mxu0 %v4118
      %v4297 = vpop.f32.mrf.mxu0
      %v4298 = vadd.f32 0.0, %v4297
      %v4299 = vpop.f32.mrf.mxu0
      %v4300 = vadd.f32 0.0, %v4299
      %4301 = vmatmul.bf16.gmra.mxu0 %v4121
      %v4302 = vpop.f32.mrf.mxu0
      %v4303 = vadd.f32 0.0, %v4302
      %v4304 = vpop.f32.mrf.mxu0
      %v4305 = vadd.f32 0.0, %v4304
      %4306 = vdwg.mxu0
      %v4307 = vadd.f32 %v3828, %v4139
      %v4308 = vadd.f32 %v3829, %v4228
      %v4309 = vadd.f32 %v3830, %v4141
      %v4310 = vadd.f32 %v3831, %v4230
      %v4311 = vadd.f32 %v3832, %v4144
      %v4312 = vadd.f32 %v3833, %v4233
      %v4313 = vadd.f32 %v3834, %v4146
      %v4314 = vadd.f32 %v3835, %v4235
      %v4315 = vadd.f32 %v3836, %v4149
      %v4316 = vadd.f32 %v3837, %v4238
      %v4317 = vadd.f32 %v3838, %v4151
      %v4318 = vadd.f32 %v3839, %v4240
      %v4319 = vadd.f32 %v3840, %v4154
      %v4320 = vadd.f32 %v3841, %v4243
      %v4321 = vadd.f32 %v3842, %v4156
      %v4322 = vadd.f32 %v3843, %v4245
      %v4323 = vadd.f32 %v3844, %v4159
      %v4324 = vadd.f32 %v3845, %v4248
      %v4325 = vadd.f32 %v3846, %v4161
      %v4326 = vadd.f32 %v3847, %v4250
      %v4327 = vadd.f32 %v3848, %v4164
      %v4328 = vadd.f32 %v3849, %v4253
      %v4329 = vadd.f32 %v3850, %v4166
      %v4330 = vadd.f32 %v3851, %v4255
      %v4331 = vadd.f32 %v3852, %v4169
      %v4332 = vadd.f32 %v3853, %v4258
      %v4333 = vadd.f32 %v3854, %v4171
      %v4334 = vadd.f32 %v3855, %v4260
      %v4335 = vadd.f32 %v3856, %v4174
      %v4336 = vadd.f32 %v3857, %v4263
      %v4337 = vadd.f32 %v3858, %v4176
      %v4338 = vadd.f32 %v3859, %v4265
      %v4339 = vadd.f32 %v3860, %v4179
      %v4340 = vadd.f32 %v3861, %v4268
      %v4341 = vadd.f32 %v3862, %v4181
      %v4342 = vadd.f32 %v3863, %v4270
      %v4343 = vadd.f32 %v3864, %v4184
      %v4344 = vadd.f32 %v3865, %v4273
      %v4345 = vadd.f32 %v3866, %v4186
      %v4346 = vadd.f32 %v3867, %v4275
      %v4347 = vadd.f32 %v3868, %v4189
      %v4348 = vadd.f32 %v3869, %v4278
      %v4349 = vadd.f32 %v3870, %v4191
      %v4350 = vadd.f32 %v3871, %v4280
      %v4351 = vadd.f32 %v3872, %v4194
      %v4352 = vadd.f32 %v3873, %v4283
      %v4353 = vadd.f32 %v3874, %v4196
      %v4354 = vadd.f32 %v3875, %v4285
      %v4355 = vadd.f32 %v3876, %v4199
      %v4356 = vadd.f32 %v3877, %v4288
      %v4357 = vadd.f32 %v3878, %v4201
      %v4358 = vadd.f32 %v3879, %v4290
      %v4359 = vadd.f32 %v3880, %v4204
      %v4360 = vadd.f32 %v3881, %v4293
      %v4361 = vadd.f32 %v3882, %v4206
      %v4362 = vadd.f32 %v3883, %v4295
      %v4363 = vadd.f32 %v3884, %v4209
      %v4364 = vadd.f32 %v3885, %v4298
      %v4365 = vadd.f32 %v3886, %v4211
      %v4366 = vadd.f32 %v3887, %v4300
      %v4367 = vadd.f32 %v3888, %v4214
      %v4368 = vadd.f32 %v3889, %v4303
      %v4369 = vadd.f32 %v3890, %v4216
      %v4370 = vadd.f32 %v3891, %v4305
      %v4371 = vpack.c.bf16 %v4308, %v4307
      %v4372 = vpack.c.bf16 %v4310, %v4309
      %v4373 = vpack.c.bf16 %v4312, %v4311
      %v4374 = vpack.c.bf16 %v4314, %v4313
      %v4375 = vpack.c.bf16 %v4316, %v4315
      %v4376 = vpack.c.bf16 %v4318, %v4317
      %v4377 = vpack.c.bf16 %v4320, %v4319
      %v4378 = vpack.c.bf16 %v4322, %v4321
      %v4379 = vpack.c.bf16 %v4324, %v4323
      %v4380 = vpack.c.bf16 %v4326, %v4325
      %v4381 = vpack.c.bf16 %v4328, %v4327
      %v4382 = vpack.c.bf16 %v4330, %v4329
      %v4383 = vpack.c.bf16 %v4332, %v4331
      %v4384 = vpack.c.bf16 %v4334, %v4333
      %v4385 = vpack.c.bf16 %v4336, %v4335
      %v4386 = vpack.c.bf16 %v4338, %v4337
      %v4387 = vpack.c.bf16 %v4340, %v4339
      %v4388 = vpack.c.bf16 %v4342, %v4341
      %v4389 = vpack.c.bf16 %v4344, %v4343
      %v4390 = vpack.c.bf16 %v4346, %v4345
      %v4391 = vpack.c.bf16 %v4348, %v4347
      %v4392 = vpack.c.bf16 %v4350, %v4349
      %v4393 = vpack.c.bf16 %v4352, %v4351
      %v4394 = vpack.c.bf16 %v4354, %v4353
      %v4395 = vpack.c.bf16 %v4356, %v4355
      %v4396 = vpack.c.bf16 %v4358, %v4357
      %v4397 = vpack.c.bf16 %v4360, %v4359
      %v4398 = vpack.c.bf16 %v4362, %v4361
      %v4399 = vpack.c.bf16 %v4364, %v4363
      %v4400 = vpack.c.bf16 %v4366, %v4365
      %v4401 = vpack.c.bf16 %v4368, %v4367
      %v4402 = vpack.c.bf16 %v4370, %v4369
      %4403 = vst [vmem:[%s220] sm:$0xff] %v4371
      %4404 = vst [vmem:[%s220 + $0x8] sm:$0xff] %v4372
      %4405 = vst [vmem:[%s220 + $0x10] sm:$0xff] %v4373
      %4406 = vst [vmem:[%s220 + $0x18] sm:$0xff] %v4374
      %4407 = vst [vmem:[%s220 + $0x20] sm:$0xff] %v4375
      %4408 = vst [vmem:[%s220 + $0x28] sm:$0xff] %v4376
      %4409 = vst [vmem:[%s220 + $0x30] sm:$0xff] %v4377
      %4410 = vst [vmem:[%s220 + $0x38] sm:$0xff] %v4378
      %4411 = vst [vmem:[%s220 + $0x40] sm:$0xff] %v4379
      %4412 = vst [vmem:[%s220 + $0x48] sm:$0xff] %v4380
      %4413 = vst [vmem:[%s220 + $0x50] sm:$0xff] %v4381
      %4414 = vst [vmem:[%s220 + $0x58] sm:$0xff] %v4382
      %4415 = vst [vmem:[%s220 + $0x60] sm:$0xff] %v4383
      %4416 = vst [vmem:[%s220 + $0x68] sm:$0xff] %v4384
      %4417 = vst [vmem:[%s220 + $0x70] sm:$0xff] %v4385
      %4418 = vst [vmem:[%s220 + $0x78] sm:$0xff] %v4386
      %4419 = vst [vmem:[%s220 + $0x80] sm:$0xff] %v4387
      %4420 = vst [vmem:[%s220 + $0x88] sm:$0xff] %v4388
      %4421 = vst [vmem:[%s220 + $0x90] sm:$0xff] %v4389
      %4422 = vst [vmem:[%s220 + $0x98] sm:$0xff] %v4390
      %4423 = vst [vmem:[%s220 + $0xa0] sm:$0xff] %v4391
      %4424 = vst [vmem:[%s220 + $0xa8] sm:$0xff] %v4392
      %4425 = vst [vmem:[%s220 + $0xb0] sm:$0xff] %v4393
      %4426 = vst [vmem:[%s220 + $0xb8] sm:$0xff] %v4394
      %4427 = vst [vmem:[%s220 + $0xc0] sm:$0xff] %v4395
      %4428 = vst [vmem:[%s220 + $0xc8] sm:$0xff] %v4396
      %4429 = vst [vmem:[%s220 + $0xd0] sm:$0xff] %v4397
      %4430 = vst [vmem:[%s220 + $0xd8] sm:$0xff] %v4398
      %4431 = vst [vmem:[%s220 + $0xe0] sm:$0xff] %v4399
      %4432 = vst [vmem:[%s220 + $0xe8] sm:$0xff] %v4400
      %4433 = vst [vmem:[%s220 + $0xf0] sm:$0xff] %v4401
      %4434 = vst [vmem:[%s220 + $0xf8] sm:$0xff] %v4402
      %v4435 = vadd.f32 %v4307, %v4309
      %v4436 = vadd.f32 %v4435, %v4311
      %v4437 = vadd.f32 %v4436, %v4313
      %v4438 = vadd.f32 %v4437, %v4315
      %v4439 = vadd.f32 %v4438, %v4317
      %v4440 = vadd.f32 %v4439, %v4319
      %v4441 = vadd.f32 %v4440, %v4321
      %v4442 = vadd.f32 %v4441, %v4323
      %v4443 = vadd.f32 %v4442, %v4325
      %v4444 = vadd.f32 %v4443, %v4327
      %v4445 = vadd.f32 %v4444, %v4329
      %v4446 = vadd.f32 %v4445, %v4331
      %v4447 = vadd.f32 %v4446, %v4333
      %v4448 = vadd.f32 %v4447, %v4335
      %v4449 = vadd.f32 %v4448, %v4337
      %v4450 = vadd.f32 %v4449, %v4339
      %v4451 = vadd.f32 %v4450, %v4341
      %v4452 = vadd.f32 %v4451, %v4343
      %v4453 = vadd.f32 %v4452, %v4345
      %v4454 = vadd.f32 %v4453, %v4347
      %v4455 = vadd.f32 %v4454, %v4349
      %v4456 = vadd.f32 %v4455, %v4351
      %v4457 = vadd.f32 %v4456, %v4353
      %v4458 = vadd.f32 %v4457, %v4355
      %v4459 = vadd.f32 %v4458, %v4357
      %v4460 = vadd.f32 %v4459, %v4359
      %v4461 = vadd.f32 %v4460, %v4361
      %v4462 = vadd.f32 %v4461, %v4363
      %v4463 = vadd.f32 %v4462, %v4365
      %v4464 = vadd.f32 %v4463, %v4367
      %v4465 = vadd.f32 %v4464, %v4369
      %v4466 = vrot.slane %v4465, 4
      %v4467 = vadd.f32 %v4465, %v4466
      %v4468 = vrot.slane %v4467, 2
      %v4469 = vadd.f32 %v4467, %v4468
      %v4470 = vrot.slane %v4469, 1
      %v4471 = vadd.f32 %v4469, %v4470
      %v4472 = vadd.f32 %v4308, %v4310
      %v4473 = vadd.f32 %v4472, %v4312
      %v4474 = vadd.f32 %v4473, %v4314
      %v4475 = vadd.f32 %v4474, %v4316
      %v4476 = vadd.f32 %v4475, %v4318
      %v4477 = vadd.f32 %v4476, %v4320
      %v4478 = vadd.f32 %v4477, %v4322
      %v4479 = vadd.f32 %v4478, %v4324
      %v4480 = vadd.f32 %v4479, %v4326
      %v4481 = vadd.f32 %v4480, %v4328
      %v4482 = vadd.f32 %v4481, %v4330
      %v4483 = vadd.f32 %v4482, %v4332
      %v4484 = vadd.f32 %v4483, %v4334
      %v4485 = vadd.f32 %v4484, %v4336
      %v4486 = vadd.f32 %v4485, %v4338
      %v4487 = vadd.f32 %v4486, %v4340
      %v4488 = vadd.f32 %v4487, %v4342
      %v4489 = vadd.f32 %v4488, %v4344
      %v4490 = vadd.f32 %v4489, %v4346
      %v4491 = vadd.f32 %v4490, %v4348
      %v4492 = vadd.f32 %v4491, %v4350
      %v4493 = vadd.f32 %v4492, %v4352
      %v4494 = vadd.f32 %v4493, %v4354
      %v4495 = vadd.f32 %v4494, %v4356
      %v4496 = vadd.f32 %v4495, %v4358
      %v4497 = vadd.f32 %v4496, %v4360
      %v4498 = vadd.f32 %v4497, %v4362
      %v4499 = vadd.f32 %v4498, %v4364
      %v4500 = vadd.f32 %v4499, %v4366
      %v4501 = vadd.f32 %v4500, %v4368
      %v4502 = vadd.f32 %v4501, %v4370
      %v4503 = vrot.slane %v4502, 4
      %v4504 = vadd.f32 %v4502, %v4503
      %v4505 = vrot.slane %v4504, 2
      %v4506 = vadd.f32 %v4504, %v4505
      %v4507 = vrot.slane %v4506, 1
      %v4508 = vadd.f32 %v4506, %v4507
      %v4509 = vmul.f32 %v4307, %v4307
      %v4510 = vmul.f32 %v4308, %v4308
      %v4511 = vmul.f32 %v4309, %v4309
      %v4512 = vmul.f32 %v4310, %v4310
      %v4513 = vmul.f32 %v4311, %v4311
      %v4514 = vmul.f32 %v4312, %v4312
      %v4515 = vmul.f32 %v4313, %v4313
      %v4516 = vmul.f32 %v4314, %v4314
      %v4517 = vmul.f32 %v4315, %v4315
      %v4518 = vmul.f32 %v4316, %v4316
      %v4519 = vmul.f32 %v4317, %v4317
      %v4520 = vmul.f32 %v4318, %v4318
      %v4521 = vmul.f32 %v4319, %v4319
      %v4522 = vmul.f32 %v4320, %v4320
      %v4523 = vmul.f32 %v4321, %v4321
      %v4524 = vmul.f32 %v4322, %v4322
      %v4525 = vmul.f32 %v4323, %v4323
      %v4526 = vmul.f32 %v4324, %v4324
      %v4527 = vmul.f32 %v4325, %v4325
      %v4528 = vmul.f32 %v4326, %v4326
      %v4529 = vmul.f32 %v4327, %v4327
      %v4530 = vmul.f32 %v4328, %v4328
      %v4531 = vmul.f32 %v4329, %v4329
      %v4532 = vmul.f32 %v4330, %v4330
      %v4533 = vmul.f32 %v4331, %v4331
      %v4534 = vmul.f32 %v4332, %v4332
      %v4535 = vmul.f32 %v4333, %v4333
      %v4536 = vmul.f32 %v4334, %v4334
      %v4537 = vmul.f32 %v4335, %v4335
      %v4538 = vmul.f32 %v4336, %v4336
      %v4539 = vmul.f32 %v4337, %v4337
      %v4540 = vmul.f32 %v4338, %v4338
      %v4541 = vmul.f32 %v4339, %v4339
      %v4542 = vmul.f32 %v4340, %v4340
      %v4543 = vmul.f32 %v4341, %v4341
      %v4544 = vmul.f32 %v4342, %v4342
      %v4545 = vmul.f32 %v4343, %v4343
      %v4546 = vmul.f32 %v4344, %v4344
      %v4547 = vmul.f32 %v4345, %v4345
      %v4548 = vmul.f32 %v4346, %v4346
      %v4549 = vmul.f32 %v4347, %v4347
      %v4550 = vmul.f32 %v4348, %v4348
      %v4551 = vmul.f32 %v4349, %v4349
      %v4552 = vmul.f32 %v4350, %v4350
      %v4553 = vmul.f32 %v4351, %v4351
      %v4554 = vmul.f32 %v4352, %v4352
      %v4555 = vmul.f32 %v4353, %v4353
      %v4556 = vmul.f32 %v4354, %v4354
      %v4557 = vmul.f32 %v4355, %v4355
      %v4558 = vmul.f32 %v4356, %v4356
      %v4559 = vmul.f32 %v4357, %v4357
      %v4560 = vmul.f32 %v4358, %v4358
      %v4561 = vmul.f32 %v4359, %v4359
      %v4562 = vmul.f32 %v4360, %v4360
      %v4563 = vmul.f32 %v4361, %v4361
      %v4564 = vmul.f32 %v4362, %v4362
      %v4565 = vmul.f32 %v4363, %v4363
      %v4566 = vmul.f32 %v4364, %v4364
      %v4567 = vmul.f32 %v4365, %v4365
      %v4568 = vmul.f32 %v4366, %v4366
      %v4569 = vmul.f32 %v4367, %v4367
      %v4570 = vmul.f32 %v4368, %v4368
      %v4571 = vmul.f32 %v4369, %v4369
      %v4572 = vmul.f32 %v4370, %v4370
      %v4573 = vadd.f32 %v4509, %v4511
      %v4574 = vadd.f32 %v4573, %v4513
      %v4575 = vadd.f32 %v4574, %v4515
      %v4576 = vadd.f32 %v4575, %v4517
      %v4577 = vadd.f32 %v4576, %v4519
      %v4578 = vadd.f32 %v4577, %v4521
      %v4579 = vadd.f32 %v4578, %v4523
      %v4580 = vadd.f32 %v4579, %v4525
      %v4581 = vadd.f32 %v4580, %v4527
      %v4582 = vadd.f32 %v4581, %v4529
      %v4583 = vadd.f32 %v4582, %v4531
      %v4584 = vadd.f32 %v4583, %v4533
      %v4585 = vadd.f32 %v4584, %v4535
      %v4586 = vadd.f32 %v4585, %v4537
      %v4587 = vadd.f32 %v4586, %v4539
      %v4588 = vadd.f32 %v4587, %v4541
      %v4589 = vadd.f32 %v4588, %v4543
      %v4590 = vadd.f32 %v4589, %v4545
      %v4591 = vadd.f32 %v4590, %v4547
      %v4592 = vadd.f32 %v4591, %v4549
      %v4593 = vadd.f32 %v4592, %v4551
      %v4594 = vadd.f32 %v4593, %v4553
      %v4595 = vadd.f32 %v4594, %v4555
      %v4596 = vadd.f32 %v4595, %v4557
      %v4597 = vadd.f32 %v4596, %v4559
      %v4598 = vadd.f32 %v4597, %v4561
      %v4599 = vadd.f32 %v4598, %v4563
      %v4600 = vadd.f32 %v4599, %v4565
      %v4601 = vadd.f32 %v4600, %v4567
      %v4602 = vadd.f32 %v4601, %v4569
      %v4603 = vadd.f32 %v4602, %v4571
      %v4604 = vrot.slane %v4603, 4
      %v4605 = vadd.f32 %v4603, %v4604
      %v4606 = vrot.slane %v4605, 2
      %v4607 = vadd.f32 %v4605, %v4606
      %v4608 = vrot.slane %v4607, 1
      %v4609 = vadd.f32 %v4607, %v4608
      %v4610 = vadd.f32 %v4510, %v4512
      %v4611 = vadd.f32 %v4610, %v4514
      %v4612 = vadd.f32 %v4611, %v4516
      %v4613 = vadd.f32 %v4612, %v4518
      %v4614 = vadd.f32 %v4613, %v4520
      %v4615 = vadd.f32 %v4614, %v4522
      %v4616 = vadd.f32 %v4615, %v4524
      %v4617 = vadd.f32 %v4616, %v4526
      %v4618 = vadd.f32 %v4617, %v4528
      %v4619 = vadd.f32 %v4618, %v4530
      %v4620 = vadd.f32 %v4619, %v4532
      %v4621 = vadd.f32 %v4620, %v4534
      %v4622 = vadd.f32 %v4621, %v4536
      %v4623 = vadd.f32 %v4622, %v4538
      %v4624 = vadd.f32 %v4623, %v4540
      %v4625 = vadd.f32 %v4624, %v4542
      %v4626 = vadd.f32 %v4625, %v4544
      %v4627 = vadd.f32 %v4626, %v4546
      %v4628 = vadd.f32 %v4627, %v4548
      %v4629 = vadd.f32 %v4628, %v4550
      %v4630 = vadd.f32 %v4629, %v4552
      %v4631 = vadd.f32 %v4630, %v4554
      %v4632 = vadd.f32 %v4631, %v4556
      %v4633 = vadd.f32 %v4632, %v4558
      %v4634 = vadd.f32 %v4633, %v4560
      %v4635 = vadd.f32 %v4634, %v4562
      %v4636 = vadd.f32 %v4635, %v4564
      %v4637 = vadd.f32 %v4636, %v4566
      %v4638 = vadd.f32 %v4637, %v4568
      %v4639 = vadd.f32 %v4638, %v4570
      %v4640 = vadd.f32 %v4639, %v4572
      %v4641 = vrot.slane %v4640, 4
      %v4642 = vadd.f32 %v4640, %v4641
      %v4643 = vrot.slane %v4642, 2
      %v4644 = vadd.f32 %v4642, %v4643
      %v4645 = vrot.slane %v4644, 1
      %v4646 = vadd.f32 %v4644, %v4645
      %vm4647 = vcmask 1040384
      %v4648 = vsel %vm4647, %v4471, %v4609
      %v4649 = vsel %vm4647, %v4508, %v4646
      %v4652 = vrot.slane %v4649, 6
      %vm4653 = vcmask 1041408
      %v4654 = vsel %vm4653, %v4648, %v4652
      %4656 = vst [vmem:[%s229] sm:$0xf] %v4654
      %p4657 = scmp.lt.s32.totalorder %s19, 1
      %s4658 = scalar_select %p4657, %s19, 1
      %p4659 = scmp.lt.s32.totalorder %s20, 0
      %s4660 = scalar_select %p4659, %s20, 0
      %s4661 = smul.addr %s4660, 64
      %s4662 = smul.addr %s4658, 64
      %s4663 = sadd.s32 %s4661, %s4662
      %s4664 = smul.addr %s4663, 4
      %s4665 = scalar_lea.vmem %s2, %s4664
      %p4666 = scmp.lt.s32.totalorder %s19, 1
      %s4667 = scalar_select %p4666, %s19, 1
      %p4668 = scmp.lt.s32.totalorder %s20, 0
      %s4669 = scalar_select %p4668, %s20, 0
      %s4670 = smul.addr %s4669, 2
      %s4671 = smul.addr %s4667, 2
      %s4672 = sadd.s32 %s4670, %s4671
      %s4673 = smul.addr %s4672, 2
      %s4674 = scalar_lea.vmem %s3, %s4673
      // Predicated region
      $region29: #{gated_conv_block_3d.2} parent=27 // pred_check
        %p4675 = pneg %p96
      $region30: #{gated_conv_block_3d.2} parent=27 // pred_check_branch
        %4677 = sbr.rel (%p4675) target = $region32
      $region31: #{gated_conv_block_3d.2} parent=27 // pred_region
        _
      $region32: #{gated_conv_block_3d.2} parent=27 // pred_fallthru
        _
      // Predicated region
      $region33: #{gated_conv_block_3d.2} parent=27 // pred_check
        %p4678 = pneg %p124
      $region34: #{gated_conv_block_3d.2} parent=27 // pred_check_branch
        %4680 = sbr.rel (%p4678) target = $region36
      $region35: #{gated_conv_block_3d.2} parent=27 // pred_region
        _
      $region36: #{gated_conv_block_3d.2} parent=27 // pred_fallthru
        _
    $region28: #{gated_conv_block_3d.2} parent=5 // pred_fallthru
      _
    %p4681 = scmp.le.s32.totalorder 2, %s10
    // Predicated region
    $region37: #{gated_conv_block_3d.2} parent=5 // pred_check
      %p4682 = pneg %p4681
    $region38: #{gated_conv_block_3d.2} parent=5 // pred_check_branch
      %4684 = sbr.rel (%p4682) target = $region40
    $region39: #{gated_conv_block_3d.2} parent=5 // pred_region
      %s4685 = ssub.s32 %s10, 2
      // Predicated region
      $region41: #{gated_conv_block_3d.2} parent=39 // pred_check
        %p4686 = pneg %p102
      $region42: #{gated_conv_block_3d.2} parent=39 // pred_check_branch
        %4688 = sbr.rel (%p4686) target = $region44
      $region43: #{gated_conv_block_3d.2} parent=39 // pred_region
        %p4689 = scmp.lt.s32.totalorder %s21, 1
        %s4690 = scalar_select %p4689, %s21, 1
        %p4691 = scmp.lt.s32.totalorder %s22, 0
        %s4692 = scalar_select %p4691, %s22, 0
        %s4693 = smul.addr %s4692, 64
        %s4694 = smul.addr %s4690, 64
        %s4695 = sadd.s32 %s4693, %s4694
        %s4696 = smul.addr %s4695, 4
        %s4697 = scalar_lea.vmem %s2, %s4696
      $region44: #{gated_conv_block_3d.2} parent=39 // pred_fallthru
        _
      // Predicated region
      $region45: #{gated_conv_block_3d.2} parent=39 // pred_check
        %p4698 = pneg %p130
      $region46: #{gated_conv_block_3d.2} parent=39 // pred_check_branch
        %4700 = sbr.rel (%p4698) target = $region48
      $region47: #{gated_conv_block_3d.2} parent=39 // pred_region
        %p4701 = scmp.lt.s32.totalorder %s21, 1
        %s4702 = scalar_select %p4701, %s21, 1
        %p4703 = scmp.lt.s32.totalorder %s22, 0
        %s4704 = scalar_select %p4703, %s22, 0
        %s4705 = smul.addr %s4704, 2
        %s4706 = smul.addr %s4702, 2
        %s4707 = sadd.s32 %s4705, %s4706
        %s4708 = smul.addr %s4707, 2
        %s4709 = scalar_lea.vmem %s3, %s4708
      $region48: #{gated_conv_block_3d.2} parent=39 // pred_fallthru
        _
    $region40: #{gated_conv_block_3d.2} parent=5 // pred_fallthru
      _
  $region6: #{gated_conv_block_3d.2} parent=0 // loop_footer
    %s14 = sadd.s32 1, %s10
  $region7: #{gated_conv_block_3d.2} parent=0 // loop_footer_branch
    %9 = sbr.rel target = $region3
  $region8: #{gated_conv_block_3d.2} parent=0 // loop_exit
    _

</llo_original>
